<compile_context>
chip_gen: v6e
topology: v6e:2x2x1
jax: 0.10.0
libtpu: 0.0.40
codegen_flags: <defaults>
</compile_context>

<pallas_src>
import jax
import jax.numpy as jnp
from jax.experimental import pallas as pl
from jax.experimental.pallas import tpu as pltpu


CLASS_TILE = 512  # lane-dense tile of output classes streamed per grid step (multiple of 128)


# ---------------------------------------------------------------------------
# Pallas kernel: fused global-average-pool + linear (one class tile per step)
# ---------------------------------------------------------------------------
def pool_fc_kernel(x_ref, w_ref, b_ref, o_ref):
    """x_ref: (N, HW, C) f32 activations, channels-last (constant block -> VMEM resident)
       w_ref: (C, TN)    bf16 fc weight tile (pre-transposed to (in, out))
       b_ref: (1, TN)    f32 fc bias tile
       o_ref: (N, TN)    f32 logits tile
    """
    hw = x_ref.shape[1]
    # Global average pool: f32 sublane reduction over HW; C=2048 stays on lanes.
    pooled = jnp.sum(x_ref[...], axis=1) * (1.0 / hw)                 # (N, C) f32
    # Single deep MXU matmul over K = C (2048); bf16 operands, f32 accumulation.
    y = jnp.dot(pooled.astype(w_ref.dtype), w_ref[...],
                preferred_element_type=jnp.float32)                   # (N, TN) f32
    o_ref[...] = (y + b_ref[...]).astype(o_ref.dtype)


# ---------------------------------------------------------------------------
# One-time parameter preparation (hoisted out of the per-call hot path)
# ---------------------------------------------------------------------------
def prepare_fc_params(fc_weight, fc_bias, weight_dtype=jnp.bfloat16):
    """fc_weight: (num_classes, C) PyTorch layout; fc_bias: (num_classes,).
    Returns (wt, bp): wt is (C, O_pad) in weight_dtype, bp is (1, O_pad) f32,
    with the class axis zero-padded to a multiple of CLASS_TILE."""
    O, C = fc_weight.shape
    O_pad = pl.cdiv(O, CLASS_TILE) * CLASS_TILE
    wt = jnp.pad(jnp.transpose(fc_weight), ((0, 0), (0, O_pad - O))).astype(weight_dtype)
    bp = jnp.pad(fc_bias, (0, O_pad - O)).astype(jnp.float32).reshape(1, O_pad)
    return wt, bp


# ---------------------------------------------------------------------------
# Forward wrapper (per-call hot path)
# ---------------------------------------------------------------------------
def inception_tail(x_nchw, wt, bp, num_classes):
    """x_nchw: (N, C, H, W); wt/bp from prepare_fc_params. Returns (N, num_classes) logits."""
    N, C, H, W = x_nchw.shape
    Cw, O_pad = wt.shape
    assert Cw == C, (Cw, C)
    assert O_pad % CLASS_TILE == 0 and O_pad >= num_classes
    HW = H * W

    # NCHW -> (N, HW, C): reshape is free; the transpose puts channels on lanes.
    x_flat = jnp.transpose(x_nchw.reshape(N, C, HW), (0, 2, 1))

    grid = (O_pad // CLASS_TILE,)
    cost = pl.CostEstimate(
        flops=2 * N * C * O_pad + N * HW * C,
        transcendentals=0,
        bytes_accessed=(4 * N * HW * C            # f32 activations
                        + wt.dtype.itemsize * C * O_pad   # bf16 weight stream
                        + 4 * O_pad               # bias
                        + 4 * N * O_pad),         # logits
    )

    out = pl.pallas_call(
        pool_fc_kernel,
        out_shape=jax.ShapeDtypeStruct((N, O_pad), x_nchw.dtype),
        grid=grid,
        in_specs=[
            # Full activation block, constant index -> DMA'd once, VMEM-resident across steps.
            pl.BlockSpec((N, HW, C), lambda j: (0, 0, 0)),
            # Weight streamed one (C, CLASS_TILE) bf16 slab per grid step (pipelined vs compute).
            pl.BlockSpec((C, CLASS_TILE), lambda j: (0, j)),
            pl.BlockSpec((1, CLASS_TILE), lambda j: (0, j)),
        ],
        out_specs=pl.BlockSpec((N, CLASS_TILE), lambda j: (0, j)),
        compiler_params=pltpu.CompilerParams(dimension_semantics=("parallel",)),
        cost_estimate=cost,
    )(x_flat, wt, bp)

    return out[:, :num_classes]   # drop the class padding


# ---------------------------------------------------------------------------
if __name__ == "__main__":
    key = jax.random.PRNGKey(0)
    # fc input width is fixed at 2048 by the module; Inception-v3 tail sees 8x8 spatial.
    N, C, H, W = 2, 2048, 8, 8
    num_classes = 1000

    kx, kw, kb = jax.random.split(key, 3)
    x = jax.random.normal(kx, (N, C, H, W), jnp.float32)
    bound = 1.0 / (C ** 0.5)                      # nn.Linear default init scale
    fc_w = jax.random.uniform(kw, (num_classes, C), jnp.float32, -bound, bound)
    fc_b = jax.random.uniform(kb, (num_classes,), jnp.float32, -bound, bound)

    # One-time weight prep (outside the per-call hot path).
    wt, bp = prepare_fc_params(fc_w, fc_b)
    wt, bp = jax.block_until_ready((wt, bp))

    out = jax.block_until_ready(inception_tail(x, wt, bp, num_classes))
    assert out.shape == (N, num_classes), out.shape

    # Pure-JAX reference: avg_pool2d(kernel=HxW) -> squeeze -> linear (f32).
    pooled = jnp.mean(x, axis=(2, 3))
    ref = jnp.dot(pooled, fc_w.T, precision=jax.lax.Precision.HIGHEST) + fc_b
    ref = jax.block_until_ready(ref)

    max_err = float(jnp.max(jnp.abs(out - ref)))
    assert jnp.allclose(out, ref, rtol=1e-2, atol=1e-2), f"max err {max_err}"

    print("KERNEL_OK")
</pallas_src>

<mosaic_0001>
module attributes {stable_mosaic.version = 11 : i64} {
  func.func @pool_fc_kernel(%arg0: i32, %arg1: memref<2x64x2048xf32, #tpu.memory_space<vmem>>, %arg2: memref<2048x512xbf16, #tpu.memory_space<vmem>>, %arg3: memref<1x512xf32, #tpu.memory_space<vmem>>, %arg4: memref<2x512xf32, #tpu.memory_space<vmem>>) attributes {dimension_semantics = [#tpu.dimension_semantics<parallel>], iteration_bounds = array<i64: 2>, scalar_prefetch = 0 : i64, scratch_operands = 0 : i64, tpu.core_type = #tpu.core_type<tc>, window_params = [{pipeline_mode = #tpu.pipeline_mode<synchronous>, transform_indices = @transform_0, window_bounds = array<i64: 2, 64, 2048>}, {transform_indices = @transform_1, window_bounds = array<i64: 2048, 512>}, {transform_indices = @transform_2, window_bounds = array<i64: 1, 512>}, {transform_indices = @transform_3, window_bounds = array<i64: 2, 512>}]} {
    %c0 = arith.constant 0 : index
    %c0_0 = arith.constant 0 : index
    %c0_1 = arith.constant 0 : index
    %0 = vector.load %arg1[%c0, %c0_0, %c0_1] : memref<2x64x2048xf32, #tpu.memory_space<vmem>>, vector<2x64x2048xf32>
    %cst = arith.constant dense<0.000000e+00> : vector<2x2048xf32>
    %1 = vector.multi_reduction <add>, %0, %cst [1] : vector<2x64x2048xf32> to vector<2x2048xf32>
    %cst_2 = arith.constant 1.562500e-02 : f32
    %2 = vector.broadcast %cst_2 : f32 to vector<2x2048xf32>
    %3 = arith.mulf %1, %2 : vector<2x2048xf32>
    %4 = arith.truncf %3 : vector<2x2048xf32> to vector<2x2048xbf16>
    %c0_3 = arith.constant 0 : index
    %c0_4 = arith.constant 0 : index
    %5 = vector.load %arg2[%c0_3, %c0_4] : memref<2048x512xbf16, #tpu.memory_space<vmem>>, vector<2048x512xbf16>
    %cst_5 = arith.constant dense<0.000000e+00> : vector<2x512xf32>
    %6 = tpu.matmul %4, %5, %cst_5 {dimension_numbers = #tpu.dot_dimension_numbers<[1], [0], [0], [1], [0, 0, 1, 1], [], []>} : vector<2x2048xbf16>, vector<2048x512xbf16>, vector<2x512xf32> -> vector<2x512xf32>
    %c0_6 = arith.constant 0 : index
    %c0_7 = arith.constant 0 : index
    %7 = vector.load %arg3[%c0_6, %c0_7] : memref<1x512xf32, #tpu.memory_space<vmem>>, vector<1x512xf32>
    %8 = vector.broadcast %7 : vector<1x512xf32> to vector<2x512xf32>
    %9 = arith.addf %6, %8 : vector<2x512xf32>
    %c0_8 = arith.constant 0 : index
    %c0_9 = arith.constant 0 : index
    %10 = vector.load %arg4[%c0_8, %c0_9] : memref<2x512xf32, #tpu.memory_space<vmem>>, vector<2x512xf32>
    tpu.vector_store %arg4[%c0_8, %c0_9], %9 {strides = array<i32>} : memref<2x512xf32, #tpu.memory_space<vmem>>, vector<2x512xf32>,
    return
  }
  func.func @transform_0(%arg0: i32) -> (i32, i32, i32) {
    %c0_i32 = arith.constant 0 : i32
    %c0_i32_0 = arith.constant 0 : i32
    %c0_i32_1 = arith.constant 0 : i32
    %c0_i32_2 = arith.constant 0 : i32
    return %c0_i32, %c0_i32_0, %c0_i32_1 : i32, i32, i32
  }
  func.func @transform_1(%arg0: i32) -> (i32, i32) {
    %c0_i32 = arith.constant 0 : i32
    %c0_i32_0 = arith.constant 0 : i32
    return %c0_i32, %arg0 : i32, i32
  }
  func.func @transform_2(%arg0: i32) -> (i32, i32) {
    %c0_i32 = arith.constant 0 : i32
    %c0_i32_0 = arith.constant 0 : i32
    return %c0_i32, %arg0 : i32, i32
  }
  func.func @transform_3(%arg0: i32) -> (i32, i32) {
    %c0_i32 = arith.constant 0 : i32
    %c0_i32_0 = arith.constant 0 : i32
    return %c0_i32, %arg0 : i32, i32
  }
}

</mosaic_0001>

<llo_original>
// kernel: tpu_custom_call.1
$region0: #{tpu_custom_call.1}
  #allocation0 [shape = 'u32[]', space=smem, size = 0x4, offset = 0x4, fixed_abs, tag = 'smem constant byte address 0x4 - core index']
  #allocation1 [shape = 'u32[144,128]{1,0:T(1,128)}', space=vmem, size = 0x12000, scoped, tag = 'internal scratch']
  %s0 = inlined_call_operand.hbm [shape: f32[2,64,2048], index: 0, kind: input, shape index: {}]
  %s1 = inlined_call_operand.hbm [shape: bf16[2048,1024], index: 1, kind: input, shape index: {}]
  %s2 = inlined_call_operand.hbm [shape: f32[1,1024], index: 2, kind: input, shape index: {}]
  %s3 = inlined_call_operand.hbm [shape: f32[2,1024], index: 3, kind: output, shape index: {}]
  %s4 = sld [smem:[#allocation0]]
  $region57: #{tpu_custom_call.1} parent=0
    _
  %s6 = ssub.s32 1, %s4
  %s7 = scalar_select 0, %s6, %s4
  $region1: #{tpu_custom_call.1} parent=0
    #allocation2 [shape = 'u8[1048576]{0}', space=vmem, size = 0x100000, scoped, tag = 'input window, operand 0, single buffered']
    #allocation3 [shape = 's32[2]{0}', space=sflag, size = 0x8, scoped, tag = 'scoped memory for tpu_custom_call.1']
    #allocation4 [shape = 's32[2]{0}', space=sflag, size = 0x8, scoped, tag = 'scoped memory for tpu_custom_call.1']
    #allocation5 [shape = 'u8[4194304]{0}', space=vmem, size = 0x400000, scoped, tag = 'input window, operand 1']
    #allocation6 [shape = 's32[2]{0}', space=sflag, size = 0x8, scoped, tag = 'scoped memory for tpu_custom_call.1']
    #allocation7 [shape = 'u8[4096]{0}', space=vmem, size = 0x1000, scoped, tag = 'input window, operand 2']
    #allocation8 [shape = 'u8[8192]{0}', space=vmem, size = 0x2000, scoped, tag = 'output window, operand 0']
    %8 = vsyncpa [#allocation3], 0
    %9 = vsyncpa [#allocation6], 0
    %s10 = scalar_lea.sflag [#allocation6], 1
    %11 = vsyncpa %s10, 0
    %12 = vsyncpa [#allocation4], 0
    %s13 = scalar_lea.sflag [#allocation4], 1
    %14 = vsyncpa %s13, 0
    loop: start=0, step=1, limit=4
    $region2: #{tpu_custom_call.1} parent=1 // loop_pre_header
      _
    $region3: #{tpu_custom_call.1} parent=1 // loop_header
      %s16 = sphi 0, %s20
      %p17 = scmp.ge.s32.totalorder %s16, 4
      %s24 = sphi 0, %s24
      %s26 = sphi 0, %s24
      %s27 = sphi 0, %s26
      %s41 = sphi 0, %s27
      %s47 = sphi 0, %s49
      %s50 = sphi 0, %s47
      %s51 = sphi 0, %s50
      %s67 = sphi 0, %s51
      %s73 = sphi 0, %s75
      %s76 = sphi 0, %s73
      %s77 = sphi 0, %s76
      %s93 = sphi 0, %s77
      %s99 = sphi 0, %s101
      %s102 = sphi 0, %s99
      %s103 = sphi 0, %s102
      %s119 = sphi 0, %s103
    $region4: #{tpu_custom_call.1} parent=1 // loop_header_branch
      %19 = sbr.rel (%p17) target = $region8
    $region5: #{tpu_custom_call.1} parent=1 // loop_body
      %s21 = ssub.s32 %s16, 1
      %s22 = ssub.s32 %s16, 2
      %s23 = sadd.s32 %s16, 1
      %s25 = sadd.s32 %s24, 1
      %p28 = scmp.eq.s32.totalorder %s16, 1
      %p29 = scmp.ne.s32.totalorder %s24, %s26
      %p30 = scmp.eq.s32.totalorder %s16, 0
      %p31 = por %p29, %p30
      %p32 = scmp.ne.s32.totalorder %s24, %s26
      %p33 = scmp.eq.s32.totalorder %s21, 1
      %p34 = por %p32, %p33
      %p35 = scmp.ne.s32.totalorder %s26, %s27
      %p36 = scmp.eq.s32.totalorder %s21, 0
      %p37 = por %p35, %p36
      %p38 = scmp.ne.s32.totalorder %s26, %s27
      %p39 = scmp.eq.s32.totalorder %s22, 1
      %p40 = por %p38, %p39
      %p42 = scmp.ne.s32.totalorder %s27, %s41
      %p43 = scmp.eq.s32.totalorder %s22, 0
      %p44 = por %p42, %p43
      %s45 = ssub.s32 %s16, %s23
      %p46 = scmp.eq.s32.totalorder %s45, 0
      %s48 = sadd.s32 %s47, 1
      %s49 = scalar_select %p46, %s47, %s48
      %p52 = pneg %p46
      %p53 = scmp.eq.s32.totalorder %s16, 1
      %p54 = por %p52, %p53
      %p55 = scmp.ne.s32.totalorder %s47, %s50
      %p56 = scmp.eq.s32.totalorder %s16, 0
      %p57 = por %p55, %p56
      %p58 = scmp.ne.s32.totalorder %s47, %s50
      %p59 = scmp.eq.s32.totalorder %s21, 1
      %p60 = por %p58, %p59
      %p61 = scmp.ne.s32.totalorder %s50, %s51
      %p62 = scmp.eq.s32.totalorder %s21, 0
      %p63 = por %p61, %p62
      %p64 = scmp.ne.s32.totalorder %s50, %s51
      %p65 = scmp.eq.s32.totalorder %s22, 1
      %p66 = por %p64, %p65
      %p68 = scmp.ne.s32.totalorder %s51, %s67
      %p69 = scmp.eq.s32.totalorder %s22, 0
      %p70 = por %p68, %p69
      %s71 = ssub.s32 %s16, %s23
      %p72 = scmp.eq.s32.totalorder %s71, 0
      %s74 = sadd.s32 %s73, 1
      %s75 = scalar_select %p72, %s73, %s74
      %p78 = pneg %p72
      %p79 = scmp.eq.s32.totalorder %s16, 1
      %p80 = por %p78, %p79
      %p81 = scmp.ne.s32.totalorder %s73, %s76
      %p82 = scmp.eq.s32.totalorder %s16, 0
      %p83 = por %p81, %p82
      %p84 = scmp.ne.s32.totalorder %s73, %s76
      %p85 = scmp.eq.s32.totalorder %s21, 1
      %p86 = por %p84, %p85
      %p87 = scmp.ne.s32.totalorder %s76, %s77
      %p88 = scmp.eq.s32.totalorder %s21, 0
      %p89 = por %p87, %p88
      %p90 = scmp.ne.s32.totalorder %s76, %s77
      %p91 = scmp.eq.s32.totalorder %s22, 1
      %p92 = por %p90, %p91
      %p94 = scmp.ne.s32.totalorder %s77, %s93
      %p95 = scmp.eq.s32.totalorder %s22, 0
      %p96 = por %p94, %p95
      %s97 = ssub.s32 %s16, %s23
      %p98 = scmp.eq.s32.totalorder %s97, 0
      %s100 = sadd.s32 %s99, 1
      %s101 = scalar_select %p98, %s99, %s100
      %p104 = pneg %p98
      %p105 = scmp.eq.s32.totalorder %s16, 1
      %p106 = por %p104, %p105
      %p107 = scmp.ne.s32.totalorder %s99, %s102
      %p108 = scmp.eq.s32.totalorder %s16, 0
      %p109 = por %p107, %p108
      %p110 = scmp.ne.s32.totalorder %s99, %s102
      %p111 = scmp.eq.s32.totalorder %s21, 1
      %p112 = por %p110, %p111
      %p113 = scmp.ne.s32.totalorder %s102, %s103
      %p114 = scmp.eq.s32.totalorder %s21, 0
      %p115 = por %p113, %p114
      %p116 = scmp.ne.s32.totalorder %s102, %s103
      %p117 = scmp.eq.s32.totalorder %s22, 1
      %p118 = por %p116, %p117
      %p120 = scmp.ne.s32.totalorder %s103, %s119
      %p121 = scmp.eq.s32.totalorder %s22, 0
      %p122 = por %p120, %p121
      %p123 = scmp.le.s32.totalorder 1, %s16
      %p124 = scmp.lt.s32.totalorder %s16, 3
      %p125 = pnand %p123, %p124
      %p126 = pneg %p125
      // Predicated region
      $region9: #{tpu_custom_call.1} parent=5 // pred_check
        _
      $region10: #{tpu_custom_call.1} parent=5 // pred_check_branch
        %128 = sbr.rel (%p125) target = $region12
      $region11: #{tpu_custom_call.1} parent=5 // pred_region
        %s129 = ssub.s32 %s16, 1
        // Predicated region
        $region13: #{tpu_custom_call.1} parent=11 // pred_check
          %p130 = pneg %p37
        $region14: #{tpu_custom_call.1} parent=11 // pred_check_branch
          %132 = sbr.rel (%p130) target = $region16
        $region15: #{tpu_custom_call.1} parent=11 // pred_region
          %s134 = ssub.s32 32768, 32768
          %135 = vsyncadd [#allocation3], %s134
          %s136 = sshll.u32 [#allocation2], 4
          %s137 = int_to_ptr.vmem [resolvable:$true] %s136
          %142 = dma.hbm_to_vmem [thread:$0]  %s0, 32768, %s137, [#allocation3], 2048, 2048, 128
        $region16: #{tpu_custom_call.1} parent=11 // pred_fallthru
          _
      $region12: #{tpu_custom_call.1} parent=5 // pred_fallthru
        _
      %p143 = scmp.lt.s32.totalorder %s16, 2
      // Predicated region
      $region17: #{tpu_custom_call.1} parent=5 // pred_check
        %p144 = pneg %p143
      $region18: #{tpu_custom_call.1} parent=5 // pred_check_branch
        %146 = sbr.rel (%p144) target = $region20
      $region19: #{tpu_custom_call.1} parent=5 // pred_region
        // Predicated region
        $region21: #{tpu_custom_call.1} parent=19 // pred_check
          %p147 = pneg %p57
        $region22: #{tpu_custom_call.1} parent=19 // pred_check_branch
          %149 = sbr.rel (%p147) target = $region24
        $region23: #{tpu_custom_call.1} parent=19 // pred_region
          %s150 = sand.u32 %s16, 1
          %s151 = scalar_lea.sflag [#allocation6], %s150
          %s152 = sand.u32 %s47, 1
          %s153 = smul.addr %s152, 4096
          %s154 = scalar_lea.vmem [#allocation5], %s153
          %s155 = smul.u32 4, %s16
          %s157 = ssub.s32 65536, 65536
          %158 = vsyncadd %s151, %s157
          %s159 = smul.addr %s155, 64
          %s160 = scalar_lea.hbm %s1, %s159
          %s161 = sshll.u32 %s154, 4
          %s162 = int_to_ptr.vmem [resolvable:$true] %s161
          %167 = dma.hbm_to_vmem [thread:$0]  %s160, 65536, %s162, %s151, 512, 256, 16
        $region24: #{tpu_custom_call.1} parent=19 // pred_fallthru
          _
        // Predicated region
        $region25: #{tpu_custom_call.1} parent=19 // pred_check
          %p168 = pneg %p83
        $region26: #{tpu_custom_call.1} parent=19 // pred_check_branch
          %170 = sbr.rel (%p168) target = $region28
        $region27: #{tpu_custom_call.1} parent=19 // pred_region
          %s171 = sand.u32 %s16, 1
          %s172 = scalar_lea.sflag [#allocation6], %s171
          %s173 = sand.u32 %s73, 1
          %s174 = smul.addr %s173, 4
          %s175 = scalar_lea.vmem [#allocation7], %s174
          %s176 = smul.u32 4, %s16
          %s178 = ssub.s32 64, 64
          %179 = vsyncadd %s172, %s178
          %s180 = smul.addr %s176, 16
          %s181 = scalar_lea.hbm %s2, %s180
          %s183 = sshll.u32 %s175, 4
          %s184 = int_to_ptr.vmem [resolvable:$true] %s183
          %186 = dma.hbm_to_vmem [thread:$0]  %s181, 64, %s184, %s172
        $region28: #{tpu_custom_call.1} parent=19 // pred_fallthru
          _
      $region20: #{tpu_custom_call.1} parent=5 // pred_fallthru
        _
      %p187 = scmp.le.s32.totalorder 1, %s16
      %p188 = scmp.lt.s32.totalorder %s16, 3
      %p189 = pnand %p187, %p188
      %p190 = pneg %p189
      // Predicated region
      $region29: #{tpu_custom_call.1} parent=5 // pred_check
        _
      $region30: #{tpu_custom_call.1} parent=5 // pred_check_branch
        %192 = sbr.rel (%p189) target = $region32
      $region31: #{tpu_custom_call.1} parent=5 // pred_region
        %s193 = ssub.s32 %s16, 1
        // Predicated region
        $region33: #{tpu_custom_call.1} parent=31 // pred_check
          %p194 = pneg %p37
        $region34: #{tpu_custom_call.1} parent=31 // pred_check_branch
          %196 = sbr.rel (%p194) target = $region36
        $region35: #{tpu_custom_call.1} parent=31 // pred_region
          %197 = dma.done [#allocation3], 32768
        $region36: #{tpu_custom_call.1} parent=31 // pred_fallthru
          _
        %s198 = sand.u32 %s21, 1
        %s199 = scalar_lea.sflag [#allocation6], %s198
        %s200 = sand.u32 %s50, 1
        %s201 = smul.addr %s200, 4096
        %s202 = scalar_lea.vmem [#allocation5], %s201
        // Predicated region
        $region37: #{tpu_custom_call.1} parent=31 // pred_check
          %p203 = pneg %p63
        $region38: #{tpu_custom_call.1} parent=31 // pred_check_branch
          %205 = sbr.rel (%p203) target = $region40
        $region39: #{tpu_custom_call.1} parent=31 // pred_region
          %206 = dma.done %s199, 65536
        $region40: #{tpu_custom_call.1} parent=31 // pred_fallthru
          _
        %s207 = sand.u32 %s21, 1
        %s208 = scalar_lea.sflag [#allocation6], %s207
        %s209 = sand.u32 %s76, 1
        %s210 = smul.addr %s209, 4
        %s211 = scalar_lea.vmem [#allocation7], %s210
        // Predicated region
        $region41: #{tpu_custom_call.1} parent=31 // pred_check
          %p212 = pneg %p89
        $region42: #{tpu_custom_call.1} parent=31 // pred_check_branch
          %214 = sbr.rel (%p212) target = $region44
        $region43: #{tpu_custom_call.1} parent=31 // pred_region
          %215 = dma.done %s208, 64
        $region44: #{tpu_custom_call.1} parent=31 // pred_fallthru
          _
        %p216 = pneg %p37
        %p217 = pneg %p34
        %s218 = sand.u32 %s21, 1
        %s219 = scalar_lea.sflag [#allocation6], %s218
        %s220 = sand.u32 %s50, 1
        %s221 = smul.addr %s220, 4096
        %s222 = scalar_lea.vmem [#allocation5], %s221
        %p223 = pneg %p63
        %p224 = pneg %p60
        %s225 = sand.u32 %s21, 1
        %s226 = scalar_lea.sflag [#allocation6], %s225
        %s227 = sand.u32 %s76, 1
        %s228 = smul.addr %s227, 4
        %s229 = scalar_lea.vmem [#allocation7], %s228
        %p230 = pneg %p89
        %p231 = pneg %p86
        %p232 = pneg %p115
        %p233 = pneg %p112
        %s234 = sand.u32 %s102, 1
        %s235 = scalar_lea.sflag [#allocation4], %s234
        %s236 = sand.u32 %s102, 1
        %s237 = smul.addr %s236, 8
        %s238 = scalar_lea.vmem [#allocation8], %s237
        %s239 = smul.u32 4, %s21
        %s240 = smul.u32 4, %s21
        %s241 = smul.u32 4, %s21
        %v242 = vld [vmem:[#allocation2] sm:$0xff]
        %v243 = vld [vmem:[#allocation2 + $0x8] sm:$0xff]
        %v244 = vld [vmem:[#allocation2 + $0x10] sm:$0xff]
        %v245 = vld [vmem:[#allocation2 + $0x18] sm:$0xff]
        %v246 = vld [vmem:[#allocation2 + $0x20] sm:$0xff]
        %v247 = vld [vmem:[#allocation2 + $0x28] sm:$0xff]
        %v248 = vld [vmem:[#allocation2 + $0x30] sm:$0xff]
        %v249 = vld [vmem:[#allocation2 + $0x38] sm:$0xff]
        %v250 = vld [vmem:[#allocation2 + $0x40] sm:$0xff]
        %v251 = vld [vmem:[#allocation2 + $0x48] sm:$0xff]
        %v252 = vld [vmem:[#allocation2 + $0x50] sm:$0xff]
        %v253 = vld [vmem:[#allocation2 + $0x58] sm:$0xff]
        %v254 = vld [vmem:[#allocation2 + $0x60] sm:$0xff]
        %v255 = vld [vmem:[#allocation2 + $0x68] sm:$0xff]
        %v256 = vld [vmem:[#allocation2 + $0x70] sm:$0xff]
        %v257 = vld [vmem:[#allocation2 + $0x78] sm:$0xff]
        %v258 = vld [vmem:[#allocation2 + $0x80] sm:$0xff]
        %v259 = vld [vmem:[#allocation2 + $0x88] sm:$0xff]
        %v260 = vld [vmem:[#allocation2 + $0x90] sm:$0xff]
        %v261 = vld [vmem:[#allocation2 + $0x98] sm:$0xff]
        %v262 = vld [vmem:[#allocation2 + $0xa0] sm:$0xff]
        %v263 = vld [vmem:[#allocation2 + $0xa8] sm:$0xff]
        %v264 = vld [vmem:[#allocation2 + $0xb0] sm:$0xff]
        %v265 = vld [vmem:[#allocation2 + $0xb8] sm:$0xff]
        %v266 = vld [vmem:[#allocation2 + $0xc0] sm:$0xff]
        %v267 = vld [vmem:[#allocation2 + $0xc8] sm:$0xff]
        %v268 = vld [vmem:[#allocation2 + $0xd0] sm:$0xff]
        %v269 = vld [vmem:[#allocation2 + $0xd8] sm:$0xff]
        %v270 = vld [vmem:[#allocation2 + $0xe0] sm:$0xff]
        %v271 = vld [vmem:[#allocation2 + $0xe8] sm:$0xff]
        %v272 = vld [vmem:[#allocation2 + $0xf0] sm:$0xff]
        %v273 = vld [vmem:[#allocation2 + $0xf8] sm:$0xff]
        %v274 = vld [vmem:[#allocation2 + $0x100] sm:$0xff]
        %v275 = vld [vmem:[#allocation2 + $0x108] sm:$0xff]
        %v276 = vld [vmem:[#allocation2 + $0x110] sm:$0xff]
        %v277 = vld [vmem:[#allocation2 + $0x118] sm:$0xff]
        %v278 = vld [vmem:[#allocation2 + $0x120] sm:$0xff]
        %v279 = vld [vmem:[#allocation2 + $0x128] sm:$0xff]
        %v280 = vld [vmem:[#allocation2 + $0x130] sm:$0xff]
        %v281 = vld [vmem:[#allocation2 + $0x138] sm:$0xff]
        %v282 = vld [vmem:[#allocation2 + $0x140] sm:$0xff]
        %v283 = vld [vmem:[#allocation2 + $0x148] sm:$0xff]
        %v284 = vld [vmem:[#allocation2 + $0x150] sm:$0xff]
        %v285 = vld [vmem:[#allocation2 + $0x158] sm:$0xff]
        %v286 = vld [vmem:[#allocation2 + $0x160] sm:$0xff]
        %v287 = vld [vmem:[#allocation2 + $0x168] sm:$0xff]
        %v288 = vld [vmem:[#allocation2 + $0x170] sm:$0xff]
        %v289 = vld [vmem:[#allocation2 + $0x178] sm:$0xff]
        %v290 = vld [vmem:[#allocation2 + $0x180] sm:$0xff]
        %v291 = vld [vmem:[#allocation2 + $0x188] sm:$0xff]
        %v292 = vld [vmem:[#allocation2 + $0x190] sm:$0xff]
        %v293 = vld [vmem:[#allocation2 + $0x198] sm:$0xff]
        %v294 = vld [vmem:[#allocation2 + $0x1a0] sm:$0xff]
        %v295 = vld [vmem:[#allocation2 + $0x1a8] sm:$0xff]
        %v296 = vld [vmem:[#allocation2 + $0x1b0] sm:$0xff]
        %v297 = vld [vmem:[#allocation2 + $0x1b8] sm:$0xff]
        %v298 = vld [vmem:[#allocation2 + $0x1c0] sm:$0xff]
        %v299 = vld [vmem:[#allocation2 + $0x1c8] sm:$0xff]
        %v300 = vld [vmem:[#allocation2 + $0x1d0] sm:$0xff]
        %v301 = vld [vmem:[#allocation2 + $0x1d8] sm:$0xff]
        %v302 = vld [vmem:[#allocation2 + $0x1e0] sm:$0xff]
        %v303 = vld [vmem:[#allocation2 + $0x1e8] sm:$0xff]
        %v304 = vld [vmem:[#allocation2 + $0x1f0] sm:$0xff]
        %v305 = vld [vmem:[#allocation2 + $0x1f8] sm:$0xff]
        %v306 = vld [vmem:[#allocation2 + $0x200] sm:$0xff]
        %v307 = vld [vmem:[#allocation2 + $0x208] sm:$0xff]
        %v308 = vld [vmem:[#allocation2 + $0x210] sm:$0xff]
        %v309 = vld [vmem:[#allocation2 + $0x218] sm:$0xff]
        %v310 = vld [vmem:[#allocation2 + $0x220] sm:$0xff]
        %v311 = vld [vmem:[#allocation2 + $0x228] sm:$0xff]
        %v312 = vld [vmem:[#allocation2 + $0x230] sm:$0xff]
        %v313 = vld [vmem:[#allocation2 + $0x238] sm:$0xff]
        %v314 = vld [vmem:[#allocation2 + $0x240] sm:$0xff]
        %v315 = vld [vmem:[#allocation2 + $0x248] sm:$0xff]
        %v316 = vld [vmem:[#allocation2 + $0x250] sm:$0xff]
        %v317 = vld [vmem:[#allocation2 + $0x258] sm:$0xff]
        %v318 = vld [vmem:[#allocation2 + $0x260] sm:$0xff]
        %v319 = vld [vmem:[#allocation2 + $0x268] sm:$0xff]
        %v320 = vld [vmem:[#allocation2 + $0x270] sm:$0xff]
        %v321 = vld [vmem:[#allocation2 + $0x278] sm:$0xff]
        %v322 = vld [vmem:[#allocation2 + $0x280] sm:$0xff]
        %v323 = vld [vmem:[#allocation2 + $0x288] sm:$0xff]
        %v324 = vld [vmem:[#allocation2 + $0x290] sm:$0xff]
        %v325 = vld [vmem:[#allocation2 + $0x298] sm:$0xff]
        %v326 = vld [vmem:[#allocation2 + $0x2a0] sm:$0xff]
        %v327 = vld [vmem:[#allocation2 + $0x2a8] sm:$0xff]
        %v328 = vld [vmem:[#allocation2 + $0x2b0] sm:$0xff]
        %v329 = vld [vmem:[#allocation2 + $0x2b8] sm:$0xff]
        %v330 = vld [vmem:[#allocation2 + $0x2c0] sm:$0xff]
        %v331 = vld [vmem:[#allocation2 + $0x2c8] sm:$0xff]
        %v332 = vld [vmem:[#allocation2 + $0x2d0] sm:$0xff]
        %v333 = vld [vmem:[#allocation2 + $0x2d8] sm:$0xff]
        %v334 = vld [vmem:[#allocation2 + $0x2e0] sm:$0xff]
        %v335 = vld [vmem:[#allocation2 + $0x2e8] sm:$0xff]
        %v336 = vld [vmem:[#allocation2 + $0x2f0] sm:$0xff]
        %v337 = vld [vmem:[#allocation2 + $0x2f8] sm:$0xff]
        %v338 = vld [vmem:[#allocation2 + $0x300] sm:$0xff]
        %v339 = vld [vmem:[#allocation2 + $0x308] sm:$0xff]
        %v340 = vld [vmem:[#allocation2 + $0x310] sm:$0xff]
        %v341 = vld [vmem:[#allocation2 + $0x318] sm:$0xff]
        %v342 = vld [vmem:[#allocation2 + $0x320] sm:$0xff]
        %v343 = vld [vmem:[#allocation2 + $0x328] sm:$0xff]
        %v344 = vld [vmem:[#allocation2 + $0x330] sm:$0xff]
        %v345 = vld [vmem:[#allocation2 + $0x338] sm:$0xff]
        %v346 = vld [vmem:[#allocation2 + $0x340] sm:$0xff]
        %v347 = vld [vmem:[#allocation2 + $0x348] sm:$0xff]
        %v348 = vld [vmem:[#allocation2 + $0x350] sm:$0xff]
        %v349 = vld [vmem:[#allocation2 + $0x358] sm:$0xff]
        %v350 = vld [vmem:[#allocation2 + $0x360] sm:$0xff]
        %v351 = vld [vmem:[#allocation2 + $0x368] sm:$0xff]
        %v352 = vld [vmem:[#allocation2 + $0x370] sm:$0xff]
        %v353 = vld [vmem:[#allocation2 + $0x378] sm:$0xff]
        %v354 = vld [vmem:[#allocation2 + $0x380] sm:$0xff]
        %v355 = vld [vmem:[#allocation2 + $0x388] sm:$0xff]
        %v356 = vld [vmem:[#allocation2 + $0x390] sm:$0xff]
        %v357 = vld [vmem:[#allocation2 + $0x398] sm:$0xff]
        %v358 = vld [vmem:[#allocation2 + $0x3a0] sm:$0xff]
        %v359 = vld [vmem:[#allocation2 + $0x3a8] sm:$0xff]
        %v360 = vld [vmem:[#allocation2 + $0x3b0] sm:$0xff]
        %v361 = vld [vmem:[#allocation2 + $0x3b8] sm:$0xff]
        %v362 = vld [vmem:[#allocation2 + $0x3c0] sm:$0xff]
        %v363 = vld [vmem:[#allocation2 + $0x3c8] sm:$0xff]
        %v364 = vld [vmem:[#allocation2 + $0x3d0] sm:$0xff]
        %v365 = vld [vmem:[#allocation2 + $0x3d8] sm:$0xff]
        %v366 = vld [vmem:[#allocation2 + $0x3e0] sm:$0xff]
        %v367 = vld [vmem:[#allocation2 + $0x3e8] sm:$0xff]
        %v368 = vld [vmem:[#allocation2 + $0x3f0] sm:$0xff]
        %v369 = vld [vmem:[#allocation2 + $0x3f8] sm:$0xff]
        %v370 = vld [vmem:[#allocation2 + $0x400] sm:$0xff]
        %v371 = vld [vmem:[#allocation2 + $0x408] sm:$0xff]
        %v372 = vld [vmem:[#allocation2 + $0x410] sm:$0xff]
        %v373 = vld [vmem:[#allocation2 + $0x418] sm:$0xff]
        %v374 = vld [vmem:[#allocation2 + $0x420] sm:$0xff]
        %v375 = vld [vmem:[#allocation2 + $0x428] sm:$0xff]
        %v376 = vld [vmem:[#allocation2 + $0x430] sm:$0xff]
        %v377 = vld [vmem:[#allocation2 + $0x438] sm:$0xff]
        %v378 = vld [vmem:[#allocation2 + $0x440] sm:$0xff]
        %v379 = vld [vmem:[#allocation2 + $0x448] sm:$0xff]
        %v380 = vld [vmem:[#allocation2 + $0x450] sm:$0xff]
        %v381 = vld [vmem:[#allocation2 + $0x458] sm:$0xff]
        %v382 = vld [vmem:[#allocation2 + $0x460] sm:$0xff]
        %v383 = vld [vmem:[#allocation2 + $0x468] sm:$0xff]
        %v384 = vld [vmem:[#allocation2 + $0x470] sm:$0xff]
        %v385 = vld [vmem:[#allocation2 + $0x478] sm:$0xff]
        %v386 = vld [vmem:[#allocation2 + $0x480] sm:$0xff]
        %v387 = vld [vmem:[#allocation2 + $0x488] sm:$0xff]
        %v388 = vld [vmem:[#allocation2 + $0x490] sm:$0xff]
        %v389 = vld [vmem:[#allocation2 + $0x498] sm:$0xff]
        %v390 = vld [vmem:[#allocation2 + $0x4a0] sm:$0xff]
        %v391 = vld [vmem:[#allocation2 + $0x4a8] sm:$0xff]
        %v392 = vld [vmem:[#allocation2 + $0x4b0] sm:$0xff]
        %v393 = vld [vmem:[#allocation2 + $0x4b8] sm:$0xff]
        %v394 = vld [vmem:[#allocation2 + $0x4c0] sm:$0xff]
        %v395 = vld [vmem:[#allocation2 + $0x4c8] sm:$0xff]
        %v396 = vld [vmem:[#allocation2 + $0x4d0] sm:$0xff]
        %v397 = vld [vmem:[#allocation2 + $0x4d8] sm:$0xff]
        %v398 = vld [vmem:[#allocation2 + $0x4e0] sm:$0xff]
        %v399 = vld [vmem:[#allocation2 + $0x4e8] sm:$0xff]
        %v400 = vld [vmem:[#allocation2 + $0x4f0] sm:$0xff]
        %v401 = vld [vmem:[#allocation2 + $0x4f8] sm:$0xff]
        %v402 = vld [vmem:[#allocation2 + $0x500] sm:$0xff]
        %v403 = vld [vmem:[#allocation2 + $0x508] sm:$0xff]
        %v404 = vld [vmem:[#allocation2 + $0x510] sm:$0xff]
        %v405 = vld [vmem:[#allocation2 + $0x518] sm:$0xff]
        %v406 = vld [vmem:[#allocation2 + $0x520] sm:$0xff]
        %v407 = vld [vmem:[#allocation2 + $0x528] sm:$0xff]
        %v408 = vld [vmem:[#allocation2 + $0x530] sm:$0xff]
        %v409 = vld [vmem:[#allocation2 + $0x538] sm:$0xff]
        %v410 = vld [vmem:[#allocation2 + $0x540] sm:$0xff]
        %v411 = vld [vmem:[#allocation2 + $0x548] sm:$0xff]
        %v412 = vld [vmem:[#allocation2 + $0x550] sm:$0xff]
        %v413 = vld [vmem:[#allocation2 + $0x558] sm:$0xff]
        %v414 = vld [vmem:[#allocation2 + $0x560] sm:$0xff]
        %v415 = vld [vmem:[#allocation2 + $0x568] sm:$0xff]
        %v416 = vld [vmem:[#allocation2 + $0x570] sm:$0xff]
        %v417 = vld [vmem:[#allocation2 + $0x578] sm:$0xff]
        %v418 = vld [vmem:[#allocation2 + $0x580] sm:$0xff]
        %v419 = vld [vmem:[#allocation2 + $0x588] sm:$0xff]
        %v420 = vld [vmem:[#allocation2 + $0x590] sm:$0xff]
        %v421 = vld [vmem:[#allocation2 + $0x598] sm:$0xff]
        %v422 = vld [vmem:[#allocation2 + $0x5a0] sm:$0xff]
        %v423 = vld [vmem:[#allocation2 + $0x5a8] sm:$0xff]
        %v424 = vld [vmem:[#allocation2 + $0x5b0] sm:$0xff]
        %v425 = vld [vmem:[#allocation2 + $0x5b8] sm:$0xff]
        %v426 = vld [vmem:[#allocation2 + $0x5c0] sm:$0xff]
        %v427 = vld [vmem:[#allocation2 + $0x5c8] sm:$0xff]
        %v428 = vld [vmem:[#allocation2 + $0x5d0] sm:$0xff]
        %v429 = vld [vmem:[#allocation2 + $0x5d8] sm:$0xff]
        %v430 = vld [vmem:[#allocation2 + $0x5e0] sm:$0xff]
        %v431 = vld [vmem:[#allocation2 + $0x5e8] sm:$0xff]
        %v432 = vld [vmem:[#allocation2 + $0x5f0] sm:$0xff]
        %v433 = vld [vmem:[#allocation2 + $0x5f8] sm:$0xff]
        %v434 = vld [vmem:[#allocation2 + $0x600] sm:$0xff]
        %v435 = vld [vmem:[#allocation2 + $0x608] sm:$0xff]
        %v436 = vld [vmem:[#allocation2 + $0x610] sm:$0xff]
        %v437 = vld [vmem:[#allocation2 + $0x618] sm:$0xff]
        %v438 = vld [vmem:[#allocation2 + $0x620] sm:$0xff]
        %v439 = vld [vmem:[#allocation2 + $0x628] sm:$0xff]
        %v440 = vld [vmem:[#allocation2 + $0x630] sm:$0xff]
        %v441 = vld [vmem:[#allocation2 + $0x638] sm:$0xff]
        %v442 = vld [vmem:[#allocation2 + $0x640] sm:$0xff]
        %v443 = vld [vmem:[#allocation2 + $0x648] sm:$0xff]
        %v444 = vld [vmem:[#allocation2 + $0x650] sm:$0xff]
        %v445 = vld [vmem:[#allocation2 + $0x658] sm:$0xff]
        %v446 = vld [vmem:[#allocation2 + $0x660] sm:$0xff]
        %v447 = vld [vmem:[#allocation2 + $0x668] sm:$0xff]
        %v448 = vld [vmem:[#allocation2 + $0x670] sm:$0xff]
        %v449 = vld [vmem:[#allocation2 + $0x678] sm:$0xff]
        %v450 = vld [vmem:[#allocation2 + $0x680] sm:$0xff]
        %v451 = vld [vmem:[#allocation2 + $0x688] sm:$0xff]
        %v452 = vld [vmem:[#allocation2 + $0x690] sm:$0xff]
        %v453 = vld [vmem:[#allocation2 + $0x698] sm:$0xff]
        %v454 = vld [vmem:[#allocation2 + $0x6a0] sm:$0xff]
        %v455 = vld [vmem:[#allocation2 + $0x6a8] sm:$0xff]
        %v456 = vld [vmem:[#allocation2 + $0x6b0] sm:$0xff]
        %v457 = vld [vmem:[#allocation2 + $0x6b8] sm:$0xff]
        %v458 = vld [vmem:[#allocation2 + $0x6c0] sm:$0xff]
        %v459 = vld [vmem:[#allocation2 + $0x6c8] sm:$0xff]
        %v460 = vld [vmem:[#allocation2 + $0x6d0] sm:$0xff]
        %v461 = vld [vmem:[#allocation2 + $0x6d8] sm:$0xff]
        %v462 = vld [vmem:[#allocation2 + $0x6e0] sm:$0xff]
        %v463 = vld [vmem:[#allocation2 + $0x6e8] sm:$0xff]
        %v464 = vld [vmem:[#allocation2 + $0x6f0] sm:$0xff]
        %v465 = vld [vmem:[#allocation2 + $0x6f8] sm:$0xff]
        %v466 = vld [vmem:[#allocation2 + $0x700] sm:$0xff]
        %v467 = vld [vmem:[#allocation2 + $0x708] sm:$0xff]
        %v468 = vld [vmem:[#allocation2 + $0x710] sm:$0xff]
        %v469 = vld [vmem:[#allocation2 + $0x718] sm:$0xff]
        %v470 = vld [vmem:[#allocation2 + $0x720] sm:$0xff]
        %v471 = vld [vmem:[#allocation2 + $0x728] sm:$0xff]
        %v472 = vld [vmem:[#allocation2 + $0x730] sm:$0xff]
        %v473 = vld [vmem:[#allocation2 + $0x738] sm:$0xff]
        %v474 = vld [vmem:[#allocation2 + $0x740] sm:$0xff]
        %v475 = vld [vmem:[#allocation2 + $0x748] sm:$0xff]
        %v476 = vld [vmem:[#allocation2 + $0x750] sm:$0xff]
        %v477 = vld [vmem:[#allocation2 + $0x758] sm:$0xff]
        %v478 = vld [vmem:[#allocation2 + $0x760] sm:$0xff]
        %v479 = vld [vmem:[#allocation2 + $0x768] sm:$0xff]
        %v480 = vld [vmem:[#allocation2 + $0x770] sm:$0xff]
        %v481 = vld [vmem:[#allocation2 + $0x778] sm:$0xff]
        %v482 = vld [vmem:[#allocation2 + $0x780] sm:$0xff]
        %v483 = vld [vmem:[#allocation2 + $0x788] sm:$0xff]
        %v484 = vld [vmem:[#allocation2 + $0x790] sm:$0xff]
        %v485 = vld [vmem:[#allocation2 + $0x798] sm:$0xff]
        %v486 = vld [vmem:[#allocation2 + $0x7a0] sm:$0xff]
        %v487 = vld [vmem:[#allocation2 + $0x7a8] sm:$0xff]
        %v488 = vld [vmem:[#allocation2 + $0x7b0] sm:$0xff]
        %v489 = vld [vmem:[#allocation2 + $0x7b8] sm:$0xff]
        %v490 = vld [vmem:[#allocation2 + $0x7c0] sm:$0xff]
        %v491 = vld [vmem:[#allocation2 + $0x7c8] sm:$0xff]
        %v492 = vld [vmem:[#allocation2 + $0x7d0] sm:$0xff]
        %v493 = vld [vmem:[#allocation2 + $0x7d8] sm:$0xff]
        %v494 = vld [vmem:[#allocation2 + $0x7e0] sm:$0xff]
        %v495 = vld [vmem:[#allocation2 + $0x7e8] sm:$0xff]
        %v496 = vld [vmem:[#allocation2 + $0x7f0] sm:$0xff]
        %v497 = vld [vmem:[#allocation2 + $0x7f8] sm:$0xff]
        %v498 = vadd.f32 %v242, %v258
        %v499 = vadd.f32 %v498, %v274
        %v500 = vadd.f32 %v499, %v290
        %v501 = vadd.f32 %v500, %v306
        %v502 = vadd.f32 %v501, %v322
        %v503 = vadd.f32 %v502, %v338
        %v504 = vadd.f32 %v503, %v354
        %v505 = vrot.slane %v504, 4
        %v506 = vadd.f32 %v504, %v505
        %v507 = vrot.slane %v506, 2
        %v508 = vadd.f32 %v506, %v507
        %v509 = vrot.slane %v508, 1
        %v510 = vadd.f32 %v508, %v509
        %v511 = vadd.f32 %v243, %v259
        %v512 = vadd.f32 %v511, %v275
        %v513 = vadd.f32 %v512, %v291
        %v514 = vadd.f32 %v513, %v307
        %v515 = vadd.f32 %v514, %v323
        %v516 = vadd.f32 %v515, %v339
        %v517 = vadd.f32 %v516, %v355
        %v518 = vrot.slane %v517, 4
        %v519 = vadd.f32 %v517, %v518
        %v520 = vrot.slane %v519, 2
        %v521 = vadd.f32 %v519, %v520
        %v522 = vrot.slane %v521, 1
        %v523 = vadd.f32 %v521, %v522
        %v524 = vadd.f32 %v244, %v260
        %v525 = vadd.f32 %v524, %v276
        %v526 = vadd.f32 %v525, %v292
        %v527 = vadd.f32 %v526, %v308
        %v528 = vadd.f32 %v527, %v324
        %v529 = vadd.f32 %v528, %v340
        %v530 = vadd.f32 %v529, %v356
        %v531 = vrot.slane %v530, 4
        %v532 = vadd.f32 %v530, %v531
        %v533 = vrot.slane %v532, 2
        %v534 = vadd.f32 %v532, %v533
        %v535 = vrot.slane %v534, 1
        %v536 = vadd.f32 %v534, %v535
        %v537 = vadd.f32 %v245, %v261
        %v538 = vadd.f32 %v537, %v277
        %v539 = vadd.f32 %v538, %v293
        %v540 = vadd.f32 %v539, %v309
        %v541 = vadd.f32 %v540, %v325
        %v542 = vadd.f32 %v541, %v341
        %v543 = vadd.f32 %v542, %v357
        %v544 = vrot.slane %v543, 4
        %v545 = vadd.f32 %v543, %v544
        %v546 = vrot.slane %v545, 2
        %v547 = vadd.f32 %v545, %v546
        %v548 = vrot.slane %v547, 1
        %v549 = vadd.f32 %v547, %v548
        %v550 = vadd.f32 %v246, %v262
        %v551 = vadd.f32 %v550, %v278
        %v552 = vadd.f32 %v551, %v294
        %v553 = vadd.f32 %v552, %v310
        %v554 = vadd.f32 %v553, %v326
        %v555 = vadd.f32 %v554, %v342
        %v556 = vadd.f32 %v555, %v358
        %v557 = vrot.slane %v556, 4
        %v558 = vadd.f32 %v556, %v557
        %v559 = vrot.slane %v558, 2
        %v560 = vadd.f32 %v558, %v559
        %v561 = vrot.slane %v560, 1
        %v562 = vadd.f32 %v560, %v561
        %v563 = vadd.f32 %v247, %v263
        %v564 = vadd.f32 %v563, %v279
        %v565 = vadd.f32 %v564, %v295
        %v566 = vadd.f32 %v565, %v311
        %v567 = vadd.f32 %v566, %v327
        %v568 = vadd.f32 %v567, %v343
        %v569 = vadd.f32 %v568, %v359
        %v570 = vrot.slane %v569, 4
        %v571 = vadd.f32 %v569, %v570
        %v572 = vrot.slane %v571, 2
        %v573 = vadd.f32 %v571, %v572
        %v574 = vrot.slane %v573, 1
        %v575 = vadd.f32 %v573, %v574
        %v576 = vadd.f32 %v248, %v264
        %v577 = vadd.f32 %v576, %v280
        %v578 = vadd.f32 %v577, %v296
        %v579 = vadd.f32 %v578, %v312
        %v580 = vadd.f32 %v579, %v328
        %v581 = vadd.f32 %v580, %v344
        %v582 = vadd.f32 %v581, %v360
        %v583 = vrot.slane %v582, 4
        %v584 = vadd.f32 %v582, %v583
        %v585 = vrot.slane %v584, 2
        %v586 = vadd.f32 %v584, %v585
        %v587 = vrot.slane %v586, 1
        %v588 = vadd.f32 %v586, %v587
        %v589 = vadd.f32 %v249, %v265
        %v590 = vadd.f32 %v589, %v281
        %v591 = vadd.f32 %v590, %v297
        %v592 = vadd.f32 %v591, %v313
        %v593 = vadd.f32 %v592, %v329
        %v594 = vadd.f32 %v593, %v345
        %v595 = vadd.f32 %v594, %v361
        %v596 = vrot.slane %v595, 4
        %v597 = vadd.f32 %v595, %v596
        %v598 = vrot.slane %v597, 2
        %v599 = vadd.f32 %v597, %v598
        %v600 = vrot.slane %v599, 1
        %v601 = vadd.f32 %v599, %v600
        %v602 = vadd.f32 %v250, %v266
        %v603 = vadd.f32 %v602, %v282
        %v604 = vadd.f32 %v603, %v298
        %v605 = vadd.f32 %v604, %v314
        %v606 = vadd.f32 %v605, %v330
        %v607 = vadd.f32 %v606, %v346
        %v608 = vadd.f32 %v607, %v362
        %v609 = vrot.slane %v608, 4
        %v610 = vadd.f32 %v608, %v609
        %v611 = vrot.slane %v610, 2
        %v612 = vadd.f32 %v610, %v611
        %v613 = vrot.slane %v612, 1
        %v614 = vadd.f32 %v612, %v613
        %v615 = vadd.f32 %v251, %v267
        %v616 = vadd.f32 %v615, %v283
        %v617 = vadd.f32 %v616, %v299
        %v618 = vadd.f32 %v617, %v315
        %v619 = vadd.f32 %v618, %v331
        %v620 = vadd.f32 %v619, %v347
        %v621 = vadd.f32 %v620, %v363
        %v622 = vrot.slane %v621, 4
        %v623 = vadd.f32 %v621, %v622
        %v624 = vrot.slane %v623, 2
        %v625 = vadd.f32 %v623, %v624
        %v626 = vrot.slane %v625, 1
        %v627 = vadd.f32 %v625, %v626
        %v628 = vadd.f32 %v252, %v268
        %v629 = vadd.f32 %v628, %v284
        %v630 = vadd.f32 %v629, %v300
        %v631 = vadd.f32 %v630, %v316
        %v632 = vadd.f32 %v631, %v332
        %v633 = vadd.f32 %v632, %v348
        %v634 = vadd.f32 %v633, %v364
        %v635 = vrot.slane %v634, 4
        %v636 = vadd.f32 %v634, %v635
        %v637 = vrot.slane %v636, 2
        %v638 = vadd.f32 %v636, %v637
        %v639 = vrot.slane %v638, 1
        %v640 = vadd.f32 %v638, %v639
        %v641 = vadd.f32 %v253, %v269
        %v642 = vadd.f32 %v641, %v285
        %v643 = vadd.f32 %v642, %v301
        %v644 = vadd.f32 %v643, %v317
        %v645 = vadd.f32 %v644, %v333
        %v646 = vadd.f32 %v645, %v349
        %v647 = vadd.f32 %v646, %v365
        %v648 = vrot.slane %v647, 4
        %v649 = vadd.f32 %v647, %v648
        %v650 = vrot.slane %v649, 2
        %v651 = vadd.f32 %v649, %v650
        %v652 = vrot.slane %v651, 1
        %v653 = vadd.f32 %v651, %v652
        %v654 = vadd.f32 %v254, %v270
        %v655 = vadd.f32 %v654, %v286
        %v656 = vadd.f32 %v655, %v302
        %v657 = vadd.f32 %v656, %v318
        %v658 = vadd.f32 %v657, %v334
        %v659 = vadd.f32 %v658, %v350
        %v660 = vadd.f32 %v659, %v366
        %v661 = vrot.slane %v660, 4
        %v662 = vadd.f32 %v660, %v661
        %v663 = vrot.slane %v662, 2
        %v664 = vadd.f32 %v662, %v663
        %v665 = vrot.slane %v664, 1
        %v666 = vadd.f32 %v664, %v665
        %v667 = vadd.f32 %v255, %v271
        %v668 = vadd.f32 %v667, %v287
        %v669 = vadd.f32 %v668, %v303
        %v670 = vadd.f32 %v669, %v319
        %v671 = vadd.f32 %v670, %v335
        %v672 = vadd.f32 %v671, %v351
        %v673 = vadd.f32 %v672, %v367
        %v674 = vrot.slane %v673, 4
        %v675 = vadd.f32 %v673, %v674
        %v676 = vrot.slane %v675, 2
        %v677 = vadd.f32 %v675, %v676
        %v678 = vrot.slane %v677, 1
        %v679 = vadd.f32 %v677, %v678
        %v680 = vadd.f32 %v256, %v272
        %v681 = vadd.f32 %v680, %v288
        %v682 = vadd.f32 %v681, %v304
        %v683 = vadd.f32 %v682, %v320
        %v684 = vadd.f32 %v683, %v336
        %v685 = vadd.f32 %v684, %v352
        %v686 = vadd.f32 %v685, %v368
        %v687 = vrot.slane %v686, 4
        %v688 = vadd.f32 %v686, %v687
        %v689 = vrot.slane %v688, 2
        %v690 = vadd.f32 %v688, %v689
        %v691 = vrot.slane %v690, 1
        %v692 = vadd.f32 %v690, %v691
        %v693 = vadd.f32 %v257, %v273
        %v694 = vadd.f32 %v693, %v289
        %v695 = vadd.f32 %v694, %v305
        %v696 = vadd.f32 %v695, %v321
        %v697 = vadd.f32 %v696, %v337
        %v698 = vadd.f32 %v697, %v353
        %v699 = vadd.f32 %v698, %v369
        %v700 = vrot.slane %v699, 4
        %v701 = vadd.f32 %v699, %v700
        %v702 = vrot.slane %v701, 2
        %v703 = vadd.f32 %v701, %v702
        %v704 = vrot.slane %v703, 1
        %v705 = vadd.f32 %v703, %v704
        %v706 = vadd.f32 %v370, %v386
        %v707 = vadd.f32 %v706, %v402
        %v708 = vadd.f32 %v707, %v418
        %v709 = vadd.f32 %v708, %v434
        %v710 = vadd.f32 %v709, %v450
        %v711 = vadd.f32 %v710, %v466
        %v712 = vadd.f32 %v711, %v482
        %v713 = vrot.slane %v712, 4
        %v714 = vadd.f32 %v712, %v713
        %v715 = vrot.slane %v714, 2
        %v716 = vadd.f32 %v714, %v715
        %v717 = vrot.slane %v716, 1
        %v718 = vadd.f32 %v716, %v717
        %v719 = vadd.f32 %v371, %v387
        %v720 = vadd.f32 %v719, %v403
        %v721 = vadd.f32 %v720, %v419
        %v722 = vadd.f32 %v721, %v435
        %v723 = vadd.f32 %v722, %v451
        %v724 = vadd.f32 %v723, %v467
        %v725 = vadd.f32 %v724, %v483
        %v726 = vrot.slane %v725, 4
        %v727 = vadd.f32 %v725, %v726
        %v728 = vrot.slane %v727, 2
        %v729 = vadd.f32 %v727, %v728
        %v730 = vrot.slane %v729, 1
        %v731 = vadd.f32 %v729, %v730
        %v732 = vadd.f32 %v372, %v388
        %v733 = vadd.f32 %v732, %v404
        %v734 = vadd.f32 %v733, %v420
        %v735 = vadd.f32 %v734, %v436
        %v736 = vadd.f32 %v735, %v452
        %v737 = vadd.f32 %v736, %v468
        %v738 = vadd.f32 %v737, %v484
        %v739 = vrot.slane %v738, 4
        %v740 = vadd.f32 %v738, %v739
        %v741 = vrot.slane %v740, 2
        %v742 = vadd.f32 %v740, %v741
        %v743 = vrot.slane %v742, 1
        %v744 = vadd.f32 %v742, %v743
        %v745 = vadd.f32 %v373, %v389
        %v746 = vadd.f32 %v745, %v405
        %v747 = vadd.f32 %v746, %v421
        %v748 = vadd.f32 %v747, %v437
        %v749 = vadd.f32 %v748, %v453
        %v750 = vadd.f32 %v749, %v469
        %v751 = vadd.f32 %v750, %v485
        %v752 = vrot.slane %v751, 4
        %v753 = vadd.f32 %v751, %v752
        %v754 = vrot.slane %v753, 2
        %v755 = vadd.f32 %v753, %v754
        %v756 = vrot.slane %v755, 1
        %v757 = vadd.f32 %v755, %v756
        %v758 = vadd.f32 %v374, %v390
        %v759 = vadd.f32 %v758, %v406
        %v760 = vadd.f32 %v759, %v422
        %v761 = vadd.f32 %v760, %v438
        %v762 = vadd.f32 %v761, %v454
        %v763 = vadd.f32 %v762, %v470
        %v764 = vadd.f32 %v763, %v486
        %v765 = vrot.slane %v764, 4
        %v766 = vadd.f32 %v764, %v765
        %v767 = vrot.slane %v766, 2
        %v768 = vadd.f32 %v766, %v767
        %v769 = vrot.slane %v768, 1
        %v770 = vadd.f32 %v768, %v769
        %v771 = vadd.f32 %v375, %v391
        %v772 = vadd.f32 %v771, %v407
        %v773 = vadd.f32 %v772, %v423
        %v774 = vadd.f32 %v773, %v439
        %v775 = vadd.f32 %v774, %v455
        %v776 = vadd.f32 %v775, %v471
        %v777 = vadd.f32 %v776, %v487
        %v778 = vrot.slane %v777, 4
        %v779 = vadd.f32 %v777, %v778
        %v780 = vrot.slane %v779, 2
        %v781 = vadd.f32 %v779, %v780
        %v782 = vrot.slane %v781, 1
        %v783 = vadd.f32 %v781, %v782
        %v784 = vadd.f32 %v376, %v392
        %v785 = vadd.f32 %v784, %v408
        %v786 = vadd.f32 %v785, %v424
        %v787 = vadd.f32 %v786, %v440
        %v788 = vadd.f32 %v787, %v456
        %v789 = vadd.f32 %v788, %v472
        %v790 = vadd.f32 %v789, %v488
        %v791 = vrot.slane %v790, 4
        %v792 = vadd.f32 %v790, %v791
        %v793 = vrot.slane %v792, 2
        %v794 = vadd.f32 %v792, %v793
        %v795 = vrot.slane %v794, 1
        %v796 = vadd.f32 %v794, %v795
        %v797 = vadd.f32 %v377, %v393
        %v798 = vadd.f32 %v797, %v409
        %v799 = vadd.f32 %v798, %v425
        %v800 = vadd.f32 %v799, %v441
        %v801 = vadd.f32 %v800, %v457
        %v802 = vadd.f32 %v801, %v473
        %v803 = vadd.f32 %v802, %v489
        %v804 = vrot.slane %v803, 4
        %v805 = vadd.f32 %v803, %v804
        %v806 = vrot.slane %v805, 2
        %v807 = vadd.f32 %v805, %v806
        %v808 = vrot.slane %v807, 1
        %v809 = vadd.f32 %v807, %v808
        %v810 = vadd.f32 %v378, %v394
        %v811 = vadd.f32 %v810, %v410
        %v812 = vadd.f32 %v811, %v426
        %v813 = vadd.f32 %v812, %v442
        %v814 = vadd.f32 %v813, %v458
        %v815 = vadd.f32 %v814, %v474
        %v816 = vadd.f32 %v815, %v490
        %v817 = vrot.slane %v816, 4
        %v818 = vadd.f32 %v816, %v817
        %v819 = vrot.slane %v818, 2
        %v820 = vadd.f32 %v818, %v819
        %v821 = vrot.slane %v820, 1
        %v822 = vadd.f32 %v820, %v821
        %v823 = vadd.f32 %v379, %v395
        %v824 = vadd.f32 %v823, %v411
        %v825 = vadd.f32 %v824, %v427
        %v826 = vadd.f32 %v825, %v443
        %v827 = vadd.f32 %v826, %v459
        %v828 = vadd.f32 %v827, %v475
        %v829 = vadd.f32 %v828, %v491
        %v830 = vrot.slane %v829, 4
        %v831 = vadd.f32 %v829, %v830
        %v832 = vrot.slane %v831, 2
        %v833 = vadd.f32 %v831, %v832
        %v834 = vrot.slane %v833, 1
        %v835 = vadd.f32 %v833, %v834
        %v836 = vadd.f32 %v380, %v396
        %v837 = vadd.f32 %v836, %v412
        %v838 = vadd.f32 %v837, %v428
        %v839 = vadd.f32 %v838, %v444
        %v840 = vadd.f32 %v839, %v460
        %v841 = vadd.f32 %v840, %v476
        %v842 = vadd.f32 %v841, %v492
        %v843 = vrot.slane %v842, 4
        %v844 = vadd.f32 %v842, %v843
        %v845 = vrot.slane %v844, 2
        %v846 = vadd.f32 %v844, %v845
        %v847 = vrot.slane %v846, 1
        %v848 = vadd.f32 %v846, %v847
        %v849 = vadd.f32 %v381, %v397
        %v850 = vadd.f32 %v849, %v413
        %v851 = vadd.f32 %v850, %v429
        %v852 = vadd.f32 %v851, %v445
        %v853 = vadd.f32 %v852, %v461
        %v854 = vadd.f32 %v853, %v477
        %v855 = vadd.f32 %v854, %v493
        %v856 = vrot.slane %v855, 4
        %v857 = vadd.f32 %v855, %v856
        %v858 = vrot.slane %v857, 2
        %v859 = vadd.f32 %v857, %v858
        %v860 = vrot.slane %v859, 1
        %v861 = vadd.f32 %v859, %v860
        %v862 = vadd.f32 %v382, %v398
        %v863 = vadd.f32 %v862, %v414
        %v864 = vadd.f32 %v863, %v430
        %v865 = vadd.f32 %v864, %v446
        %v866 = vadd.f32 %v865, %v462
        %v867 = vadd.f32 %v866, %v478
        %v868 = vadd.f32 %v867, %v494
        %v869 = vrot.slane %v868, 4
        %v870 = vadd.f32 %v868, %v869
        %v871 = vrot.slane %v870, 2
        %v872 = vadd.f32 %v870, %v871
        %v873 = vrot.slane %v872, 1
        %v874 = vadd.f32 %v872, %v873
        %v875 = vadd.f32 %v383, %v399
        %v876 = vadd.f32 %v875, %v415
        %v877 = vadd.f32 %v876, %v431
        %v878 = vadd.f32 %v877, %v447
        %v879 = vadd.f32 %v878, %v463
        %v880 = vadd.f32 %v879, %v479
        %v881 = vadd.f32 %v880, %v495
        %v882 = vrot.slane %v881, 4
        %v883 = vadd.f32 %v881, %v882
        %v884 = vrot.slane %v883, 2
        %v885 = vadd.f32 %v883, %v884
        %v886 = vrot.slane %v885, 1
        %v887 = vadd.f32 %v885, %v886
        %v888 = vadd.f32 %v384, %v400
        %v889 = vadd.f32 %v888, %v416
        %v890 = vadd.f32 %v889, %v432
        %v891 = vadd.f32 %v890, %v448
        %v892 = vadd.f32 %v891, %v464
        %v893 = vadd.f32 %v892, %v480
        %v894 = vadd.f32 %v893, %v496
        %v895 = vrot.slane %v894, 4
        %v896 = vadd.f32 %v894, %v895
        %v897 = vrot.slane %v896, 2
        %v898 = vadd.f32 %v896, %v897
        %v899 = vrot.slane %v898, 1
        %v900 = vadd.f32 %v898, %v899
        %v901 = vadd.f32 %v385, %v401
        %v902 = vadd.f32 %v901, %v417
        %v903 = vadd.f32 %v902, %v433
        %v904 = vadd.f32 %v903, %v449
        %v905 = vadd.f32 %v904, %v465
        %v906 = vadd.f32 %v905, %v481
        %v907 = vadd.f32 %v906, %v497
        %v908 = vrot.slane %v907, 4
        %v909 = vadd.f32 %v907, %v908
        %v910 = vrot.slane %v909, 2
        %v911 = vadd.f32 %v909, %v910
        %v912 = vrot.slane %v911, 1
        %v913 = vadd.f32 %v911, %v912
        %v914 = vmul.f32 %v510, 0.015625
        %v915 = vmul.f32 %v523, 0.015625
        %v916 = vmul.f32 %v536, 0.015625
        %v917 = vmul.f32 %v549, 0.015625
        %v918 = vmul.f32 %v562, 0.015625
        %v919 = vmul.f32 %v575, 0.015625
        %v920 = vmul.f32 %v588, 0.015625
        %v921 = vmul.f32 %v601, 0.015625
        %v922 = vmul.f32 %v614, 0.015625
        %v923 = vmul.f32 %v627, 0.015625
        %v924 = vmul.f32 %v640, 0.015625
        %v925 = vmul.f32 %v653, 0.015625
        %v926 = vmul.f32 %v666, 0.015625
        %v927 = vmul.f32 %v679, 0.015625
        %v928 = vmul.f32 %v692, 0.015625
        %v929 = vmul.f32 %v705, 0.015625
        %v930 = vmul.f32 %v718, 0.015625
        %v931 = vmul.f32 %v731, 0.015625
        %v932 = vmul.f32 %v744, 0.015625
        %v933 = vmul.f32 %v757, 0.015625
        %v934 = vmul.f32 %v770, 0.015625
        %v935 = vmul.f32 %v783, 0.015625
        %v936 = vmul.f32 %v796, 0.015625
        %v937 = vmul.f32 %v809, 0.015625
        %v938 = vmul.f32 %v822, 0.015625
        %v939 = vmul.f32 %v835, 0.015625
        %v940 = vmul.f32 %v848, 0.015625
        %v941 = vmul.f32 %v861, 0.015625
        %v942 = vmul.f32 %v874, 0.015625
        %v943 = vmul.f32 %v887, 0.015625
        %v944 = vmul.f32 %v900, 0.015625
        %v945 = vmul.f32 %v913, 0.015625
        %v946 = vpack.c.bf16 %v914, %v914
        %v947 = vpack.c.bf16 %v915, %v915
        %v948 = vpack.c.bf16 %v916, %v916
        %v949 = vpack.c.bf16 %v917, %v917
        %v950 = vpack.c.bf16 %v918, %v918
        %v951 = vpack.c.bf16 %v919, %v919
        %v952 = vpack.c.bf16 %v920, %v920
        %v953 = vpack.c.bf16 %v921, %v921
        %v954 = vpack.c.bf16 %v922, %v922
        %v955 = vpack.c.bf16 %v923, %v923
        %v956 = vpack.c.bf16 %v924, %v924
        %v957 = vpack.c.bf16 %v925, %v925
        %v958 = vpack.c.bf16 %v926, %v926
        %v959 = vpack.c.bf16 %v927, %v927
        %v960 = vpack.c.bf16 %v928, %v928
        %v961 = vpack.c.bf16 %v929, %v929
        %v962 = vpack.c.bf16 %v930, %v930
        %v963 = vpack.c.bf16 %v931, %v931
        %v964 = vpack.c.bf16 %v932, %v932
        %v965 = vpack.c.bf16 %v933, %v933
        %v966 = vpack.c.bf16 %v934, %v934
        %v967 = vpack.c.bf16 %v935, %v935
        %v968 = vpack.c.bf16 %v936, %v936
        %v969 = vpack.c.bf16 %v937, %v937
        %v970 = vpack.c.bf16 %v938, %v938
        %v971 = vpack.c.bf16 %v939, %v939
        %v972 = vpack.c.bf16 %v940, %v940
        %v973 = vpack.c.bf16 %v941, %v941
        %v974 = vpack.c.bf16 %v942, %v942
        %v975 = vpack.c.bf16 %v943, %v943
        %v976 = vpack.c.bf16 %v944, %v944
        %v977 = vpack.c.bf16 %v945, %v945
        %v978 = vld [vmem:[%s202] sm:$0xff]
        %v979 = vld [vmem:[%s202 + $0x8] sm:$0xff]
        %v980 = vld [vmem:[%s202 + $0x10] sm:$0xff]
        %v981 = vld [vmem:[%s202 + $0x18] sm:$0xff]
        %v982 = vld [vmem:[%s202 + $0x20] sm:$0xff]
        %v983 = vld [vmem:[%s202 + $0x28] sm:$0xff]
        %v984 = vld [vmem:[%s202 + $0x30] sm:$0xff]
        %v985 = vld [vmem:[%s202 + $0x38] sm:$0xff]
        %v986 = vld [vmem:[%s202 + $0x40] sm:$0xff]
        %v987 = vld [vmem:[%s202 + $0x48] sm:$0xff]
        %v988 = vld [vmem:[%s202 + $0x50] sm:$0xff]
        %v989 = vld [vmem:[%s202 + $0x58] sm:$0xff]
        %v990 = vld [vmem:[%s202 + $0x60] sm:$0xff]
        %v991 = vld [vmem:[%s202 + $0x68] sm:$0xff]
        %v992 = vld [vmem:[%s202 + $0x70] sm:$0xff]
        %v993 = vld [vmem:[%s202 + $0x78] sm:$0xff]
        %v994 = vld [vmem:[%s202 + $0x80] sm:$0xff]
        %v995 = vld [vmem:[%s202 + $0x88] sm:$0xff]
        %v996 = vld [vmem:[%s202 + $0x90] sm:$0xff]
        %v997 = vld [vmem:[%s202 + $0x98] sm:$0xff]
        %v998 = vld [vmem:[%s202 + $0xa0] sm:$0xff]
        %v999 = vld [vmem:[%s202 + $0xa8] sm:$0xff]
        %v1000 = vld [vmem:[%s202 + $0xb0] sm:$0xff]
        %v1001 = vld [vmem:[%s202 + $0xb8] sm:$0xff]
        %v1002 = vld [vmem:[%s202 + $0xc0] sm:$0xff]
        %v1003 = vld [vmem:[%s202 + $0xc8] sm:$0xff]
        %v1004 = vld [vmem:[%s202 + $0xd0] sm:$0xff]
        %v1005 = vld [vmem:[%s202 + $0xd8] sm:$0xff]
        %v1006 = vld [vmem:[%s202 + $0xe0] sm:$0xff]
        %v1007 = vld [vmem:[%s202 + $0xe8] sm:$0xff]
        %v1008 = vld [vmem:[%s202 + $0xf0] sm:$0xff]
        %v1009 = vld [vmem:[%s202 + $0xf8] sm:$0xff]
        %v1010 = vld [vmem:[%s202 + $0x100] sm:$0xff]
        %v1011 = vld [vmem:[%s202 + $0x108] sm:$0xff]
        %v1012 = vld [vmem:[%s202 + $0x110] sm:$0xff]
        %v1013 = vld [vmem:[%s202 + $0x118] sm:$0xff]
        %v1014 = vld [vmem:[%s202 + $0x120] sm:$0xff]
        %v1015 = vld [vmem:[%s202 + $0x128] sm:$0xff]
        %v1016 = vld [vmem:[%s202 + $0x130] sm:$0xff]
        %v1017 = vld [vmem:[%s202 + $0x138] sm:$0xff]
        %v1018 = vld [vmem:[%s202 + $0x140] sm:$0xff]
        %v1019 = vld [vmem:[%s202 + $0x148] sm:$0xff]
        %v1020 = vld [vmem:[%s202 + $0x150] sm:$0xff]
        %v1021 = vld [vmem:[%s202 + $0x158] sm:$0xff]
        %v1022 = vld [vmem:[%s202 + $0x160] sm:$0xff]
        %v1023 = vld [vmem:[%s202 + $0x168] sm:$0xff]
        %v1024 = vld [vmem:[%s202 + $0x170] sm:$0xff]
        %v1025 = vld [vmem:[%s202 + $0x178] sm:$0xff]
        %v1026 = vld [vmem:[%s202 + $0x180] sm:$0xff]
        %v1027 = vld [vmem:[%s202 + $0x188] sm:$0xff]
        %v1028 = vld [vmem:[%s202 + $0x190] sm:$0xff]
        %v1029 = vld [vmem:[%s202 + $0x198] sm:$0xff]
        %v1030 = vld [vmem:[%s202 + $0x1a0] sm:$0xff]
        %v1031 = vld [vmem:[%s202 + $0x1a8] sm:$0xff]
        %v1032 = vld [vmem:[%s202 + $0x1b0] sm:$0xff]
        %v1033 = vld [vmem:[%s202 + $0x1b8] sm:$0xff]
        %v1034 = vld [vmem:[%s202 + $0x1c0] sm:$0xff]
        %v1035 = vld [vmem:[%s202 + $0x1c8] sm:$0xff]
        %v1036 = vld [vmem:[%s202 + $0x1d0] sm:$0xff]
        %v1037 = vld [vmem:[%s202 + $0x1d8] sm:$0xff]
        %v1038 = vld [vmem:[%s202 + $0x1e0] sm:$0xff]
        %v1039 = vld [vmem:[%s202 + $0x1e8] sm:$0xff]
        %v1040 = vld [vmem:[%s202 + $0x1f0] sm:$0xff]
        %v1041 = vld [vmem:[%s202 + $0x1f8] sm:$0xff]
        %v1042 = vld [vmem:[%s202 + $0x200] sm:$0xff]
        %v1043 = vld [vmem:[%s202 + $0x208] sm:$0xff]
        %v1044 = vld [vmem:[%s202 + $0x210] sm:$0xff]
        %v1045 = vld [vmem:[%s202 + $0x218] sm:$0xff]
        %v1046 = vld [vmem:[%s202 + $0x220] sm:$0xff]
        %v1047 = vld [vmem:[%s202 + $0x228] sm:$0xff]
        %v1048 = vld [vmem:[%s202 + $0x230] sm:$0xff]
        %v1049 = vld [vmem:[%s202 + $0x238] sm:$0xff]
        %v1050 = vld [vmem:[%s202 + $0x240] sm:$0xff]
        %v1051 = vld [vmem:[%s202 + $0x248] sm:$0xff]
        %v1052 = vld [vmem:[%s202 + $0x250] sm:$0xff]
        %v1053 = vld [vmem:[%s202 + $0x258] sm:$0xff]
        %v1054 = vld [vmem:[%s202 + $0x260] sm:$0xff]
        %v1055 = vld [vmem:[%s202 + $0x268] sm:$0xff]
        %v1056 = vld [vmem:[%s202 + $0x270] sm:$0xff]
        %v1057 = vld [vmem:[%s202 + $0x278] sm:$0xff]
        %v1058 = vld [vmem:[%s202 + $0x280] sm:$0xff]
        %v1059 = vld [vmem:[%s202 + $0x288] sm:$0xff]
        %v1060 = vld [vmem:[%s202 + $0x290] sm:$0xff]
        %v1061 = vld [vmem:[%s202 + $0x298] sm:$0xff]
        %v1062 = vld [vmem:[%s202 + $0x2a0] sm:$0xff]
        %v1063 = vld [vmem:[%s202 + $0x2a8] sm:$0xff]
        %v1064 = vld [vmem:[%s202 + $0x2b0] sm:$0xff]
        %v1065 = vld [vmem:[%s202 + $0x2b8] sm:$0xff]
        %v1066 = vld [vmem:[%s202 + $0x2c0] sm:$0xff]
        %v1067 = vld [vmem:[%s202 + $0x2c8] sm:$0xff]
        %v1068 = vld [vmem:[%s202 + $0x2d0] sm:$0xff]
        %v1069 = vld [vmem:[%s202 + $0x2d8] sm:$0xff]
        %v1070 = vld [vmem:[%s202 + $0x2e0] sm:$0xff]
        %v1071 = vld [vmem:[%s202 + $0x2e8] sm:$0xff]
        %v1072 = vld [vmem:[%s202 + $0x2f0] sm:$0xff]
        %v1073 = vld [vmem:[%s202 + $0x2f8] sm:$0xff]
        %v1074 = vld [vmem:[%s202 + $0x300] sm:$0xff]
        %v1075 = vld [vmem:[%s202 + $0x308] sm:$0xff]
        %v1076 = vld [vmem:[%s202 + $0x310] sm:$0xff]
        %v1077 = vld [vmem:[%s202 + $0x318] sm:$0xff]
        %v1078 = vld [vmem:[%s202 + $0x320] sm:$0xff]
        %v1079 = vld [vmem:[%s202 + $0x328] sm:$0xff]
        %v1080 = vld [vmem:[%s202 + $0x330] sm:$0xff]
        %v1081 = vld [vmem:[%s202 + $0x338] sm:$0xff]
        %v1082 = vld [vmem:[%s202 + $0x340] sm:$0xff]
        %v1083 = vld [vmem:[%s202 + $0x348] sm:$0xff]
        %v1084 = vld [vmem:[%s202 + $0x350] sm:$0xff]
        %v1085 = vld [vmem:[%s202 + $0x358] sm:$0xff]
        %v1086 = vld [vmem:[%s202 + $0x360] sm:$0xff]
        %v1087 = vld [vmem:[%s202 + $0x368] sm:$0xff]
        %v1088 = vld [vmem:[%s202 + $0x370] sm:$0xff]
        %v1089 = vld [vmem:[%s202 + $0x378] sm:$0xff]
        %v1090 = vld [vmem:[%s202 + $0x380] sm:$0xff]
        %v1091 = vld [vmem:[%s202 + $0x388] sm:$0xff]
        %v1092 = vld [vmem:[%s202 + $0x390] sm:$0xff]
        %v1093 = vld [vmem:[%s202 + $0x398] sm:$0xff]
        %v1094 = vld [vmem:[%s202 + $0x3a0] sm:$0xff]
        %v1095 = vld [vmem:[%s202 + $0x3a8] sm:$0xff]
        %v1096 = vld [vmem:[%s202 + $0x3b0] sm:$0xff]
        %v1097 = vld [vmem:[%s202 + $0x3b8] sm:$0xff]
        %v1098 = vld [vmem:[%s202 + $0x3c0] sm:$0xff]
        %v1099 = vld [vmem:[%s202 + $0x3c8] sm:$0xff]
        %v1100 = vld [vmem:[%s202 + $0x3d0] sm:$0xff]
        %v1101 = vld [vmem:[%s202 + $0x3d8] sm:$0xff]
        %v1102 = vld [vmem:[%s202 + $0x3e0] sm:$0xff]
        %v1103 = vld [vmem:[%s202 + $0x3e8] sm:$0xff]
        %v1104 = vld [vmem:[%s202 + $0x3f0] sm:$0xff]
        %v1105 = vld [vmem:[%s202 + $0x3f8] sm:$0xff]
        %v1106 = vld [vmem:[%s202 + $0x400] sm:$0xff]
        %v1107 = vld [vmem:[%s202 + $0x408] sm:$0xff]
        %v1108 = vld [vmem:[%s202 + $0x410] sm:$0xff]
        %v1109 = vld [vmem:[%s202 + $0x418] sm:$0xff]
        %v1110 = vld [vmem:[%s202 + $0x420] sm:$0xff]
        %v1111 = vld [vmem:[%s202 + $0x428] sm:$0xff]
        %v1112 = vld [vmem:[%s202 + $0x430] sm:$0xff]
        %v1113 = vld [vmem:[%s202 + $0x438] sm:$0xff]
        %v1114 = vld [vmem:[%s202 + $0x440] sm:$0xff]
        %v1115 = vld [vmem:[%s202 + $0x448] sm:$0xff]
        %v1116 = vld [vmem:[%s202 + $0x450] sm:$0xff]
        %v1117 = vld [vmem:[%s202 + $0x458] sm:$0xff]
        %v1118 = vld [vmem:[%s202 + $0x460] sm:$0xff]
        %v1119 = vld [vmem:[%s202 + $0x468] sm:$0xff]
        %v1120 = vld [vmem:[%s202 + $0x470] sm:$0xff]
        %v1121 = vld [vmem:[%s202 + $0x478] sm:$0xff]
        %v1122 = vld [vmem:[%s202 + $0x480] sm:$0xff]
        %v1123 = vld [vmem:[%s202 + $0x488] sm:$0xff]
        %v1124 = vld [vmem:[%s202 + $0x490] sm:$0xff]
        %v1125 = vld [vmem:[%s202 + $0x498] sm:$0xff]
        %v1126 = vld [vmem:[%s202 + $0x4a0] sm:$0xff]
        %v1127 = vld [vmem:[%s202 + $0x4a8] sm:$0xff]
        %v1128 = vld [vmem:[%s202 + $0x4b0] sm:$0xff]
        %v1129 = vld [vmem:[%s202 + $0x4b8] sm:$0xff]
        %v1130 = vld [vmem:[%s202 + $0x4c0] sm:$0xff]
        %v1131 = vld [vmem:[%s202 + $0x4c8] sm:$0xff]
        %v1132 = vld [vmem:[%s202 + $0x4d0] sm:$0xff]
        %v1133 = vld [vmem:[%s202 + $0x4d8] sm:$0xff]
        %v1134 = vld [vmem:[%s202 + $0x4e0] sm:$0xff]
        %v1135 = vld [vmem:[%s202 + $0x4e8] sm:$0xff]
        %v1136 = vld [vmem:[%s202 + $0x4f0] sm:$0xff]
        %v1137 = vld [vmem:[%s202 + $0x4f8] sm:$0xff]
        %v1138 = vld [vmem:[%s202 + $0x500] sm:$0xff]
        %v1139 = vld [vmem:[%s202 + $0x508] sm:$0xff]
        %v1140 = vld [vmem:[%s202 + $0x510] sm:$0xff]
        %v1141 = vld [vmem:[%s202 + $0x518] sm:$0xff]
        %v1142 = vld [vmem:[%s202 + $0x520] sm:$0xff]
        %v1143 = vld [vmem:[%s202 + $0x528] sm:$0xff]
        %v1144 = vld [vmem:[%s202 + $0x530] sm:$0xff]
        %v1145 = vld [vmem:[%s202 + $0x538] sm:$0xff]
        %v1146 = vld [vmem:[%s202 + $0x540] sm:$0xff]
        %v1147 = vld [vmem:[%s202 + $0x548] sm:$0xff]
        %v1148 = vld [vmem:[%s202 + $0x550] sm:$0xff]
        %v1149 = vld [vmem:[%s202 + $0x558] sm:$0xff]
        %v1150 = vld [vmem:[%s202 + $0x560] sm:$0xff]
        %v1151 = vld [vmem:[%s202 + $0x568] sm:$0xff]
        %v1152 = vld [vmem:[%s202 + $0x570] sm:$0xff]
        %v1153 = vld [vmem:[%s202 + $0x578] sm:$0xff]
        %v1154 = vld [vmem:[%s202 + $0x580] sm:$0xff]
        %v1155 = vld [vmem:[%s202 + $0x588] sm:$0xff]
        %v1156 = vld [vmem:[%s202 + $0x590] sm:$0xff]
        %v1157 = vld [vmem:[%s202 + $0x598] sm:$0xff]
        %v1158 = vld [vmem:[%s202 + $0x5a0] sm:$0xff]
        %v1159 = vld [vmem:[%s202 + $0x5a8] sm:$0xff]
        %v1160 = vld [vmem:[%s202 + $0x5b0] sm:$0xff]
        %v1161 = vld [vmem:[%s202 + $0x5b8] sm:$0xff]
        %v1162 = vld [vmem:[%s202 + $0x5c0] sm:$0xff]
        %v1163 = vld [vmem:[%s202 + $0x5c8] sm:$0xff]
        %v1164 = vld [vmem:[%s202 + $0x5d0] sm:$0xff]
        %v1165 = vld [vmem:[%s202 + $0x5d8] sm:$0xff]
        %v1166 = vld [vmem:[%s202 + $0x5e0] sm:$0xff]
        %v1167 = vld [vmem:[%s202 + $0x5e8] sm:$0xff]
        %v1168 = vld [vmem:[%s202 + $0x5f0] sm:$0xff]
        %v1169 = vld [vmem:[%s202 + $0x5f8] sm:$0xff]
        %v1170 = vld [vmem:[%s202 + $0x600] sm:$0xff]
        %v1171 = vld [vmem:[%s202 + $0x608] sm:$0xff]
        %v1172 = vld [vmem:[%s202 + $0x610] sm:$0xff]
        %v1173 = vld [vmem:[%s202 + $0x618] sm:$0xff]
        %v1174 = vld [vmem:[%s202 + $0x620] sm:$0xff]
        %v1175 = vld [vmem:[%s202 + $0x628] sm:$0xff]
        %v1176 = vld [vmem:[%s202 + $0x630] sm:$0xff]
        %v1177 = vld [vmem:[%s202 + $0x638] sm:$0xff]
        %v1178 = vld [vmem:[%s202 + $0x640] sm:$0xff]
        %v1179 = vld [vmem:[%s202 + $0x648] sm:$0xff]
        %v1180 = vld [vmem:[%s202 + $0x650] sm:$0xff]
        %v1181 = vld [vmem:[%s202 + $0x658] sm:$0xff]
        %v1182 = vld [vmem:[%s202 + $0x660] sm:$0xff]
        %v1183 = vld [vmem:[%s202 + $0x668] sm:$0xff]
        %v1184 = vld [vmem:[%s202 + $0x670] sm:$0xff]
        %v1185 = vld [vmem:[%s202 + $0x678] sm:$0xff]
        %v1186 = vld [vmem:[%s202 + $0x680] sm:$0xff]
        %v1187 = vld [vmem:[%s202 + $0x688] sm:$0xff]
        %v1188 = vld [vmem:[%s202 + $0x690] sm:$0xff]
        %v1189 = vld [vmem:[%s202 + $0x698] sm:$0xff]
        %v1190 = vld [vmem:[%s202 + $0x6a0] sm:$0xff]
        %v1191 = vld [vmem:[%s202 + $0x6a8] sm:$0xff]
        %v1192 = vld [vmem:[%s202 + $0x6b0] sm:$0xff]
        %v1193 = vld [vmem:[%s202 + $0x6b8] sm:$0xff]
        %v1194 = vld [vmem:[%s202 + $0x6c0] sm:$0xff]
        %v1195 = vld [vmem:[%s202 + $0x6c8] sm:$0xff]
        %v1196 = vld [vmem:[%s202 + $0x6d0] sm:$0xff]
        %v1197 = vld [vmem:[%s202 + $0x6d8] sm:$0xff]
        %v1198 = vld [vmem:[%s202 + $0x6e0] sm:$0xff]
        %v1199 = vld [vmem:[%s202 + $0x6e8] sm:$0xff]
        %v1200 = vld [vmem:[%s202 + $0x6f0] sm:$0xff]
        %v1201 = vld [vmem:[%s202 + $0x6f8] sm:$0xff]
        %v1202 = vld [vmem:[%s202 + $0x700] sm:$0xff]
        %v1203 = vld [vmem:[%s202 + $0x708] sm:$0xff]
        %v1204 = vld [vmem:[%s202 + $0x710] sm:$0xff]
        %v1205 = vld [vmem:[%s202 + $0x718] sm:$0xff]
        %v1206 = vld [vmem:[%s202 + $0x720] sm:$0xff]
        %v1207 = vld [vmem:[%s202 + $0x728] sm:$0xff]
        %v1208 = vld [vmem:[%s202 + $0x730] sm:$0xff]
        %v1209 = vld [vmem:[%s202 + $0x738] sm:$0xff]
        %v1210 = vld [vmem:[%s202 + $0x740] sm:$0xff]
        %v1211 = vld [vmem:[%s202 + $0x748] sm:$0xff]
        %v1212 = vld [vmem:[%s202 + $0x750] sm:$0xff]
        %v1213 = vld [vmem:[%s202 + $0x758] sm:$0xff]
        %v1214 = vld [vmem:[%s202 + $0x760] sm:$0xff]
        %v1215 = vld [vmem:[%s202 + $0x768] sm:$0xff]
        %v1216 = vld [vmem:[%s202 + $0x770] sm:$0xff]
        %v1217 = vld [vmem:[%s202 + $0x778] sm:$0xff]
        %v1218 = vld [vmem:[%s202 + $0x780] sm:$0xff]
        %v1219 = vld [vmem:[%s202 + $0x788] sm:$0xff]
        %v1220 = vld [vmem:[%s202 + $0x790] sm:$0xff]
        %v1221 = vld [vmem:[%s202 + $0x798] sm:$0xff]
        %v1222 = vld [vmem:[%s202 + $0x7a0] sm:$0xff]
        %v1223 = vld [vmem:[%s202 + $0x7a8] sm:$0xff]
        %v1224 = vld [vmem:[%s202 + $0x7b0] sm:$0xff]
        %v1225 = vld [vmem:[%s202 + $0x7b8] sm:$0xff]
        %v1226 = vld [vmem:[%s202 + $0x7c0] sm:$0xff]
        %v1227 = vld [vmem:[%s202 + $0x7c8] sm:$0xff]
        %v1228 = vld [vmem:[%s202 + $0x7d0] sm:$0xff]
        %v1229 = vld [vmem:[%s202 + $0x7d8] sm:$0xff]
        %v1230 = vld [vmem:[%s202 + $0x7e0] sm:$0xff]
        %v1231 = vld [vmem:[%s202 + $0x7e8] sm:$0xff]
        %v1232 = vld [vmem:[%s202 + $0x7f0] sm:$0xff]
        %v1233 = vld [vmem:[%s202 + $0x7f8] sm:$0xff]
        %v1234 = vld [vmem:[%s202 + $0x800] sm:$0xff]
        %v1235 = vld [vmem:[%s202 + $0x808] sm:$0xff]
        %v1236 = vld [vmem:[%s202 + $0x810] sm:$0xff]
        %v1237 = vld [vmem:[%s202 + $0x818] sm:$0xff]
        %v1238 = vld [vmem:[%s202 + $0x820] sm:$0xff]
        %v1239 = vld [vmem:[%s202 + $0x828] sm:$0xff]
        %v1240 = vld [vmem:[%s202 + $0x830] sm:$0xff]
        %v1241 = vld [vmem:[%s202 + $0x838] sm:$0xff]
        %v1242 = vld [vmem:[%s202 + $0x840] sm:$0xff]
        %v1243 = vld [vmem:[%s202 + $0x848] sm:$0xff]
        %v1244 = vld [vmem:[%s202 + $0x850] sm:$0xff]
        %v1245 = vld [vmem:[%s202 + $0x858] sm:$0xff]
        %v1246 = vld [vmem:[%s202 + $0x860] sm:$0xff]
        %v1247 = vld [vmem:[%s202 + $0x868] sm:$0xff]
        %v1248 = vld [vmem:[%s202 + $0x870] sm:$0xff]
        %v1249 = vld [vmem:[%s202 + $0x878] sm:$0xff]
        %v1250 = vld [vmem:[%s202 + $0x880] sm:$0xff]
        %v1251 = vld [vmem:[%s202 + $0x888] sm:$0xff]
        %v1252 = vld [vmem:[%s202 + $0x890] sm:$0xff]
        %v1253 = vld [vmem:[%s202 + $0x898] sm:$0xff]
        %v1254 = vld [vmem:[%s202 + $0x8a0] sm:$0xff]
        %v1255 = vld [vmem:[%s202 + $0x8a8] sm:$0xff]
        %v1256 = vld [vmem:[%s202 + $0x8b0] sm:$0xff]
        %v1257 = vld [vmem:[%s202 + $0x8b8] sm:$0xff]
        %v1258 = vld [vmem:[%s202 + $0x8c0] sm:$0xff]
        %v1259 = vld [vmem:[%s202 + $0x8c8] sm:$0xff]
        %v1260 = vld [vmem:[%s202 + $0x8d0] sm:$0xff]
        %v1261 = vld [vmem:[%s202 + $0x8d8] sm:$0xff]
        %v1262 = vld [vmem:[%s202 + $0x8e0] sm:$0xff]
        %v1263 = vld [vmem:[%s202 + $0x8e8] sm:$0xff]
        %v1264 = vld [vmem:[%s202 + $0x8f0] sm:$0xff]
        %v1265 = vld [vmem:[%s202 + $0x8f8] sm:$0xff]
        %v1266 = vld [vmem:[%s202 + $0x900] sm:$0xff]
        %v1267 = vld [vmem:[%s202 + $0x908] sm:$0xff]
        %v1268 = vld [vmem:[%s202 + $0x910] sm:$0xff]
        %v1269 = vld [vmem:[%s202 + $0x918] sm:$0xff]
        %v1270 = vld [vmem:[%s202 + $0x920] sm:$0xff]
        %v1271 = vld [vmem:[%s202 + $0x928] sm:$0xff]
        %v1272 = vld [vmem:[%s202 + $0x930] sm:$0xff]
        %v1273 = vld [vmem:[%s202 + $0x938] sm:$0xff]
        %v1274 = vld [vmem:[%s202 + $0x940] sm:$0xff]
        %v1275 = vld [vmem:[%s202 + $0x948] sm:$0xff]
        %v1276 = vld [vmem:[%s202 + $0x950] sm:$0xff]
        %v1277 = vld [vmem:[%s202 + $0x958] sm:$0xff]
        %v1278 = vld [vmem:[%s202 + $0x960] sm:$0xff]
        %v1279 = vld [vmem:[%s202 + $0x968] sm:$0xff]
        %v1280 = vld [vmem:[%s202 + $0x970] sm:$0xff]
        %v1281 = vld [vmem:[%s202 + $0x978] sm:$0xff]
        %v1282 = vld [vmem:[%s202 + $0x980] sm:$0xff]
        %v1283 = vld [vmem:[%s202 + $0x988] sm:$0xff]
        %v1284 = vld [vmem:[%s202 + $0x990] sm:$0xff]
        %v1285 = vld [vmem:[%s202 + $0x998] sm:$0xff]
        %v1286 = vld [vmem:[%s202 + $0x9a0] sm:$0xff]
        %v1287 = vld [vmem:[%s202 + $0x9a8] sm:$0xff]
        %v1288 = vld [vmem:[%s202 + $0x9b0] sm:$0xff]
        %v1289 = vld [vmem:[%s202 + $0x9b8] sm:$0xff]
        %v1290 = vld [vmem:[%s202 + $0x9c0] sm:$0xff]
        %v1291 = vld [vmem:[%s202 + $0x9c8] sm:$0xff]
        %v1292 = vld [vmem:[%s202 + $0x9d0] sm:$0xff]
        %v1293 = vld [vmem:[%s202 + $0x9d8] sm:$0xff]
        %v1294 = vld [vmem:[%s202 + $0x9e0] sm:$0xff]
        %v1295 = vld [vmem:[%s202 + $0x9e8] sm:$0xff]
        %v1296 = vld [vmem:[%s202 + $0x9f0] sm:$0xff]
        %v1297 = vld [vmem:[%s202 + $0x9f8] sm:$0xff]
        %v1298 = vld [vmem:[%s202 + $0xa00] sm:$0xff]
        %v1299 = vld [vmem:[%s202 + $0xa08] sm:$0xff]
        %v1300 = vld [vmem:[%s202 + $0xa10] sm:$0xff]
        %v1301 = vld [vmem:[%s202 + $0xa18] sm:$0xff]
        %v1302 = vld [vmem:[%s202 + $0xa20] sm:$0xff]
        %v1303 = vld [vmem:[%s202 + $0xa28] sm:$0xff]
        %v1304 = vld [vmem:[%s202 + $0xa30] sm:$0xff]
        %v1305 = vld [vmem:[%s202 + $0xa38] sm:$0xff]
        %v1306 = vld [vmem:[%s202 + $0xa40] sm:$0xff]
        %v1307 = vld [vmem:[%s202 + $0xa48] sm:$0xff]
        %v1308 = vld [vmem:[%s202 + $0xa50] sm:$0xff]
        %v1309 = vld [vmem:[%s202 + $0xa58] sm:$0xff]
        %v1310 = vld [vmem:[%s202 + $0xa60] sm:$0xff]
        %v1311 = vld [vmem:[%s202 + $0xa68] sm:$0xff]
        %v1312 = vld [vmem:[%s202 + $0xa70] sm:$0xff]
        %v1313 = vld [vmem:[%s202 + $0xa78] sm:$0xff]
        %v1314 = vld [vmem:[%s202 + $0xa80] sm:$0xff]
        %v1315 = vld [vmem:[%s202 + $0xa88] sm:$0xff]
        %v1316 = vld [vmem:[%s202 + $0xa90] sm:$0xff]
        %v1317 = vld [vmem:[%s202 + $0xa98] sm:$0xff]
        %v1318 = vld [vmem:[%s202 + $0xaa0] sm:$0xff]
        %v1319 = vld [vmem:[%s202 + $0xaa8] sm:$0xff]
        %v1320 = vld [vmem:[%s202 + $0xab0] sm:$0xff]
        %v1321 = vld [vmem:[%s202 + $0xab8] sm:$0xff]
        %v1322 = vld [vmem:[%s202 + $0xac0] sm:$0xff]
        %v1323 = vld [vmem:[%s202 + $0xac8] sm:$0xff]
        %v1324 = vld [vmem:[%s202 + $0xad0] sm:$0xff]
        %v1325 = vld [vmem:[%s202 + $0xad8] sm:$0xff]
        %v1326 = vld [vmem:[%s202 + $0xae0] sm:$0xff]
        %v1327 = vld [vmem:[%s202 + $0xae8] sm:$0xff]
        %v1328 = vld [vmem:[%s202 + $0xaf0] sm:$0xff]
        %v1329 = vld [vmem:[%s202 + $0xaf8] sm:$0xff]
        %v1330 = vld [vmem:[%s202 + $0xb00] sm:$0xff]
        %v1331 = vld [vmem:[%s202 + $0xb08] sm:$0xff]
        %v1332 = vld [vmem:[%s202 + $0xb10] sm:$0xff]
        %v1333 = vld [vmem:[%s202 + $0xb18] sm:$0xff]
        %v1334 = vld [vmem:[%s202 + $0xb20] sm:$0xff]
        %v1335 = vld [vmem:[%s202 + $0xb28] sm:$0xff]
        %v1336 = vld [vmem:[%s202 + $0xb30] sm:$0xff]
        %v1337 = vld [vmem:[%s202 + $0xb38] sm:$0xff]
        %v1338 = vld [vmem:[%s202 + $0xb40] sm:$0xff]
        %v1339 = vld [vmem:[%s202 + $0xb48] sm:$0xff]
        %v1340 = vld [vmem:[%s202 + $0xb50] sm:$0xff]
        %v1341 = vld [vmem:[%s202 + $0xb58] sm:$0xff]
        %v1342 = vld [vmem:[%s202 + $0xb60] sm:$0xff]
        %v1343 = vld [vmem:[%s202 + $0xb68] sm:$0xff]
        %v1344 = vld [vmem:[%s202 + $0xb70] sm:$0xff]
        %v1345 = vld [vmem:[%s202 + $0xb78] sm:$0xff]
        %v1346 = vld [vmem:[%s202 + $0xb80] sm:$0xff]
        %v1347 = vld [vmem:[%s202 + $0xb88] sm:$0xff]
        %v1348 = vld [vmem:[%s202 + $0xb90] sm:$0xff]
        %v1349 = vld [vmem:[%s202 + $0xb98] sm:$0xff]
        %v1350 = vld [vmem:[%s202 + $0xba0] sm:$0xff]
        %v1351 = vld [vmem:[%s202 + $0xba8] sm:$0xff]
        %v1352 = vld [vmem:[%s202 + $0xbb0] sm:$0xff]
        %v1353 = vld [vmem:[%s202 + $0xbb8] sm:$0xff]
        %v1354 = vld [vmem:[%s202 + $0xbc0] sm:$0xff]
        %v1355 = vld [vmem:[%s202 + $0xbc8] sm:$0xff]
        %v1356 = vld [vmem:[%s202 + $0xbd0] sm:$0xff]
        %v1357 = vld [vmem:[%s202 + $0xbd8] sm:$0xff]
        %v1358 = vld [vmem:[%s202 + $0xbe0] sm:$0xff]
        %v1359 = vld [vmem:[%s202 + $0xbe8] sm:$0xff]
        %v1360 = vld [vmem:[%s202 + $0xbf0] sm:$0xff]
        %v1361 = vld [vmem:[%s202 + $0xbf8] sm:$0xff]
        %v1362 = vld [vmem:[%s202 + $0xc00] sm:$0xff]
        %v1363 = vld [vmem:[%s202 + $0xc08] sm:$0xff]
        %v1364 = vld [vmem:[%s202 + $0xc10] sm:$0xff]
        %v1365 = vld [vmem:[%s202 + $0xc18] sm:$0xff]
        %v1366 = vld [vmem:[%s202 + $0xc20] sm:$0xff]
        %v1367 = vld [vmem:[%s202 + $0xc28] sm:$0xff]
        %v1368 = vld [vmem:[%s202 + $0xc30] sm:$0xff]
        %v1369 = vld [vmem:[%s202 + $0xc38] sm:$0xff]
        %v1370 = vld [vmem:[%s202 + $0xc40] sm:$0xff]
        %v1371 = vld [vmem:[%s202 + $0xc48] sm:$0xff]
        %v1372 = vld [vmem:[%s202 + $0xc50] sm:$0xff]
        %v1373 = vld [vmem:[%s202 + $0xc58] sm:$0xff]
        %v1374 = vld [vmem:[%s202 + $0xc60] sm:$0xff]
        %v1375 = vld [vmem:[%s202 + $0xc68] sm:$0xff]
        %v1376 = vld [vmem:[%s202 + $0xc70] sm:$0xff]
        %v1377 = vld [vmem:[%s202 + $0xc78] sm:$0xff]
        %v1378 = vld [vmem:[%s202 + $0xc80] sm:$0xff]
        %v1379 = vld [vmem:[%s202 + $0xc88] sm:$0xff]
        %v1380 = vld [vmem:[%s202 + $0xc90] sm:$0xff]
        %v1381 = vld [vmem:[%s202 + $0xc98] sm:$0xff]
        %v1382 = vld [vmem:[%s202 + $0xca0] sm:$0xff]
        %v1383 = vld [vmem:[%s202 + $0xca8] sm:$0xff]
        %v1384 = vld [vmem:[%s202 + $0xcb0] sm:$0xff]
        %v1385 = vld [vmem:[%s202 + $0xcb8] sm:$0xff]
        %v1386 = vld [vmem:[%s202 + $0xcc0] sm:$0xff]
        %v1387 = vld [vmem:[%s202 + $0xcc8] sm:$0xff]
        %v1388 = vld [vmem:[%s202 + $0xcd0] sm:$0xff]
        %v1389 = vld [vmem:[%s202 + $0xcd8] sm:$0xff]
        %v1390 = vld [vmem:[%s202 + $0xce0] sm:$0xff]
        %v1391 = vld [vmem:[%s202 + $0xce8] sm:$0xff]
        %v1392 = vld [vmem:[%s202 + $0xcf0] sm:$0xff]
        %v1393 = vld [vmem:[%s202 + $0xcf8] sm:$0xff]
        %v1394 = vld [vmem:[%s202 + $0xd00] sm:$0xff]
        %v1395 = vld [vmem:[%s202 + $0xd08] sm:$0xff]
        %v1396 = vld [vmem:[%s202 + $0xd10] sm:$0xff]
        %v1397 = vld [vmem:[%s202 + $0xd18] sm:$0xff]
        %v1398 = vld [vmem:[%s202 + $0xd20] sm:$0xff]
        %v1399 = vld [vmem:[%s202 + $0xd28] sm:$0xff]
        %v1400 = vld [vmem:[%s202 + $0xd30] sm:$0xff]
        %v1401 = vld [vmem:[%s202 + $0xd38] sm:$0xff]
        %v1402 = vld [vmem:[%s202 + $0xd40] sm:$0xff]
        %v1403 = vld [vmem:[%s202 + $0xd48] sm:$0xff]
        %v1404 = vld [vmem:[%s202 + $0xd50] sm:$0xff]
        %v1405 = vld [vmem:[%s202 + $0xd58] sm:$0xff]
        %v1406 = vld [vmem:[%s202 + $0xd60] sm:$0xff]
        %v1407 = vld [vmem:[%s202 + $0xd68] sm:$0xff]
        %v1408 = vld [vmem:[%s202 + $0xd70] sm:$0xff]
        %v1409 = vld [vmem:[%s202 + $0xd78] sm:$0xff]
        %v1410 = vld [vmem:[%s202 + $0xd80] sm:$0xff]
        %v1411 = vld [vmem:[%s202 + $0xd88] sm:$0xff]
        %v1412 = vld [vmem:[%s202 + $0xd90] sm:$0xff]
        %v1413 = vld [vmem:[%s202 + $0xd98] sm:$0xff]
        %v1414 = vld [vmem:[%s202 + $0xda0] sm:$0xff]
        %v1415 = vld [vmem:[%s202 + $0xda8] sm:$0xff]
        %v1416 = vld [vmem:[%s202 + $0xdb0] sm:$0xff]
        %v1417 = vld [vmem:[%s202 + $0xdb8] sm:$0xff]
        %v1418 = vld [vmem:[%s202 + $0xdc0] sm:$0xff]
        %v1419 = vld [vmem:[%s202 + $0xdc8] sm:$0xff]
        %v1420 = vld [vmem:[%s202 + $0xdd0] sm:$0xff]
        %v1421 = vld [vmem:[%s202 + $0xdd8] sm:$0xff]
        %v1422 = vld [vmem:[%s202 + $0xde0] sm:$0xff]
        %v1423 = vld [vmem:[%s202 + $0xde8] sm:$0xff]
        %v1424 = vld [vmem:[%s202 + $0xdf0] sm:$0xff]
        %v1425 = vld [vmem:[%s202 + $0xdf8] sm:$0xff]
        %v1426 = vld [vmem:[%s202 + $0xe00] sm:$0xff]
        %v1427 = vld [vmem:[%s202 + $0xe08] sm:$0xff]
        %v1428 = vld [vmem:[%s202 + $0xe10] sm:$0xff]
        %v1429 = vld [vmem:[%s202 + $0xe18] sm:$0xff]
        %v1430 = vld [vmem:[%s202 + $0xe20] sm:$0xff]
        %v1431 = vld [vmem:[%s202 + $0xe28] sm:$0xff]
        %v1432 = vld [vmem:[%s202 + $0xe30] sm:$0xff]
        %v1433 = vld [vmem:[%s202 + $0xe38] sm:$0xff]
        %v1434 = vld [vmem:[%s202 + $0xe40] sm:$0xff]
        %v1435 = vld [vmem:[%s202 + $0xe48] sm:$0xff]
        %v1436 = vld [vmem:[%s202 + $0xe50] sm:$0xff]
        %v1437 = vld [vmem:[%s202 + $0xe58] sm:$0xff]
        %v1438 = vld [vmem:[%s202 + $0xe60] sm:$0xff]
        %v1439 = vld [vmem:[%s202 + $0xe68] sm:$0xff]
        %v1440 = vld [vmem:[%s202 + $0xe70] sm:$0xff]
        %v1441 = vld [vmem:[%s202 + $0xe78] sm:$0xff]
        %v1442 = vld [vmem:[%s202 + $0xe80] sm:$0xff]
        %v1443 = vld [vmem:[%s202 + $0xe88] sm:$0xff]
        %v1444 = vld [vmem:[%s202 + $0xe90] sm:$0xff]
        %v1445 = vld [vmem:[%s202 + $0xe98] sm:$0xff]
        %v1446 = vld [vmem:[%s202 + $0xea0] sm:$0xff]
        %v1447 = vld [vmem:[%s202 + $0xea8] sm:$0xff]
        %v1448 = vld [vmem:[%s202 + $0xeb0] sm:$0xff]
        %v1449 = vld [vmem:[%s202 + $0xeb8] sm:$0xff]
        %v1450 = vld [vmem:[%s202 + $0xec0] sm:$0xff]
        %v1451 = vld [vmem:[%s202 + $0xec8] sm:$0xff]
        %v1452 = vld [vmem:[%s202 + $0xed0] sm:$0xff]
        %v1453 = vld [vmem:[%s202 + $0xed8] sm:$0xff]
        %v1454 = vld [vmem:[%s202 + $0xee0] sm:$0xff]
        %v1455 = vld [vmem:[%s202 + $0xee8] sm:$0xff]
        %v1456 = vld [vmem:[%s202 + $0xef0] sm:$0xff]
        %v1457 = vld [vmem:[%s202 + $0xef8] sm:$0xff]
        %v1458 = vld [vmem:[%s202 + $0xf00] sm:$0xff]
        %v1459 = vld [vmem:[%s202 + $0xf08] sm:$0xff]
        %v1460 = vld [vmem:[%s202 + $0xf10] sm:$0xff]
        %v1461 = vld [vmem:[%s202 + $0xf18] sm:$0xff]
        %v1462 = vld [vmem:[%s202 + $0xf20] sm:$0xff]
        %v1463 = vld [vmem:[%s202 + $0xf28] sm:$0xff]
        %v1464 = vld [vmem:[%s202 + $0xf30] sm:$0xff]
        %v1465 = vld [vmem:[%s202 + $0xf38] sm:$0xff]
        %v1466 = vld [vmem:[%s202 + $0xf40] sm:$0xff]
        %v1467 = vld [vmem:[%s202 + $0xf48] sm:$0xff]
        %v1468 = vld [vmem:[%s202 + $0xf50] sm:$0xff]
        %v1469 = vld [vmem:[%s202 + $0xf58] sm:$0xff]
        %v1470 = vld [vmem:[%s202 + $0xf60] sm:$0xff]
        %v1471 = vld [vmem:[%s202 + $0xf68] sm:$0xff]
        %v1472 = vld [vmem:[%s202 + $0xf70] sm:$0xff]
        %v1473 = vld [vmem:[%s202 + $0xf78] sm:$0xff]
        %v1474 = vld [vmem:[%s202 + $0xf80] sm:$0xff]
        %v1475 = vld [vmem:[%s202 + $0xf88] sm:$0xff]
        %v1476 = vld [vmem:[%s202 + $0xf90] sm:$0xff]
        %v1477 = vld [vmem:[%s202 + $0xf98] sm:$0xff]
        %v1478 = vld [vmem:[%s202 + $0xfa0] sm:$0xff]
        %v1479 = vld [vmem:[%s202 + $0xfa8] sm:$0xff]
        %v1480 = vld [vmem:[%s202 + $0xfb0] sm:$0xff]
        %v1481 = vld [vmem:[%s202 + $0xfb8] sm:$0xff]
        %v1482 = vld [vmem:[%s202 + $0xfc0] sm:$0xff]
        %v1483 = vld [vmem:[%s202 + $0xfc8] sm:$0xff]
        %v1484 = vld [vmem:[%s202 + $0xfd0] sm:$0xff]
        %v1485 = vld [vmem:[%s202 + $0xfd8] sm:$0xff]
        %v1486 = vld [vmem:[%s202 + $0xfe0] sm:$0xff]
        %v1487 = vld [vmem:[%s202 + $0xfe8] sm:$0xff]
        %v1488 = vld [vmem:[%s202 + $0xff0] sm:$0xff]
        %v1489 = vld [vmem:[%s202 + $0xff8] sm:$0xff]
        %v1490 = vld [vmem:[%s211] sm:$0xf]
        %v1492 = vlaneseq
        %v1493 = vshrl.u32 %v1492, 7
        %v1494 = vsub.s32 0, %v1493
        %v1495 = vrot.slane %v1490, %v1494
        %v1496 = vlaneseq
        %v1497 = vshrl.u32 %v1496, 7
        %v1498 = vsub.s32 1, %v1497
        %v1499 = vrot.slane %v1490, %v1498
        %v1500 = vlaneseq
        %v1501 = vshrl.u32 %v1500, 7
        %v1502 = vsub.s32 2, %v1501
        %v1503 = vrot.slane %v1490, %v1502
        %v1504 = vlaneseq
        %v1505 = vshrl.u32 %v1504, 7
        %v1506 = vsub.s32 3, %v1505
        %v1507 = vrot.slane %v1490, %v1506
        %v1544 = vunpack.c.l.b16 %v946
        %v1545 = vunpack.c.l.b16 %v947
        %v1546 = vunpack.c.l.b16 %v948
        %v1547 = vunpack.c.l.b16 %v949
        %v1548 = vunpack.c.l.b16 %v950
        %v1549 = vunpack.c.l.b16 %v951
        %v1550 = vunpack.c.l.b16 %v952
        %v1551 = vunpack.c.l.b16 %v953
        %v1552 = vunpack.c.l.b16 %v954
        %v1553 = vunpack.c.l.b16 %v955
        %v1554 = vunpack.c.l.b16 %v956
        %v1555 = vunpack.c.l.b16 %v957
        %v1556 = vunpack.c.l.b16 %v958
        %v1557 = vunpack.c.l.b16 %v959
        %v1558 = vunpack.c.l.b16 %v960
        %v1559 = vunpack.c.l.b16 %v961
        %v1560 = vunpack.c.l.b16 %v962
        %v1561 = vunpack.c.l.b16 %v963
        %v1562 = vunpack.c.l.b16 %v964
        %v1563 = vunpack.c.l.b16 %v965
        %v1564 = vunpack.c.l.b16 %v966
        %v1565 = vunpack.c.l.b16 %v967
        %v1566 = vunpack.c.l.b16 %v968
        %v1567 = vunpack.c.l.b16 %v969
        %v1568 = vunpack.c.l.b16 %v970
        %v1569 = vunpack.c.l.b16 %v971
        %v1570 = vunpack.c.l.b16 %v972
        %v1571 = vunpack.c.l.b16 %v973
        %v1572 = vunpack.c.l.b16 %v974
        %v1573 = vunpack.c.l.b16 %v975
        %v1574 = vunpack.c.l.b16 %v976
        %v1575 = vunpack.c.l.b16 %v977
        %vm1576 = vcmask 1041409
        %v1577 = vsel %vm1576, %v1560, %v1544
        %v1578 = vsel %vm1576, %v1561, %v1545
        %v1579 = vsel %vm1576, %v1562, %v1546
        %v1580 = vsel %vm1576, %v1563, %v1547
        %v1581 = vsel %vm1576, %v1564, %v1548
        %v1582 = vsel %vm1576, %v1565, %v1549
        %v1583 = vsel %vm1576, %v1566, %v1550
        %v1584 = vsel %vm1576, %v1567, %v1551
        %v1585 = vsel %vm1576, %v1568, %v1552
        %v1586 = vsel %vm1576, %v1569, %v1553
        %v1587 = vsel %vm1576, %v1570, %v1554
        %v1588 = vsel %vm1576, %v1571, %v1555
        %v1589 = vsel %vm1576, %v1572, %v1556
        %v1590 = vsel %vm1576, %v1573, %v1557
        %v1591 = vsel %vm1576, %v1574, %v1558
        %v1592 = vsel %vm1576, %v1575, %v1559
        %v1593 = vpack.c.b16 %v1577, %v1577
        %v1594 = vpack.c.b16 %v1578, %v1578
        %v1595 = vpack.c.b16 %v1579, %v1579
        %v1596 = vpack.c.b16 %v1580, %v1580
        %v1597 = vpack.c.b16 %v1581, %v1581
        %v1598 = vpack.c.b16 %v1582, %v1582
        %v1599 = vpack.c.b16 %v1583, %v1583
        %v1600 = vpack.c.b16 %v1584, %v1584
        %v1601 = vpack.c.b16 %v1585, %v1585
        %v1602 = vpack.c.b16 %v1586, %v1586
        %v1603 = vpack.c.b16 %v1587, %v1587
        %v1604 = vpack.c.b16 %v1588, %v1588
        %v1605 = vpack.c.b16 %v1589, %v1589
        %v1606 = vpack.c.b16 %v1590, %v1590
        %v1607 = vpack.c.b16 %v1591, %v1591
        %v1608 = vpack.c.b16 %v1592, %v1592
        %v2137 = vunpack.c.l.b16 %v978
        %v2138 = vunpack.c.h.b16 %v978
        %v2139 = vunpack.c.l.b16 %v979
        %v2140 = vunpack.c.h.b16 %v979
        %v2141 = vunpack.c.l.b16 %v980
        %v2142 = vunpack.c.h.b16 %v980
        %v2143 = vunpack.c.l.b16 %v981
        %v2144 = vunpack.c.h.b16 %v981
        %v2145 = vunpack.c.l.b16 %v982
        %v2146 = vunpack.c.h.b16 %v982
        %v2147 = vunpack.c.l.b16 %v983
        %v2148 = vunpack.c.h.b16 %v983
        %v2149 = vunpack.c.l.b16 %v984
        %v2150 = vunpack.c.h.b16 %v984
        %v2151 = vunpack.c.l.b16 %v985
        %v2152 = vunpack.c.h.b16 %v985
        %v2153 = vunpack.c.l.b16 %v986
        %v2154 = vunpack.c.h.b16 %v986
        %v2155 = vunpack.c.l.b16 %v987
        %v2156 = vunpack.c.h.b16 %v987
        %v2157 = vunpack.c.l.b16 %v988
        %v2158 = vunpack.c.h.b16 %v988
        %v2159 = vunpack.c.l.b16 %v989
        %v2160 = vunpack.c.h.b16 %v989
        %v2161 = vunpack.c.l.b16 %v990
        %v2162 = vunpack.c.h.b16 %v990
        %v2163 = vunpack.c.l.b16 %v991
        %v2164 = vunpack.c.h.b16 %v991
        %v2165 = vunpack.c.l.b16 %v992
        %v2166 = vunpack.c.h.b16 %v992
        %v2167 = vunpack.c.l.b16 %v993
        %v2168 = vunpack.c.h.b16 %v993
        %v2169 = vunpack.c.l.b16 %v994
        %v2170 = vunpack.c.h.b16 %v994
        %v2171 = vunpack.c.l.b16 %v995
        %v2172 = vunpack.c.h.b16 %v995
        %v2173 = vunpack.c.l.b16 %v996
        %v2174 = vunpack.c.h.b16 %v996
        %v2175 = vunpack.c.l.b16 %v997
        %v2176 = vunpack.c.h.b16 %v997
        %v2177 = vunpack.c.l.b16 %v998
        %v2178 = vunpack.c.h.b16 %v998
        %v2179 = vunpack.c.l.b16 %v999
        %v2180 = vunpack.c.h.b16 %v999
        %v2181 = vunpack.c.l.b16 %v1000
        %v2182 = vunpack.c.h.b16 %v1000
        %v2183 = vunpack.c.l.b16 %v1001
        %v2184 = vunpack.c.h.b16 %v1001
        %v2185 = vunpack.c.l.b16 %v1002
        %v2186 = vunpack.c.h.b16 %v1002
        %v2187 = vunpack.c.l.b16 %v1003
        %v2188 = vunpack.c.h.b16 %v1003
        %v2189 = vunpack.c.l.b16 %v1004
        %v2190 = vunpack.c.h.b16 %v1004
        %v2191 = vunpack.c.l.b16 %v1005
        %v2192 = vunpack.c.h.b16 %v1005
        %v2193 = vunpack.c.l.b16 %v1006
        %v2194 = vunpack.c.h.b16 %v1006
        %v2195 = vunpack.c.l.b16 %v1007
        %v2196 = vunpack.c.h.b16 %v1007
        %v2197 = vunpack.c.l.b16 %v1008
        %v2198 = vunpack.c.h.b16 %v1008
        %v2199 = vunpack.c.l.b16 %v1009
        %v2200 = vunpack.c.h.b16 %v1009
        %v2201 = vunpack.c.l.b16 %v1010
        %v2202 = vunpack.c.h.b16 %v1010
        %v2203 = vunpack.c.l.b16 %v1011
        %v2204 = vunpack.c.h.b16 %v1011
        %v2205 = vunpack.c.l.b16 %v1012
        %v2206 = vunpack.c.h.b16 %v1012
        %v2207 = vunpack.c.l.b16 %v1013
        %v2208 = vunpack.c.h.b16 %v1013
        %v2209 = vunpack.c.l.b16 %v1014
        %v2210 = vunpack.c.h.b16 %v1014
        %v2211 = vunpack.c.l.b16 %v1015
        %v2212 = vunpack.c.h.b16 %v1015
        %v2213 = vunpack.c.l.b16 %v1016
        %v2214 = vunpack.c.h.b16 %v1016
        %v2215 = vunpack.c.l.b16 %v1017
        %v2216 = vunpack.c.h.b16 %v1017
        %v2217 = vunpack.c.l.b16 %v1018
        %v2218 = vunpack.c.h.b16 %v1018
        %v2219 = vunpack.c.l.b16 %v1019
        %v2220 = vunpack.c.h.b16 %v1019
        %v2221 = vunpack.c.l.b16 %v1020
        %v2222 = vunpack.c.h.b16 %v1020
        %v2223 = vunpack.c.l.b16 %v1021
        %v2224 = vunpack.c.h.b16 %v1021
        %v2225 = vunpack.c.l.b16 %v1022
        %v2226 = vunpack.c.h.b16 %v1022
        %v2227 = vunpack.c.l.b16 %v1023
        %v2228 = vunpack.c.h.b16 %v1023
        %v2229 = vunpack.c.l.b16 %v1024
        %v2230 = vunpack.c.h.b16 %v1024
        %v2231 = vunpack.c.l.b16 %v1025
        %v2232 = vunpack.c.h.b16 %v1025
        %v2233 = vunpack.c.l.b16 %v1026
        %v2234 = vunpack.c.h.b16 %v1026
        %v2235 = vunpack.c.l.b16 %v1027
        %v2236 = vunpack.c.h.b16 %v1027
        %v2237 = vunpack.c.l.b16 %v1028
        %v2238 = vunpack.c.h.b16 %v1028
        %v2239 = vunpack.c.l.b16 %v1029
        %v2240 = vunpack.c.h.b16 %v1029
        %v2241 = vunpack.c.l.b16 %v1030
        %v2242 = vunpack.c.h.b16 %v1030
        %v2243 = vunpack.c.l.b16 %v1031
        %v2244 = vunpack.c.h.b16 %v1031
        %v2245 = vunpack.c.l.b16 %v1032
        %v2246 = vunpack.c.h.b16 %v1032
        %v2247 = vunpack.c.l.b16 %v1033
        %v2248 = vunpack.c.h.b16 %v1033
        %v2249 = vunpack.c.l.b16 %v1034
        %v2250 = vunpack.c.h.b16 %v1034
        %v2251 = vunpack.c.l.b16 %v1035
        %v2252 = vunpack.c.h.b16 %v1035
        %v2253 = vunpack.c.l.b16 %v1036
        %v2254 = vunpack.c.h.b16 %v1036
        %v2255 = vunpack.c.l.b16 %v1037
        %v2256 = vunpack.c.h.b16 %v1037
        %v2257 = vunpack.c.l.b16 %v1038
        %v2258 = vunpack.c.h.b16 %v1038
        %v2259 = vunpack.c.l.b16 %v1039
        %v2260 = vunpack.c.h.b16 %v1039
        %v2261 = vunpack.c.l.b16 %v1040
        %v2262 = vunpack.c.h.b16 %v1040
        %v2263 = vunpack.c.l.b16 %v1041
        %v2264 = vunpack.c.h.b16 %v1041
        %v2265 = vunpack.c.l.b16 %v1042
        %v2266 = vunpack.c.h.b16 %v1042
        %v2267 = vunpack.c.l.b16 %v1043
        %v2268 = vunpack.c.h.b16 %v1043
        %v2269 = vunpack.c.l.b16 %v1044
        %v2270 = vunpack.c.h.b16 %v1044
        %v2271 = vunpack.c.l.b16 %v1045
        %v2272 = vunpack.c.h.b16 %v1045
        %v2273 = vunpack.c.l.b16 %v1046
        %v2274 = vunpack.c.h.b16 %v1046
        %v2275 = vunpack.c.l.b16 %v1047
        %v2276 = vunpack.c.h.b16 %v1047
        %v2277 = vunpack.c.l.b16 %v1048
        %v2278 = vunpack.c.h.b16 %v1048
        %v2279 = vunpack.c.l.b16 %v1049
        %v2280 = vunpack.c.h.b16 %v1049
        %v2281 = vunpack.c.l.b16 %v1050
        %v2282 = vunpack.c.h.b16 %v1050
        %v2283 = vunpack.c.l.b16 %v1051
        %v2284 = vunpack.c.h.b16 %v1051
        %v2285 = vunpack.c.l.b16 %v1052
        %v2286 = vunpack.c.h.b16 %v1052
        %v2287 = vunpack.c.l.b16 %v1053
        %v2288 = vunpack.c.h.b16 %v1053
        %v2289 = vunpack.c.l.b16 %v1054
        %v2290 = vunpack.c.h.b16 %v1054
        %v2291 = vunpack.c.l.b16 %v1055
        %v2292 = vunpack.c.h.b16 %v1055
        %v2293 = vunpack.c.l.b16 %v1056
        %v2294 = vunpack.c.h.b16 %v1056
        %v2295 = vunpack.c.l.b16 %v1057
        %v2296 = vunpack.c.h.b16 %v1057
        %v2297 = vunpack.c.l.b16 %v1058
        %v2298 = vunpack.c.h.b16 %v1058
        %v2299 = vunpack.c.l.b16 %v1059
        %v2300 = vunpack.c.h.b16 %v1059
        %v2301 = vunpack.c.l.b16 %v1060
        %v2302 = vunpack.c.h.b16 %v1060
        %v2303 = vunpack.c.l.b16 %v1061
        %v2304 = vunpack.c.h.b16 %v1061
        %v2305 = vunpack.c.l.b16 %v1062
        %v2306 = vunpack.c.h.b16 %v1062
        %v2307 = vunpack.c.l.b16 %v1063
        %v2308 = vunpack.c.h.b16 %v1063
        %v2309 = vunpack.c.l.b16 %v1064
        %v2310 = vunpack.c.h.b16 %v1064
        %v2311 = vunpack.c.l.b16 %v1065
        %v2312 = vunpack.c.h.b16 %v1065
        %v2313 = vunpack.c.l.b16 %v1066
        %v2314 = vunpack.c.h.b16 %v1066
        %v2315 = vunpack.c.l.b16 %v1067
        %v2316 = vunpack.c.h.b16 %v1067
        %v2317 = vunpack.c.l.b16 %v1068
        %v2318 = vunpack.c.h.b16 %v1068
        %v2319 = vunpack.c.l.b16 %v1069
        %v2320 = vunpack.c.h.b16 %v1069
        %v2321 = vunpack.c.l.b16 %v1070
        %v2322 = vunpack.c.h.b16 %v1070
        %v2323 = vunpack.c.l.b16 %v1071
        %v2324 = vunpack.c.h.b16 %v1071
        %v2325 = vunpack.c.l.b16 %v1072
        %v2326 = vunpack.c.h.b16 %v1072
        %v2327 = vunpack.c.l.b16 %v1073
        %v2328 = vunpack.c.h.b16 %v1073
        %v2329 = vunpack.c.l.b16 %v1074
        %v2330 = vunpack.c.h.b16 %v1074
        %v2331 = vunpack.c.l.b16 %v1075
        %v2332 = vunpack.c.h.b16 %v1075
        %v2333 = vunpack.c.l.b16 %v1076
        %v2334 = vunpack.c.h.b16 %v1076
        %v2335 = vunpack.c.l.b16 %v1077
        %v2336 = vunpack.c.h.b16 %v1077
        %v2337 = vunpack.c.l.b16 %v1078
        %v2338 = vunpack.c.h.b16 %v1078
        %v2339 = vunpack.c.l.b16 %v1079
        %v2340 = vunpack.c.h.b16 %v1079
        %v2341 = vunpack.c.l.b16 %v1080
        %v2342 = vunpack.c.h.b16 %v1080
        %v2343 = vunpack.c.l.b16 %v1081
        %v2344 = vunpack.c.h.b16 %v1081
        %v2345 = vunpack.c.l.b16 %v1082
        %v2346 = vunpack.c.h.b16 %v1082
        %v2347 = vunpack.c.l.b16 %v1083
        %v2348 = vunpack.c.h.b16 %v1083
        %v2349 = vunpack.c.l.b16 %v1084
        %v2350 = vunpack.c.h.b16 %v1084
        %v2351 = vunpack.c.l.b16 %v1085
        %v2352 = vunpack.c.h.b16 %v1085
        %v2353 = vunpack.c.l.b16 %v1086
        %v2354 = vunpack.c.h.b16 %v1086
        %v2355 = vunpack.c.l.b16 %v1087
        %v2356 = vunpack.c.h.b16 %v1087
        %v2357 = vunpack.c.l.b16 %v1088
        %v2358 = vunpack.c.h.b16 %v1088
        %v2359 = vunpack.c.l.b16 %v1089
        %v2360 = vunpack.c.h.b16 %v1089
        %v2361 = vunpack.c.l.b16 %v1090
        %v2362 = vunpack.c.h.b16 %v1090
        %v2363 = vunpack.c.l.b16 %v1091
        %v2364 = vunpack.c.h.b16 %v1091
        %v2365 = vunpack.c.l.b16 %v1092
        %v2366 = vunpack.c.h.b16 %v1092
        %v2367 = vunpack.c.l.b16 %v1093
        %v2368 = vunpack.c.h.b16 %v1093
        %v2369 = vunpack.c.l.b16 %v1094
        %v2370 = vunpack.c.h.b16 %v1094
        %v2371 = vunpack.c.l.b16 %v1095
        %v2372 = vunpack.c.h.b16 %v1095
        %v2373 = vunpack.c.l.b16 %v1096
        %v2374 = vunpack.c.h.b16 %v1096
        %v2375 = vunpack.c.l.b16 %v1097
        %v2376 = vunpack.c.h.b16 %v1097
        %v2377 = vunpack.c.l.b16 %v1098
        %v2378 = vunpack.c.h.b16 %v1098
        %v2379 = vunpack.c.l.b16 %v1099
        %v2380 = vunpack.c.h.b16 %v1099
        %v2381 = vunpack.c.l.b16 %v1100
        %v2382 = vunpack.c.h.b16 %v1100
        %v2383 = vunpack.c.l.b16 %v1101
        %v2384 = vunpack.c.h.b16 %v1101
        %v2385 = vunpack.c.l.b16 %v1102
        %v2386 = vunpack.c.h.b16 %v1102
        %v2387 = vunpack.c.l.b16 %v1103
        %v2388 = vunpack.c.h.b16 %v1103
        %v2389 = vunpack.c.l.b16 %v1104
        %v2390 = vunpack.c.h.b16 %v1104
        %v2391 = vunpack.c.l.b16 %v1105
        %v2392 = vunpack.c.h.b16 %v1105
        %v2393 = vunpack.c.l.b16 %v1106
        %v2394 = vunpack.c.h.b16 %v1106
        %v2395 = vunpack.c.l.b16 %v1107
        %v2396 = vunpack.c.h.b16 %v1107
        %v2397 = vunpack.c.l.b16 %v1108
        %v2398 = vunpack.c.h.b16 %v1108
        %v2399 = vunpack.c.l.b16 %v1109
        %v2400 = vunpack.c.h.b16 %v1109
        %v2401 = vunpack.c.l.b16 %v1110
        %v2402 = vunpack.c.h.b16 %v1110
        %v2403 = vunpack.c.l.b16 %v1111
        %v2404 = vunpack.c.h.b16 %v1111
        %v2405 = vunpack.c.l.b16 %v1112
        %v2406 = vunpack.c.h.b16 %v1112
        %v2407 = vunpack.c.l.b16 %v1113
        %v2408 = vunpack.c.h.b16 %v1113
        %v2409 = vunpack.c.l.b16 %v1114
        %v2410 = vunpack.c.h.b16 %v1114
        %v2411 = vunpack.c.l.b16 %v1115
        %v2412 = vunpack.c.h.b16 %v1115
        %v2413 = vunpack.c.l.b16 %v1116
        %v2414 = vunpack.c.h.b16 %v1116
        %v2415 = vunpack.c.l.b16 %v1117
        %v2416 = vunpack.c.h.b16 %v1117
        %v2417 = vunpack.c.l.b16 %v1118
        %v2418 = vunpack.c.h.b16 %v1118
        %v2419 = vunpack.c.l.b16 %v1119
        %v2420 = vunpack.c.h.b16 %v1119
        %v2421 = vunpack.c.l.b16 %v1120
        %v2422 = vunpack.c.h.b16 %v1120
        %v2423 = vunpack.c.l.b16 %v1121
        %v2424 = vunpack.c.h.b16 %v1121
        %v2425 = vunpack.c.l.b16 %v1122
        %v2426 = vunpack.c.h.b16 %v1122
        %v2427 = vunpack.c.l.b16 %v1123
        %v2428 = vunpack.c.h.b16 %v1123
        %v2429 = vunpack.c.l.b16 %v1124
        %v2430 = vunpack.c.h.b16 %v1124
        %v2431 = vunpack.c.l.b16 %v1125
        %v2432 = vunpack.c.h.b16 %v1125
        %v2433 = vunpack.c.l.b16 %v1126
        %v2434 = vunpack.c.h.b16 %v1126
        %v2435 = vunpack.c.l.b16 %v1127
        %v2436 = vunpack.c.h.b16 %v1127
        %v2437 = vunpack.c.l.b16 %v1128
        %v2438 = vunpack.c.h.b16 %v1128
        %v2439 = vunpack.c.l.b16 %v1129
        %v2440 = vunpack.c.h.b16 %v1129
        %v2441 = vunpack.c.l.b16 %v1130
        %v2442 = vunpack.c.h.b16 %v1130
        %v2443 = vunpack.c.l.b16 %v1131
        %v2444 = vunpack.c.h.b16 %v1131
        %v2445 = vunpack.c.l.b16 %v1132
        %v2446 = vunpack.c.h.b16 %v1132
        %v2447 = vunpack.c.l.b16 %v1133
        %v2448 = vunpack.c.h.b16 %v1133
        %v2449 = vunpack.c.l.b16 %v1134
        %v2450 = vunpack.c.h.b16 %v1134
        %v2451 = vunpack.c.l.b16 %v1135
        %v2452 = vunpack.c.h.b16 %v1135
        %v2453 = vunpack.c.l.b16 %v1136
        %v2454 = vunpack.c.h.b16 %v1136
        %v2455 = vunpack.c.l.b16 %v1137
        %v2456 = vunpack.c.h.b16 %v1137
        %v2457 = vunpack.c.l.b16 %v1138
        %v2458 = vunpack.c.h.b16 %v1138
        %v2459 = vunpack.c.l.b16 %v1139
        %v2460 = vunpack.c.h.b16 %v1139
        %v2461 = vunpack.c.l.b16 %v1140
        %v2462 = vunpack.c.h.b16 %v1140
        %v2463 = vunpack.c.l.b16 %v1141
        %v2464 = vunpack.c.h.b16 %v1141
        %v2465 = vunpack.c.l.b16 %v1142
        %v2466 = vunpack.c.h.b16 %v1142
        %v2467 = vunpack.c.l.b16 %v1143
        %v2468 = vunpack.c.h.b16 %v1143
        %v2469 = vunpack.c.l.b16 %v1144
        %v2470 = vunpack.c.h.b16 %v1144
        %v2471 = vunpack.c.l.b16 %v1145
        %v2472 = vunpack.c.h.b16 %v1145
        %v2473 = vunpack.c.l.b16 %v1146
        %v2474 = vunpack.c.h.b16 %v1146
        %v2475 = vunpack.c.l.b16 %v1147
        %v2476 = vunpack.c.h.b16 %v1147
        %v2477 = vunpack.c.l.b16 %v1148
        %v2478 = vunpack.c.h.b16 %v1148
        %v2479 = vunpack.c.l.b16 %v1149
        %v2480 = vunpack.c.h.b16 %v1149
        %v2481 = vunpack.c.l.b16 %v1150
        %v2482 = vunpack.c.h.b16 %v1150
        %v2483 = vunpack.c.l.b16 %v1151
        %v2484 = vunpack.c.h.b16 %v1151
        %v2485 = vunpack.c.l.b16 %v1152
        %v2486 = vunpack.c.h.b16 %v1152
        %v2487 = vunpack.c.l.b16 %v1153
        %v2488 = vunpack.c.h.b16 %v1153
        %v2489 = vunpack.c.l.b16 %v1154
        %v2490 = vunpack.c.h.b16 %v1154
        %v2491 = vunpack.c.l.b16 %v1155
        %v2492 = vunpack.c.h.b16 %v1155
        %v2493 = vunpack.c.l.b16 %v1156
        %v2494 = vunpack.c.h.b16 %v1156
        %v2495 = vunpack.c.l.b16 %v1157
        %v2496 = vunpack.c.h.b16 %v1157
        %v2497 = vunpack.c.l.b16 %v1158
        %v2498 = vunpack.c.h.b16 %v1158
        %v2499 = vunpack.c.l.b16 %v1159
        %v2500 = vunpack.c.h.b16 %v1159
        %v2501 = vunpack.c.l.b16 %v1160
        %v2502 = vunpack.c.h.b16 %v1160
        %v2503 = vunpack.c.l.b16 %v1161
        %v2504 = vunpack.c.h.b16 %v1161
        %v2505 = vunpack.c.l.b16 %v1162
        %v2506 = vunpack.c.h.b16 %v1162
        %v2507 = vunpack.c.l.b16 %v1163
        %v2508 = vunpack.c.h.b16 %v1163
        %v2509 = vunpack.c.l.b16 %v1164
        %v2510 = vunpack.c.h.b16 %v1164
        %v2511 = vunpack.c.l.b16 %v1165
        %v2512 = vunpack.c.h.b16 %v1165
        %v2513 = vunpack.c.l.b16 %v1166
        %v2514 = vunpack.c.h.b16 %v1166
        %v2515 = vunpack.c.l.b16 %v1167
        %v2516 = vunpack.c.h.b16 %v1167
        %v2517 = vunpack.c.l.b16 %v1168
        %v2518 = vunpack.c.h.b16 %v1168
        %v2519 = vunpack.c.l.b16 %v1169
        %v2520 = vunpack.c.h.b16 %v1169
        %v2521 = vunpack.c.l.b16 %v1170
        %v2522 = vunpack.c.h.b16 %v1170
        %v2523 = vunpack.c.l.b16 %v1171
        %v2524 = vunpack.c.h.b16 %v1171
        %v2525 = vunpack.c.l.b16 %v1172
        %v2526 = vunpack.c.h.b16 %v1172
        %v2527 = vunpack.c.l.b16 %v1173
        %v2528 = vunpack.c.h.b16 %v1173
        %v2529 = vunpack.c.l.b16 %v1174
        %v2530 = vunpack.c.h.b16 %v1174
        %v2531 = vunpack.c.l.b16 %v1175
        %v2532 = vunpack.c.h.b16 %v1175
        %v2533 = vunpack.c.l.b16 %v1176
        %v2534 = vunpack.c.h.b16 %v1176
        %v2535 = vunpack.c.l.b16 %v1177
        %v2536 = vunpack.c.h.b16 %v1177
        %v2537 = vunpack.c.l.b16 %v1178
        %v2538 = vunpack.c.h.b16 %v1178
        %v2539 = vunpack.c.l.b16 %v1179
        %v2540 = vunpack.c.h.b16 %v1179
        %v2541 = vunpack.c.l.b16 %v1180
        %v2542 = vunpack.c.h.b16 %v1180
        %v2543 = vunpack.c.l.b16 %v1181
        %v2544 = vunpack.c.h.b16 %v1181
        %v2545 = vunpack.c.l.b16 %v1182
        %v2546 = vunpack.c.h.b16 %v1182
        %v2547 = vunpack.c.l.b16 %v1183
        %v2548 = vunpack.c.h.b16 %v1183
        %v2549 = vunpack.c.l.b16 %v1184
        %v2550 = vunpack.c.h.b16 %v1184
        %v2551 = vunpack.c.l.b16 %v1185
        %v2552 = vunpack.c.h.b16 %v1185
        %v2553 = vunpack.c.l.b16 %v1186
        %v2554 = vunpack.c.h.b16 %v1186
        %v2555 = vunpack.c.l.b16 %v1187
        %v2556 = vunpack.c.h.b16 %v1187
        %v2557 = vunpack.c.l.b16 %v1188
        %v2558 = vunpack.c.h.b16 %v1188
        %v2559 = vunpack.c.l.b16 %v1189
        %v2560 = vunpack.c.h.b16 %v1189
        %v2561 = vunpack.c.l.b16 %v1190
        %v2562 = vunpack.c.h.b16 %v1190
        %v2563 = vunpack.c.l.b16 %v1191
        %v2564 = vunpack.c.h.b16 %v1191
        %v2565 = vunpack.c.l.b16 %v1192
        %v2566 = vunpack.c.h.b16 %v1192
        %v2567 = vunpack.c.l.b16 %v1193
        %v2568 = vunpack.c.h.b16 %v1193
        %v2569 = vunpack.c.l.b16 %v1194
        %v2570 = vunpack.c.h.b16 %v1194
        %v2571 = vunpack.c.l.b16 %v1195
        %v2572 = vunpack.c.h.b16 %v1195
        %v2573 = vunpack.c.l.b16 %v1196
        %v2574 = vunpack.c.h.b16 %v1196
        %v2575 = vunpack.c.l.b16 %v1197
        %v2576 = vunpack.c.h.b16 %v1197
        %v2577 = vunpack.c.l.b16 %v1198
        %v2578 = vunpack.c.h.b16 %v1198
        %v2579 = vunpack.c.l.b16 %v1199
        %v2580 = vunpack.c.h.b16 %v1199
        %v2581 = vunpack.c.l.b16 %v1200
        %v2582 = vunpack.c.h.b16 %v1200
        %v2583 = vunpack.c.l.b16 %v1201
        %v2584 = vunpack.c.h.b16 %v1201
        %v2585 = vunpack.c.l.b16 %v1202
        %v2586 = vunpack.c.h.b16 %v1202
        %v2587 = vunpack.c.l.b16 %v1203
        %v2588 = vunpack.c.h.b16 %v1203
        %v2589 = vunpack.c.l.b16 %v1204
        %v2590 = vunpack.c.h.b16 %v1204
        %v2591 = vunpack.c.l.b16 %v1205
        %v2592 = vunpack.c.h.b16 %v1205
        %v2593 = vunpack.c.l.b16 %v1206
        %v2594 = vunpack.c.h.b16 %v1206
        %v2595 = vunpack.c.l.b16 %v1207
        %v2596 = vunpack.c.h.b16 %v1207
        %v2597 = vunpack.c.l.b16 %v1208
        %v2598 = vunpack.c.h.b16 %v1208
        %v2599 = vunpack.c.l.b16 %v1209
        %v2600 = vunpack.c.h.b16 %v1209
        %v2601 = vunpack.c.l.b16 %v1210
        %v2602 = vunpack.c.h.b16 %v1210
        %v2603 = vunpack.c.l.b16 %v1211
        %v2604 = vunpack.c.h.b16 %v1211
        %v2605 = vunpack.c.l.b16 %v1212
        %v2606 = vunpack.c.h.b16 %v1212
        %v2607 = vunpack.c.l.b16 %v1213
        %v2608 = vunpack.c.h.b16 %v1213
        %v2609 = vunpack.c.l.b16 %v1214
        %v2610 = vunpack.c.h.b16 %v1214
        %v2611 = vunpack.c.l.b16 %v1215
        %v2612 = vunpack.c.h.b16 %v1215
        %v2613 = vunpack.c.l.b16 %v1216
        %v2614 = vunpack.c.h.b16 %v1216
        %v2615 = vunpack.c.l.b16 %v1217
        %v2616 = vunpack.c.h.b16 %v1217
        %v2617 = vunpack.c.l.b16 %v1218
        %v2618 = vunpack.c.h.b16 %v1218
        %v2619 = vunpack.c.l.b16 %v1219
        %v2620 = vunpack.c.h.b16 %v1219
        %v2621 = vunpack.c.l.b16 %v1220
        %v2622 = vunpack.c.h.b16 %v1220
        %v2623 = vunpack.c.l.b16 %v1221
        %v2624 = vunpack.c.h.b16 %v1221
        %v2625 = vunpack.c.l.b16 %v1222
        %v2626 = vunpack.c.h.b16 %v1222
        %v2627 = vunpack.c.l.b16 %v1223
        %v2628 = vunpack.c.h.b16 %v1223
        %v2629 = vunpack.c.l.b16 %v1224
        %v2630 = vunpack.c.h.b16 %v1224
        %v2631 = vunpack.c.l.b16 %v1225
        %v2632 = vunpack.c.h.b16 %v1225
        %v2633 = vunpack.c.l.b16 %v1226
        %v2634 = vunpack.c.h.b16 %v1226
        %v2635 = vunpack.c.l.b16 %v1227
        %v2636 = vunpack.c.h.b16 %v1227
        %v2637 = vunpack.c.l.b16 %v1228
        %v2638 = vunpack.c.h.b16 %v1228
        %v2639 = vunpack.c.l.b16 %v1229
        %v2640 = vunpack.c.h.b16 %v1229
        %v2641 = vunpack.c.l.b16 %v1230
        %v2642 = vunpack.c.h.b16 %v1230
        %v2643 = vunpack.c.l.b16 %v1231
        %v2644 = vunpack.c.h.b16 %v1231
        %v2645 = vunpack.c.l.b16 %v1232
        %v2646 = vunpack.c.h.b16 %v1232
        %v2647 = vunpack.c.l.b16 %v1233
        %v2648 = vunpack.c.h.b16 %v1233
        %v2649 = vunpack.c.l.b16 %v1234
        %v2650 = vunpack.c.h.b16 %v1234
        %v2651 = vunpack.c.l.b16 %v1235
        %v2652 = vunpack.c.h.b16 %v1235
        %v2653 = vunpack.c.l.b16 %v1236
        %v2654 = vunpack.c.h.b16 %v1236
        %v2655 = vunpack.c.l.b16 %v1237
        %v2656 = vunpack.c.h.b16 %v1237
        %v2657 = vunpack.c.l.b16 %v1238
        %v2658 = vunpack.c.h.b16 %v1238
        %v2659 = vunpack.c.l.b16 %v1239
        %v2660 = vunpack.c.h.b16 %v1239
        %v2661 = vunpack.c.l.b16 %v1240
        %v2662 = vunpack.c.h.b16 %v1240
        %v2663 = vunpack.c.l.b16 %v1241
        %v2664 = vunpack.c.h.b16 %v1241
        %v2665 = vunpack.c.l.b16 %v1242
        %v2666 = vunpack.c.h.b16 %v1242
        %v2667 = vunpack.c.l.b16 %v1243
        %v2668 = vunpack.c.h.b16 %v1243
        %v2669 = vunpack.c.l.b16 %v1244
        %v2670 = vunpack.c.h.b16 %v1244
        %v2671 = vunpack.c.l.b16 %v1245
        %v2672 = vunpack.c.h.b16 %v1245
        %v2673 = vunpack.c.l.b16 %v1246
        %v2674 = vunpack.c.h.b16 %v1246
        %v2675 = vunpack.c.l.b16 %v1247
        %v2676 = vunpack.c.h.b16 %v1247
        %v2677 = vunpack.c.l.b16 %v1248
        %v2678 = vunpack.c.h.b16 %v1248
        %v2679 = vunpack.c.l.b16 %v1249
        %v2680 = vunpack.c.h.b16 %v1249
        %v2681 = vunpack.c.l.b16 %v1250
        %v2682 = vunpack.c.h.b16 %v1250
        %v2683 = vunpack.c.l.b16 %v1251
        %v2684 = vunpack.c.h.b16 %v1251
        %v2685 = vunpack.c.l.b16 %v1252
        %v2686 = vunpack.c.h.b16 %v1252
        %v2687 = vunpack.c.l.b16 %v1253
        %v2688 = vunpack.c.h.b16 %v1253
        %v2689 = vunpack.c.l.b16 %v1254
        %v2690 = vunpack.c.h.b16 %v1254
        %v2691 = vunpack.c.l.b16 %v1255
        %v2692 = vunpack.c.h.b16 %v1255
        %v2693 = vunpack.c.l.b16 %v1256
        %v2694 = vunpack.c.h.b16 %v1256
        %v2695 = vunpack.c.l.b16 %v1257
        %v2696 = vunpack.c.h.b16 %v1257
        %v2697 = vunpack.c.l.b16 %v1258
        %v2698 = vunpack.c.h.b16 %v1258
        %v2699 = vunpack.c.l.b16 %v1259
        %v2700 = vunpack.c.h.b16 %v1259
        %v2701 = vunpack.c.l.b16 %v1260
        %v2702 = vunpack.c.h.b16 %v1260
        %v2703 = vunpack.c.l.b16 %v1261
        %v2704 = vunpack.c.h.b16 %v1261
        %v2705 = vunpack.c.l.b16 %v1262
        %v2706 = vunpack.c.h.b16 %v1262
        %v2707 = vunpack.c.l.b16 %v1263
        %v2708 = vunpack.c.h.b16 %v1263
        %v2709 = vunpack.c.l.b16 %v1264
        %v2710 = vunpack.c.h.b16 %v1264
        %v2711 = vunpack.c.l.b16 %v1265
        %v2712 = vunpack.c.h.b16 %v1265
        %v2713 = vunpack.c.l.b16 %v1266
        %v2714 = vunpack.c.h.b16 %v1266
        %v2715 = vunpack.c.l.b16 %v1267
        %v2716 = vunpack.c.h.b16 %v1267
        %v2717 = vunpack.c.l.b16 %v1268
        %v2718 = vunpack.c.h.b16 %v1268
        %v2719 = vunpack.c.l.b16 %v1269
        %v2720 = vunpack.c.h.b16 %v1269
        %v2721 = vunpack.c.l.b16 %v1270
        %v2722 = vunpack.c.h.b16 %v1270
        %v2723 = vunpack.c.l.b16 %v1271
        %v2724 = vunpack.c.h.b16 %v1271
        %v2725 = vunpack.c.l.b16 %v1272
        %v2726 = vunpack.c.h.b16 %v1272
        %v2727 = vunpack.c.l.b16 %v1273
        %v2728 = vunpack.c.h.b16 %v1273
        %v2729 = vunpack.c.l.b16 %v1274
        %v2730 = vunpack.c.h.b16 %v1274
        %v2731 = vunpack.c.l.b16 %v1275
        %v2732 = vunpack.c.h.b16 %v1275
        %v2733 = vunpack.c.l.b16 %v1276
        %v2734 = vunpack.c.h.b16 %v1276
        %v2735 = vunpack.c.l.b16 %v1277
        %v2736 = vunpack.c.h.b16 %v1277
        %v2737 = vunpack.c.l.b16 %v1278
        %v2738 = vunpack.c.h.b16 %v1278
        %v2739 = vunpack.c.l.b16 %v1279
        %v2740 = vunpack.c.h.b16 %v1279
        %v2741 = vunpack.c.l.b16 %v1280
        %v2742 = vunpack.c.h.b16 %v1280
        %v2743 = vunpack.c.l.b16 %v1281
        %v2744 = vunpack.c.h.b16 %v1281
        %v2745 = vunpack.c.l.b16 %v1282
        %v2746 = vunpack.c.h.b16 %v1282
        %v2747 = vunpack.c.l.b16 %v1283
        %v2748 = vunpack.c.h.b16 %v1283
        %v2749 = vunpack.c.l.b16 %v1284
        %v2750 = vunpack.c.h.b16 %v1284
        %v2751 = vunpack.c.l.b16 %v1285
        %v2752 = vunpack.c.h.b16 %v1285
        %v2753 = vunpack.c.l.b16 %v1286
        %v2754 = vunpack.c.h.b16 %v1286
        %v2755 = vunpack.c.l.b16 %v1287
        %v2756 = vunpack.c.h.b16 %v1287
        %v2757 = vunpack.c.l.b16 %v1288
        %v2758 = vunpack.c.h.b16 %v1288
        %v2759 = vunpack.c.l.b16 %v1289
        %v2760 = vunpack.c.h.b16 %v1289
        %v2761 = vunpack.c.l.b16 %v1290
        %v2762 = vunpack.c.h.b16 %v1290
        %v2763 = vunpack.c.l.b16 %v1291
        %v2764 = vunpack.c.h.b16 %v1291
        %v2765 = vunpack.c.l.b16 %v1292
        %v2766 = vunpack.c.h.b16 %v1292
        %v2767 = vunpack.c.l.b16 %v1293
        %v2768 = vunpack.c.h.b16 %v1293
        %v2769 = vunpack.c.l.b16 %v1294
        %v2770 = vunpack.c.h.b16 %v1294
        %v2771 = vunpack.c.l.b16 %v1295
        %v2772 = vunpack.c.h.b16 %v1295
        %v2773 = vunpack.c.l.b16 %v1296
        %v2774 = vunpack.c.h.b16 %v1296
        %v2775 = vunpack.c.l.b16 %v1297
        %v2776 = vunpack.c.h.b16 %v1297
        %v2777 = vunpack.c.l.b16 %v1298
        %v2778 = vunpack.c.h.b16 %v1298
        %v2779 = vunpack.c.l.b16 %v1299
        %v2780 = vunpack.c.h.b16 %v1299
        %v2781 = vunpack.c.l.b16 %v1300
        %v2782 = vunpack.c.h.b16 %v1300
        %v2783 = vunpack.c.l.b16 %v1301
        %v2784 = vunpack.c.h.b16 %v1301
        %v2785 = vunpack.c.l.b16 %v1302
        %v2786 = vunpack.c.h.b16 %v1302
        %v2787 = vunpack.c.l.b16 %v1303
        %v2788 = vunpack.c.h.b16 %v1303
        %v2789 = vunpack.c.l.b16 %v1304
        %v2790 = vunpack.c.h.b16 %v1304
        %v2791 = vunpack.c.l.b16 %v1305
        %v2792 = vunpack.c.h.b16 %v1305
        %v2793 = vunpack.c.l.b16 %v1306
        %v2794 = vunpack.c.h.b16 %v1306
        %v2795 = vunpack.c.l.b16 %v1307
        %v2796 = vunpack.c.h.b16 %v1307
        %v2797 = vunpack.c.l.b16 %v1308
        %v2798 = vunpack.c.h.b16 %v1308
        %v2799 = vunpack.c.l.b16 %v1309
        %v2800 = vunpack.c.h.b16 %v1309
        %v2801 = vunpack.c.l.b16 %v1310
        %v2802 = vunpack.c.h.b16 %v1310
        %v2803 = vunpack.c.l.b16 %v1311
        %v2804 = vunpack.c.h.b16 %v1311
        %v2805 = vunpack.c.l.b16 %v1312
        %v2806 = vunpack.c.h.b16 %v1312
        %v2807 = vunpack.c.l.b16 %v1313
        %v2808 = vunpack.c.h.b16 %v1313
        %v2809 = vunpack.c.l.b16 %v1314
        %v2810 = vunpack.c.h.b16 %v1314
        %v2811 = vunpack.c.l.b16 %v1315
        %v2812 = vunpack.c.h.b16 %v1315
        %v2813 = vunpack.c.l.b16 %v1316
        %v2814 = vunpack.c.h.b16 %v1316
        %v2815 = vunpack.c.l.b16 %v1317
        %v2816 = vunpack.c.h.b16 %v1317
        %v2817 = vunpack.c.l.b16 %v1318
        %v2818 = vunpack.c.h.b16 %v1318
        %v2819 = vunpack.c.l.b16 %v1319
        %v2820 = vunpack.c.h.b16 %v1319
        %v2821 = vunpack.c.l.b16 %v1320
        %v2822 = vunpack.c.h.b16 %v1320
        %v2823 = vunpack.c.l.b16 %v1321
        %v2824 = vunpack.c.h.b16 %v1321
        %v2825 = vunpack.c.l.b16 %v1322
        %v2826 = vunpack.c.h.b16 %v1322
        %v2827 = vunpack.c.l.b16 %v1323
        %v2828 = vunpack.c.h.b16 %v1323
        %v2829 = vunpack.c.l.b16 %v1324
        %v2830 = vunpack.c.h.b16 %v1324
        %v2831 = vunpack.c.l.b16 %v1325
        %v2832 = vunpack.c.h.b16 %v1325
        %v2833 = vunpack.c.l.b16 %v1326
        %v2834 = vunpack.c.h.b16 %v1326
        %v2835 = vunpack.c.l.b16 %v1327
        %v2836 = vunpack.c.h.b16 %v1327
        %v2837 = vunpack.c.l.b16 %v1328
        %v2838 = vunpack.c.h.b16 %v1328
        %v2839 = vunpack.c.l.b16 %v1329
        %v2840 = vunpack.c.h.b16 %v1329
        %v2841 = vunpack.c.l.b16 %v1330
        %v2842 = vunpack.c.h.b16 %v1330
        %v2843 = vunpack.c.l.b16 %v1331
        %v2844 = vunpack.c.h.b16 %v1331
        %v2845 = vunpack.c.l.b16 %v1332
        %v2846 = vunpack.c.h.b16 %v1332
        %v2847 = vunpack.c.l.b16 %v1333
        %v2848 = vunpack.c.h.b16 %v1333
        %v2849 = vunpack.c.l.b16 %v1334
        %v2850 = vunpack.c.h.b16 %v1334
        %v2851 = vunpack.c.l.b16 %v1335
        %v2852 = vunpack.c.h.b16 %v1335
        %v2853 = vunpack.c.l.b16 %v1336
        %v2854 = vunpack.c.h.b16 %v1336
        %v2855 = vunpack.c.l.b16 %v1337
        %v2856 = vunpack.c.h.b16 %v1337
        %v2857 = vunpack.c.l.b16 %v1338
        %v2858 = vunpack.c.h.b16 %v1338
        %v2859 = vunpack.c.l.b16 %v1339
        %v2860 = vunpack.c.h.b16 %v1339
        %v2861 = vunpack.c.l.b16 %v1340
        %v2862 = vunpack.c.h.b16 %v1340
        %v2863 = vunpack.c.l.b16 %v1341
        %v2864 = vunpack.c.h.b16 %v1341
        %v2865 = vunpack.c.l.b16 %v1342
        %v2866 = vunpack.c.h.b16 %v1342
        %v2867 = vunpack.c.l.b16 %v1343
        %v2868 = vunpack.c.h.b16 %v1343
        %v2869 = vunpack.c.l.b16 %v1344
        %v2870 = vunpack.c.h.b16 %v1344
        %v2871 = vunpack.c.l.b16 %v1345
        %v2872 = vunpack.c.h.b16 %v1345
        %v2873 = vunpack.c.l.b16 %v1346
        %v2874 = vunpack.c.h.b16 %v1346
        %v2875 = vunpack.c.l.b16 %v1347
        %v2876 = vunpack.c.h.b16 %v1347
        %v2877 = vunpack.c.l.b16 %v1348
        %v2878 = vunpack.c.h.b16 %v1348
        %v2879 = vunpack.c.l.b16 %v1349
        %v2880 = vunpack.c.h.b16 %v1349
        %v2881 = vunpack.c.l.b16 %v1350
        %v2882 = vunpack.c.h.b16 %v1350
        %v2883 = vunpack.c.l.b16 %v1351
        %v2884 = vunpack.c.h.b16 %v1351
        %v2885 = vunpack.c.l.b16 %v1352
        %v2886 = vunpack.c.h.b16 %v1352
        %v2887 = vunpack.c.l.b16 %v1353
        %v2888 = vunpack.c.h.b16 %v1353
        %v2889 = vunpack.c.l.b16 %v1354
        %v2890 = vunpack.c.h.b16 %v1354
        %v2891 = vunpack.c.l.b16 %v1355
        %v2892 = vunpack.c.h.b16 %v1355
        %v2893 = vunpack.c.l.b16 %v1356
        %v2894 = vunpack.c.h.b16 %v1356
        %v2895 = vunpack.c.l.b16 %v1357
        %v2896 = vunpack.c.h.b16 %v1357
        %v2897 = vunpack.c.l.b16 %v1358
        %v2898 = vunpack.c.h.b16 %v1358
        %v2899 = vunpack.c.l.b16 %v1359
        %v2900 = vunpack.c.h.b16 %v1359
        %v2901 = vunpack.c.l.b16 %v1360
        %v2902 = vunpack.c.h.b16 %v1360
        %v2903 = vunpack.c.l.b16 %v1361
        %v2904 = vunpack.c.h.b16 %v1361
        %v2905 = vunpack.c.l.b16 %v1362
        %v2906 = vunpack.c.h.b16 %v1362
        %v2907 = vunpack.c.l.b16 %v1363
        %v2908 = vunpack.c.h.b16 %v1363
        %v2909 = vunpack.c.l.b16 %v1364
        %v2910 = vunpack.c.h.b16 %v1364
        %v2911 = vunpack.c.l.b16 %v1365
        %v2912 = vunpack.c.h.b16 %v1365
        %v2913 = vunpack.c.l.b16 %v1366
        %v2914 = vunpack.c.h.b16 %v1366
        %v2915 = vunpack.c.l.b16 %v1367
        %v2916 = vunpack.c.h.b16 %v1367
        %v2917 = vunpack.c.l.b16 %v1368
        %v2918 = vunpack.c.h.b16 %v1368
        %v2919 = vunpack.c.l.b16 %v1369
        %v2920 = vunpack.c.h.b16 %v1369
        %v2921 = vunpack.c.l.b16 %v1370
        %v2922 = vunpack.c.h.b16 %v1370
        %v2923 = vunpack.c.l.b16 %v1371
        %v2924 = vunpack.c.h.b16 %v1371
        %v2925 = vunpack.c.l.b16 %v1372
        %v2926 = vunpack.c.h.b16 %v1372
        %v2927 = vunpack.c.l.b16 %v1373
        %v2928 = vunpack.c.h.b16 %v1373
        %v2929 = vunpack.c.l.b16 %v1374
        %v2930 = vunpack.c.h.b16 %v1374
        %v2931 = vunpack.c.l.b16 %v1375
        %v2932 = vunpack.c.h.b16 %v1375
        %v2933 = vunpack.c.l.b16 %v1376
        %v2934 = vunpack.c.h.b16 %v1376
        %v2935 = vunpack.c.l.b16 %v1377
        %v2936 = vunpack.c.h.b16 %v1377
        %v2937 = vunpack.c.l.b16 %v1378
        %v2938 = vunpack.c.h.b16 %v1378
        %v2939 = vunpack.c.l.b16 %v1379
        %v2940 = vunpack.c.h.b16 %v1379
        %v2941 = vunpack.c.l.b16 %v1380
        %v2942 = vunpack.c.h.b16 %v1380
        %v2943 = vunpack.c.l.b16 %v1381
        %v2944 = vunpack.c.h.b16 %v1381
        %v2945 = vunpack.c.l.b16 %v1382
        %v2946 = vunpack.c.h.b16 %v1382
        %v2947 = vunpack.c.l.b16 %v1383
        %v2948 = vunpack.c.h.b16 %v1383
        %v2949 = vunpack.c.l.b16 %v1384
        %v2950 = vunpack.c.h.b16 %v1384
        %v2951 = vunpack.c.l.b16 %v1385
        %v2952 = vunpack.c.h.b16 %v1385
        %v2953 = vunpack.c.l.b16 %v1386
        %v2954 = vunpack.c.h.b16 %v1386
        %v2955 = vunpack.c.l.b16 %v1387
        %v2956 = vunpack.c.h.b16 %v1387
        %v2957 = vunpack.c.l.b16 %v1388
        %v2958 = vunpack.c.h.b16 %v1388
        %v2959 = vunpack.c.l.b16 %v1389
        %v2960 = vunpack.c.h.b16 %v1389
        %v2961 = vunpack.c.l.b16 %v1390
        %v2962 = vunpack.c.h.b16 %v1390
        %v2963 = vunpack.c.l.b16 %v1391
        %v2964 = vunpack.c.h.b16 %v1391
        %v2965 = vunpack.c.l.b16 %v1392
        %v2966 = vunpack.c.h.b16 %v1392
        %v2967 = vunpack.c.l.b16 %v1393
        %v2968 = vunpack.c.h.b16 %v1393
        %v2969 = vunpack.c.l.b16 %v1394
        %v2970 = vunpack.c.h.b16 %v1394
        %v2971 = vunpack.c.l.b16 %v1395
        %v2972 = vunpack.c.h.b16 %v1395
        %v2973 = vunpack.c.l.b16 %v1396
        %v2974 = vunpack.c.h.b16 %v1396
        %v2975 = vunpack.c.l.b16 %v1397
        %v2976 = vunpack.c.h.b16 %v1397
        %v2977 = vunpack.c.l.b16 %v1398
        %v2978 = vunpack.c.h.b16 %v1398
        %v2979 = vunpack.c.l.b16 %v1399
        %v2980 = vunpack.c.h.b16 %v1399
        %v2981 = vunpack.c.l.b16 %v1400
        %v2982 = vunpack.c.h.b16 %v1400
        %v2983 = vunpack.c.l.b16 %v1401
        %v2984 = vunpack.c.h.b16 %v1401
        %v2985 = vunpack.c.l.b16 %v1402
        %v2986 = vunpack.c.h.b16 %v1402
        %v2987 = vunpack.c.l.b16 %v1403
        %v2988 = vunpack.c.h.b16 %v1403
        %v2989 = vunpack.c.l.b16 %v1404
        %v2990 = vunpack.c.h.b16 %v1404
        %v2991 = vunpack.c.l.b16 %v1405
        %v2992 = vunpack.c.h.b16 %v1405
        %v2993 = vunpack.c.l.b16 %v1406
        %v2994 = vunpack.c.h.b16 %v1406
        %v2995 = vunpack.c.l.b16 %v1407
        %v2996 = vunpack.c.h.b16 %v1407
        %v2997 = vunpack.c.l.b16 %v1408
        %v2998 = vunpack.c.h.b16 %v1408
        %v2999 = vunpack.c.l.b16 %v1409
        %v3000 = vunpack.c.h.b16 %v1409
        %v3001 = vunpack.c.l.b16 %v1410
        %v3002 = vunpack.c.h.b16 %v1410
        %v3003 = vunpack.c.l.b16 %v1411
        %v3004 = vunpack.c.h.b16 %v1411
        %v3005 = vunpack.c.l.b16 %v1412
        %v3006 = vunpack.c.h.b16 %v1412
        %v3007 = vunpack.c.l.b16 %v1413
        %v3008 = vunpack.c.h.b16 %v1413
        %v3009 = vunpack.c.l.b16 %v1414
        %v3010 = vunpack.c.h.b16 %v1414
        %v3011 = vunpack.c.l.b16 %v1415
        %v3012 = vunpack.c.h.b16 %v1415
        %v3013 = vunpack.c.l.b16 %v1416
        %v3014 = vunpack.c.h.b16 %v1416
        %v3015 = vunpack.c.l.b16 %v1417
        %v3016 = vunpack.c.h.b16 %v1417
        %v3017 = vunpack.c.l.b16 %v1418
        %v3018 = vunpack.c.h.b16 %v1418
        %v3019 = vunpack.c.l.b16 %v1419
        %v3020 = vunpack.c.h.b16 %v1419
        %v3021 = vunpack.c.l.b16 %v1420
        %v3022 = vunpack.c.h.b16 %v1420
        %v3023 = vunpack.c.l.b16 %v1421
        %v3024 = vunpack.c.h.b16 %v1421
        %v3025 = vunpack.c.l.b16 %v1422
        %v3026 = vunpack.c.h.b16 %v1422
        %v3027 = vunpack.c.l.b16 %v1423
        %v3028 = vunpack.c.h.b16 %v1423
        %v3029 = vunpack.c.l.b16 %v1424
        %v3030 = vunpack.c.h.b16 %v1424
        %v3031 = vunpack.c.l.b16 %v1425
        %v3032 = vunpack.c.h.b16 %v1425
        %v3033 = vunpack.c.l.b16 %v1426
        %v3034 = vunpack.c.h.b16 %v1426
        %v3035 = vunpack.c.l.b16 %v1427
        %v3036 = vunpack.c.h.b16 %v1427
        %v3037 = vunpack.c.l.b16 %v1428
        %v3038 = vunpack.c.h.b16 %v1428
        %v3039 = vunpack.c.l.b16 %v1429
        %v3040 = vunpack.c.h.b16 %v1429
        %v3041 = vunpack.c.l.b16 %v1430
        %v3042 = vunpack.c.h.b16 %v1430
        %v3043 = vunpack.c.l.b16 %v1431
        %v3044 = vunpack.c.h.b16 %v1431
        %v3045 = vunpack.c.l.b16 %v1432
        %v3046 = vunpack.c.h.b16 %v1432
        %v3047 = vunpack.c.l.b16 %v1433
        %v3048 = vunpack.c.h.b16 %v1433
        %v3049 = vunpack.c.l.b16 %v1434
        %v3050 = vunpack.c.h.b16 %v1434
        %v3051 = vunpack.c.l.b16 %v1435
        %v3052 = vunpack.c.h.b16 %v1435
        %v3053 = vunpack.c.l.b16 %v1436
        %v3054 = vunpack.c.h.b16 %v1436
        %v3055 = vunpack.c.l.b16 %v1437
        %v3056 = vunpack.c.h.b16 %v1437
        %v3057 = vunpack.c.l.b16 %v1438
        %v3058 = vunpack.c.h.b16 %v1438
        %v3059 = vunpack.c.l.b16 %v1439
        %v3060 = vunpack.c.h.b16 %v1439
        %v3061 = vunpack.c.l.b16 %v1440
        %v3062 = vunpack.c.h.b16 %v1440
        %v3063 = vunpack.c.l.b16 %v1441
        %v3064 = vunpack.c.h.b16 %v1441
        %v3065 = vunpack.c.l.b16 %v1442
        %v3066 = vunpack.c.h.b16 %v1442
        %v3067 = vunpack.c.l.b16 %v1443
        %v3068 = vunpack.c.h.b16 %v1443
        %v3069 = vunpack.c.l.b16 %v1444
        %v3070 = vunpack.c.h.b16 %v1444
        %v3071 = vunpack.c.l.b16 %v1445
        %v3072 = vunpack.c.h.b16 %v1445
        %v3073 = vunpack.c.l.b16 %v1446
        %v3074 = vunpack.c.h.b16 %v1446
        %v3075 = vunpack.c.l.b16 %v1447
        %v3076 = vunpack.c.h.b16 %v1447
        %v3077 = vunpack.c.l.b16 %v1448
        %v3078 = vunpack.c.h.b16 %v1448
        %v3079 = vunpack.c.l.b16 %v1449
        %v3080 = vunpack.c.h.b16 %v1449
        %v3081 = vunpack.c.l.b16 %v1450
        %v3082 = vunpack.c.h.b16 %v1450
        %v3083 = vunpack.c.l.b16 %v1451
        %v3084 = vunpack.c.h.b16 %v1451
        %v3085 = vunpack.c.l.b16 %v1452
        %v3086 = vunpack.c.h.b16 %v1452
        %v3087 = vunpack.c.l.b16 %v1453
        %v3088 = vunpack.c.h.b16 %v1453
        %v3089 = vunpack.c.l.b16 %v1454
        %v3090 = vunpack.c.h.b16 %v1454
        %v3091 = vunpack.c.l.b16 %v1455
        %v3092 = vunpack.c.h.b16 %v1455
        %v3093 = vunpack.c.l.b16 %v1456
        %v3094 = vunpack.c.h.b16 %v1456
        %v3095 = vunpack.c.l.b16 %v1457
        %v3096 = vunpack.c.h.b16 %v1457
        %v3097 = vunpack.c.l.b16 %v1458
        %v3098 = vunpack.c.h.b16 %v1458
        %v3099 = vunpack.c.l.b16 %v1459
        %v3100 = vunpack.c.h.b16 %v1459
        %v3101 = vunpack.c.l.b16 %v1460
        %v3102 = vunpack.c.h.b16 %v1460
        %v3103 = vunpack.c.l.b16 %v1461
        %v3104 = vunpack.c.h.b16 %v1461
        %v3105 = vunpack.c.l.b16 %v1462
        %v3106 = vunpack.c.h.b16 %v1462
        %v3107 = vunpack.c.l.b16 %v1463
        %v3108 = vunpack.c.h.b16 %v1463
        %v3109 = vunpack.c.l.b16 %v1464
        %v3110 = vunpack.c.h.b16 %v1464
        %v3111 = vunpack.c.l.b16 %v1465
        %v3112 = vunpack.c.h.b16 %v1465
        %v3113 = vunpack.c.l.b16 %v1466
        %v3114 = vunpack.c.h.b16 %v1466
        %v3115 = vunpack.c.l.b16 %v1467
        %v3116 = vunpack.c.h.b16 %v1467
        %v3117 = vunpack.c.l.b16 %v1468
        %v3118 = vunpack.c.h.b16 %v1468
        %v3119 = vunpack.c.l.b16 %v1469
        %v3120 = vunpack.c.h.b16 %v1469
        %v3121 = vunpack.c.l.b16 %v1470
        %v3122 = vunpack.c.h.b16 %v1470
        %v3123 = vunpack.c.l.b16 %v1471
        %v3124 = vunpack.c.h.b16 %v1471
        %v3125 = vunpack.c.l.b16 %v1472
        %v3126 = vunpack.c.h.b16 %v1472
        %v3127 = vunpack.c.l.b16 %v1473
        %v3128 = vunpack.c.h.b16 %v1473
        %v3129 = vunpack.c.l.b16 %v1474
        %v3130 = vunpack.c.h.b16 %v1474
        %v3131 = vunpack.c.l.b16 %v1475
        %v3132 = vunpack.c.h.b16 %v1475
        %v3133 = vunpack.c.l.b16 %v1476
        %v3134 = vunpack.c.h.b16 %v1476
        %v3135 = vunpack.c.l.b16 %v1477
        %v3136 = vunpack.c.h.b16 %v1477
        %v3137 = vunpack.c.l.b16 %v1478
        %v3138 = vunpack.c.h.b16 %v1478
        %v3139 = vunpack.c.l.b16 %v1479
        %v3140 = vunpack.c.h.b16 %v1479
        %v3141 = vunpack.c.l.b16 %v1480
        %v3142 = vunpack.c.h.b16 %v1480
        %v3143 = vunpack.c.l.b16 %v1481
        %v3144 = vunpack.c.h.b16 %v1481
        %v3145 = vunpack.c.l.b16 %v1482
        %v3146 = vunpack.c.h.b16 %v1482
        %v3147 = vunpack.c.l.b16 %v1483
        %v3148 = vunpack.c.h.b16 %v1483
        %v3149 = vunpack.c.l.b16 %v1484
        %v3150 = vunpack.c.h.b16 %v1484
        %v3151 = vunpack.c.l.b16 %v1485
        %v3152 = vunpack.c.h.b16 %v1485
        %v3153 = vunpack.c.l.b16 %v1486
        %v3154 = vunpack.c.h.b16 %v1486
        %v3155 = vunpack.c.l.b16 %v1487
        %v3156 = vunpack.c.h.b16 %v1487
        %v3157 = vunpack.c.l.b16 %v1488
        %v3158 = vunpack.c.h.b16 %v1488
        %v3159 = vunpack.c.l.b16 %v1489
        %v3160 = vunpack.c.h.b16 %v1489
        %v3161 = vpack.c.b16 %v2141, %v2137
        %v3162 = vpack.c.b16 %v2142, %v2138
        %v3163 = vpack.c.b16 %v2143, %v2139
        %v3164 = vpack.c.b16 %v2144, %v2140
        %v3165 = vpack.c.b16 %v2149, %v2145
        %v3166 = vpack.c.b16 %v2150, %v2146
        %v3167 = vpack.c.b16 %v2151, %v2147
        %v3168 = vpack.c.b16 %v2152, %v2148
        %v3169 = vpack.c.b16 %v2157, %v2153
        %v3170 = vpack.c.b16 %v2158, %v2154
        %v3171 = vpack.c.b16 %v2159, %v2155
        %v3172 = vpack.c.b16 %v2160, %v2156
        %v3173 = vpack.c.b16 %v2165, %v2161
        %v3174 = vpack.c.b16 %v2166, %v2162
        %v3175 = vpack.c.b16 %v2167, %v2163
        %v3176 = vpack.c.b16 %v2168, %v2164
        %v3177 = vpack.c.b16 %v2173, %v2169
        %v3178 = vpack.c.b16 %v2174, %v2170
        %v3179 = vpack.c.b16 %v2175, %v2171
        %v3180 = vpack.c.b16 %v2176, %v2172
        %v3181 = vpack.c.b16 %v2181, %v2177
        %v3182 = vpack.c.b16 %v2182, %v2178
        %v3183 = vpack.c.b16 %v2183, %v2179
        %v3184 = vpack.c.b16 %v2184, %v2180
        %v3185 = vpack.c.b16 %v2189, %v2185
        %v3186 = vpack.c.b16 %v2190, %v2186
        %v3187 = vpack.c.b16 %v2191, %v2187
        %v3188 = vpack.c.b16 %v2192, %v2188
        %v3189 = vpack.c.b16 %v2197, %v2193
        %v3190 = vpack.c.b16 %v2198, %v2194
        %v3191 = vpack.c.b16 %v2199, %v2195
        %v3192 = vpack.c.b16 %v2200, %v2196
        %v3193 = vpack.c.b16 %v2205, %v2201
        %v3194 = vpack.c.b16 %v2206, %v2202
        %v3195 = vpack.c.b16 %v2207, %v2203
        %v3196 = vpack.c.b16 %v2208, %v2204
        %v3197 = vpack.c.b16 %v2213, %v2209
        %v3198 = vpack.c.b16 %v2214, %v2210
        %v3199 = vpack.c.b16 %v2215, %v2211
        %v3200 = vpack.c.b16 %v2216, %v2212
        %v3201 = vpack.c.b16 %v2221, %v2217
        %v3202 = vpack.c.b16 %v2222, %v2218
        %v3203 = vpack.c.b16 %v2223, %v2219
        %v3204 = vpack.c.b16 %v2224, %v2220
        %v3205 = vpack.c.b16 %v2229, %v2225
        %v3206 = vpack.c.b16 %v2230, %v2226
        %v3207 = vpack.c.b16 %v2231, %v2227
        %v3208 = vpack.c.b16 %v2232, %v2228
        %v3209 = vpack.c.b16 %v2237, %v2233
        %v3210 = vpack.c.b16 %v2238, %v2234
        %v3211 = vpack.c.b16 %v2239, %v2235
        %v3212 = vpack.c.b16 %v2240, %v2236
        %v3213 = vpack.c.b16 %v2245, %v2241
        %v3214 = vpack.c.b16 %v2246, %v2242
        %v3215 = vpack.c.b16 %v2247, %v2243
        %v3216 = vpack.c.b16 %v2248, %v2244
        %v3217 = vpack.c.b16 %v2253, %v2249
        %v3218 = vpack.c.b16 %v2254, %v2250
        %v3219 = vpack.c.b16 %v2255, %v2251
        %v3220 = vpack.c.b16 %v2256, %v2252
        %v3221 = vpack.c.b16 %v2261, %v2257
        %v3222 = vpack.c.b16 %v2262, %v2258
        %v3223 = vpack.c.b16 %v2263, %v2259
        %v3224 = vpack.c.b16 %v2264, %v2260
        %v3225 = vpack.c.b16 %v2269, %v2265
        %v3226 = vpack.c.b16 %v2270, %v2266
        %v3227 = vpack.c.b16 %v2271, %v2267
        %v3228 = vpack.c.b16 %v2272, %v2268
        %v3229 = vpack.c.b16 %v2277, %v2273
        %v3230 = vpack.c.b16 %v2278, %v2274
        %v3231 = vpack.c.b16 %v2279, %v2275
        %v3232 = vpack.c.b16 %v2280, %v2276
        %v3233 = vpack.c.b16 %v2285, %v2281
        %v3234 = vpack.c.b16 %v2286, %v2282
        %v3235 = vpack.c.b16 %v2287, %v2283
        %v3236 = vpack.c.b16 %v2288, %v2284
        %v3237 = vpack.c.b16 %v2293, %v2289
        %v3238 = vpack.c.b16 %v2294, %v2290
        %v3239 = vpack.c.b16 %v2295, %v2291
        %v3240 = vpack.c.b16 %v2296, %v2292
        %v3241 = vpack.c.b16 %v2301, %v2297
        %v3242 = vpack.c.b16 %v2302, %v2298
        %v3243 = vpack.c.b16 %v2303, %v2299
        %v3244 = vpack.c.b16 %v2304, %v2300
        %v3245 = vpack.c.b16 %v2309, %v2305
        %v3246 = vpack.c.b16 %v2310, %v2306
        %v3247 = vpack.c.b16 %v2311, %v2307
        %v3248 = vpack.c.b16 %v2312, %v2308
        %v3249 = vpack.c.b16 %v2317, %v2313
        %v3250 = vpack.c.b16 %v2318, %v2314
        %v3251 = vpack.c.b16 %v2319, %v2315
        %v3252 = vpack.c.b16 %v2320, %v2316
        %v3253 = vpack.c.b16 %v2325, %v2321
        %v3254 = vpack.c.b16 %v2326, %v2322
        %v3255 = vpack.c.b16 %v2327, %v2323
        %v3256 = vpack.c.b16 %v2328, %v2324
        %v3257 = vpack.c.b16 %v2333, %v2329
        %v3258 = vpack.c.b16 %v2334, %v2330
        %v3259 = vpack.c.b16 %v2335, %v2331
        %v3260 = vpack.c.b16 %v2336, %v2332
        %v3261 = vpack.c.b16 %v2341, %v2337
        %v3262 = vpack.c.b16 %v2342, %v2338
        %v3263 = vpack.c.b16 %v2343, %v2339
        %v3264 = vpack.c.b16 %v2344, %v2340
        %v3265 = vpack.c.b16 %v2349, %v2345
        %v3266 = vpack.c.b16 %v2350, %v2346
        %v3267 = vpack.c.b16 %v2351, %v2347
        %v3268 = vpack.c.b16 %v2352, %v2348
        %v3269 = vpack.c.b16 %v2357, %v2353
        %v3270 = vpack.c.b16 %v2358, %v2354
        %v3271 = vpack.c.b16 %v2359, %v2355
        %v3272 = vpack.c.b16 %v2360, %v2356
        %v3273 = vpack.c.b16 %v2365, %v2361
        %v3274 = vpack.c.b16 %v2366, %v2362
        %v3275 = vpack.c.b16 %v2367, %v2363
        %v3276 = vpack.c.b16 %v2368, %v2364
        %v3277 = vpack.c.b16 %v2373, %v2369
        %v3278 = vpack.c.b16 %v2374, %v2370
        %v3279 = vpack.c.b16 %v2375, %v2371
        %v3280 = vpack.c.b16 %v2376, %v2372
        %v3281 = vpack.c.b16 %v2381, %v2377
        %v3282 = vpack.c.b16 %v2382, %v2378
        %v3283 = vpack.c.b16 %v2383, %v2379
        %v3284 = vpack.c.b16 %v2384, %v2380
        %v3285 = vpack.c.b16 %v2389, %v2385
        %v3286 = vpack.c.b16 %v2390, %v2386
        %v3287 = vpack.c.b16 %v2391, %v2387
        %v3288 = vpack.c.b16 %v2392, %v2388
        %v3289 = vpack.c.b16 %v2397, %v2393
        %v3290 = vpack.c.b16 %v2398, %v2394
        %v3291 = vpack.c.b16 %v2399, %v2395
        %v3292 = vpack.c.b16 %v2400, %v2396
        %v3293 = vpack.c.b16 %v2405, %v2401
        %v3294 = vpack.c.b16 %v2406, %v2402
        %v3295 = vpack.c.b16 %v2407, %v2403
        %v3296 = vpack.c.b16 %v2408, %v2404
        %v3297 = vpack.c.b16 %v2413, %v2409
        %v3298 = vpack.c.b16 %v2414, %v2410
        %v3299 = vpack.c.b16 %v2415, %v2411
        %v3300 = vpack.c.b16 %v2416, %v2412
        %v3301 = vpack.c.b16 %v2421, %v2417
        %v3302 = vpack.c.b16 %v2422, %v2418
        %v3303 = vpack.c.b16 %v2423, %v2419
        %v3304 = vpack.c.b16 %v2424, %v2420
        %v3305 = vpack.c.b16 %v2429, %v2425
        %v3306 = vpack.c.b16 %v2430, %v2426
        %v3307 = vpack.c.b16 %v2431, %v2427
        %v3308 = vpack.c.b16 %v2432, %v2428
        %v3309 = vpack.c.b16 %v2437, %v2433
        %v3310 = vpack.c.b16 %v2438, %v2434
        %v3311 = vpack.c.b16 %v2439, %v2435
        %v3312 = vpack.c.b16 %v2440, %v2436
        %v3313 = vpack.c.b16 %v2445, %v2441
        %v3314 = vpack.c.b16 %v2446, %v2442
        %v3315 = vpack.c.b16 %v2447, %v2443
        %v3316 = vpack.c.b16 %v2448, %v2444
        %v3317 = vpack.c.b16 %v2453, %v2449
        %v3318 = vpack.c.b16 %v2454, %v2450
        %v3319 = vpack.c.b16 %v2455, %v2451
        %v3320 = vpack.c.b16 %v2456, %v2452
        %v3321 = vpack.c.b16 %v2461, %v2457
        %v3322 = vpack.c.b16 %v2462, %v2458
        %v3323 = vpack.c.b16 %v2463, %v2459
        %v3324 = vpack.c.b16 %v2464, %v2460
        %v3325 = vpack.c.b16 %v2469, %v2465
        %v3326 = vpack.c.b16 %v2470, %v2466
        %v3327 = vpack.c.b16 %v2471, %v2467
        %v3328 = vpack.c.b16 %v2472, %v2468
        %v3329 = vpack.c.b16 %v2477, %v2473
        %v3330 = vpack.c.b16 %v2478, %v2474
        %v3331 = vpack.c.b16 %v2479, %v2475
        %v3332 = vpack.c.b16 %v2480, %v2476
        %v3333 = vpack.c.b16 %v2485, %v2481
        %v3334 = vpack.c.b16 %v2486, %v2482
        %v3335 = vpack.c.b16 %v2487, %v2483
        %v3336 = vpack.c.b16 %v2488, %v2484
        %v3337 = vpack.c.b16 %v2493, %v2489
        %v3338 = vpack.c.b16 %v2494, %v2490
        %v3339 = vpack.c.b16 %v2495, %v2491
        %v3340 = vpack.c.b16 %v2496, %v2492
        %v3341 = vpack.c.b16 %v2501, %v2497
        %v3342 = vpack.c.b16 %v2502, %v2498
        %v3343 = vpack.c.b16 %v2503, %v2499
        %v3344 = vpack.c.b16 %v2504, %v2500
        %v3345 = vpack.c.b16 %v2509, %v2505
        %v3346 = vpack.c.b16 %v2510, %v2506
        %v3347 = vpack.c.b16 %v2511, %v2507
        %v3348 = vpack.c.b16 %v2512, %v2508
        %v3349 = vpack.c.b16 %v2517, %v2513
        %v3350 = vpack.c.b16 %v2518, %v2514
        %v3351 = vpack.c.b16 %v2519, %v2515
        %v3352 = vpack.c.b16 %v2520, %v2516
        %v3353 = vpack.c.b16 %v2525, %v2521
        %v3354 = vpack.c.b16 %v2526, %v2522
        %v3355 = vpack.c.b16 %v2527, %v2523
        %v3356 = vpack.c.b16 %v2528, %v2524
        %v3357 = vpack.c.b16 %v2533, %v2529
        %v3358 = vpack.c.b16 %v2534, %v2530
        %v3359 = vpack.c.b16 %v2535, %v2531
        %v3360 = vpack.c.b16 %v2536, %v2532
        %v3361 = vpack.c.b16 %v2541, %v2537
        %v3362 = vpack.c.b16 %v2542, %v2538
        %v3363 = vpack.c.b16 %v2543, %v2539
        %v3364 = vpack.c.b16 %v2544, %v2540
        %v3365 = vpack.c.b16 %v2549, %v2545
        %v3366 = vpack.c.b16 %v2550, %v2546
        %v3367 = vpack.c.b16 %v2551, %v2547
        %v3368 = vpack.c.b16 %v2552, %v2548
        %v3369 = vpack.c.b16 %v2557, %v2553
        %v3370 = vpack.c.b16 %v2558, %v2554
        %v3371 = vpack.c.b16 %v2559, %v2555
        %v3372 = vpack.c.b16 %v2560, %v2556
        %v3373 = vpack.c.b16 %v2565, %v2561
        %v3374 = vpack.c.b16 %v2566, %v2562
        %v3375 = vpack.c.b16 %v2567, %v2563
        %v3376 = vpack.c.b16 %v2568, %v2564
        %v3377 = vpack.c.b16 %v2573, %v2569
        %v3378 = vpack.c.b16 %v2574, %v2570
        %v3379 = vpack.c.b16 %v2575, %v2571
        %v3380 = vpack.c.b16 %v2576, %v2572
        %v3381 = vpack.c.b16 %v2581, %v2577
        %v3382 = vpack.c.b16 %v2582, %v2578
        %v3383 = vpack.c.b16 %v2583, %v2579
        %v3384 = vpack.c.b16 %v2584, %v2580
        %v3385 = vpack.c.b16 %v2589, %v2585
        %v3386 = vpack.c.b16 %v2590, %v2586
        %v3387 = vpack.c.b16 %v2591, %v2587
        %v3388 = vpack.c.b16 %v2592, %v2588
        %v3389 = vpack.c.b16 %v2597, %v2593
        %v3390 = vpack.c.b16 %v2598, %v2594
        %v3391 = vpack.c.b16 %v2599, %v2595
        %v3392 = vpack.c.b16 %v2600, %v2596
        %v3393 = vpack.c.b16 %v2605, %v2601
        %v3394 = vpack.c.b16 %v2606, %v2602
        %v3395 = vpack.c.b16 %v2607, %v2603
        %v3396 = vpack.c.b16 %v2608, %v2604
        %v3397 = vpack.c.b16 %v2613, %v2609
        %v3398 = vpack.c.b16 %v2614, %v2610
        %v3399 = vpack.c.b16 %v2615, %v2611
        %v3400 = vpack.c.b16 %v2616, %v2612
        %v3401 = vpack.c.b16 %v2621, %v2617
        %v3402 = vpack.c.b16 %v2622, %v2618
        %v3403 = vpack.c.b16 %v2623, %v2619
        %v3404 = vpack.c.b16 %v2624, %v2620
        %v3405 = vpack.c.b16 %v2629, %v2625
        %v3406 = vpack.c.b16 %v2630, %v2626
        %v3407 = vpack.c.b16 %v2631, %v2627
        %v3408 = vpack.c.b16 %v2632, %v2628
        %v3409 = vpack.c.b16 %v2637, %v2633
        %v3410 = vpack.c.b16 %v2638, %v2634
        %v3411 = vpack.c.b16 %v2639, %v2635
        %v3412 = vpack.c.b16 %v2640, %v2636
        %v3413 = vpack.c.b16 %v2645, %v2641
        %v3414 = vpack.c.b16 %v2646, %v2642
        %v3415 = vpack.c.b16 %v2647, %v2643
        %v3416 = vpack.c.b16 %v2648, %v2644
        %v3417 = vpack.c.b16 %v2653, %v2649
        %v3418 = vpack.c.b16 %v2654, %v2650
        %v3419 = vpack.c.b16 %v2655, %v2651
        %v3420 = vpack.c.b16 %v2656, %v2652
        %v3421 = vpack.c.b16 %v2661, %v2657
        %v3422 = vpack.c.b16 %v2662, %v2658
        %v3423 = vpack.c.b16 %v2663, %v2659
        %v3424 = vpack.c.b16 %v2664, %v2660
        %v3425 = vpack.c.b16 %v2669, %v2665
        %v3426 = vpack.c.b16 %v2670, %v2666
        %v3427 = vpack.c.b16 %v2671, %v2667
        %v3428 = vpack.c.b16 %v2672, %v2668
        %v3429 = vpack.c.b16 %v2677, %v2673
        %v3430 = vpack.c.b16 %v2678, %v2674
        %v3431 = vpack.c.b16 %v2679, %v2675
        %v3432 = vpack.c.b16 %v2680, %v2676
        %v3433 = vpack.c.b16 %v2685, %v2681
        %v3434 = vpack.c.b16 %v2686, %v2682
        %v3435 = vpack.c.b16 %v2687, %v2683
        %v3436 = vpack.c.b16 %v2688, %v2684
        %v3437 = vpack.c.b16 %v2693, %v2689
        %v3438 = vpack.c.b16 %v2694, %v2690
        %v3439 = vpack.c.b16 %v2695, %v2691
        %v3440 = vpack.c.b16 %v2696, %v2692
        %v3441 = vpack.c.b16 %v2701, %v2697
        %v3442 = vpack.c.b16 %v2702, %v2698
        %v3443 = vpack.c.b16 %v2703, %v2699
        %v3444 = vpack.c.b16 %v2704, %v2700
        %v3445 = vpack.c.b16 %v2709, %v2705
        %v3446 = vpack.c.b16 %v2710, %v2706
        %v3447 = vpack.c.b16 %v2711, %v2707
        %v3448 = vpack.c.b16 %v2712, %v2708
        %v3449 = vpack.c.b16 %v2717, %v2713
        %v3450 = vpack.c.b16 %v2718, %v2714
        %v3451 = vpack.c.b16 %v2719, %v2715
        %v3452 = vpack.c.b16 %v2720, %v2716
        %v3453 = vpack.c.b16 %v2725, %v2721
        %v3454 = vpack.c.b16 %v2726, %v2722
        %v3455 = vpack.c.b16 %v2727, %v2723
        %v3456 = vpack.c.b16 %v2728, %v2724
        %v3457 = vpack.c.b16 %v2733, %v2729
        %v3458 = vpack.c.b16 %v2734, %v2730
        %v3459 = vpack.c.b16 %v2735, %v2731
        %v3460 = vpack.c.b16 %v2736, %v2732
        %v3461 = vpack.c.b16 %v2741, %v2737
        %v3462 = vpack.c.b16 %v2742, %v2738
        %v3463 = vpack.c.b16 %v2743, %v2739
        %v3464 = vpack.c.b16 %v2744, %v2740
        %v3465 = vpack.c.b16 %v2749, %v2745
        %v3466 = vpack.c.b16 %v2750, %v2746
        %v3467 = vpack.c.b16 %v2751, %v2747
        %v3468 = vpack.c.b16 %v2752, %v2748
        %v3469 = vpack.c.b16 %v2757, %v2753
        %v3470 = vpack.c.b16 %v2758, %v2754
        %v3471 = vpack.c.b16 %v2759, %v2755
        %v3472 = vpack.c.b16 %v2760, %v2756
        %v3473 = vpack.c.b16 %v2765, %v2761
        %v3474 = vpack.c.b16 %v2766, %v2762
        %v3475 = vpack.c.b16 %v2767, %v2763
        %v3476 = vpack.c.b16 %v2768, %v2764
        %v3477 = vpack.c.b16 %v2773, %v2769
        %v3478 = vpack.c.b16 %v2774, %v2770
        %v3479 = vpack.c.b16 %v2775, %v2771
        %v3480 = vpack.c.b16 %v2776, %v2772
        %v3481 = vpack.c.b16 %v2781, %v2777
        %v3482 = vpack.c.b16 %v2782, %v2778
        %v3483 = vpack.c.b16 %v2783, %v2779
        %v3484 = vpack.c.b16 %v2784, %v2780
        %v3485 = vpack.c.b16 %v2789, %v2785
        %v3486 = vpack.c.b16 %v2790, %v2786
        %v3487 = vpack.c.b16 %v2791, %v2787
        %v3488 = vpack.c.b16 %v2792, %v2788
        %v3489 = vpack.c.b16 %v2797, %v2793
        %v3490 = vpack.c.b16 %v2798, %v2794
        %v3491 = vpack.c.b16 %v2799, %v2795
        %v3492 = vpack.c.b16 %v2800, %v2796
        %v3493 = vpack.c.b16 %v2805, %v2801
        %v3494 = vpack.c.b16 %v2806, %v2802
        %v3495 = vpack.c.b16 %v2807, %v2803
        %v3496 = vpack.c.b16 %v2808, %v2804
        %v3497 = vpack.c.b16 %v2813, %v2809
        %v3498 = vpack.c.b16 %v2814, %v2810
        %v3499 = vpack.c.b16 %v2815, %v2811
        %v3500 = vpack.c.b16 %v2816, %v2812
        %v3501 = vpack.c.b16 %v2821, %v2817
        %v3502 = vpack.c.b16 %v2822, %v2818
        %v3503 = vpack.c.b16 %v2823, %v2819
        %v3504 = vpack.c.b16 %v2824, %v2820
        %v3505 = vpack.c.b16 %v2829, %v2825
        %v3506 = vpack.c.b16 %v2830, %v2826
        %v3507 = vpack.c.b16 %v2831, %v2827
        %v3508 = vpack.c.b16 %v2832, %v2828
        %v3509 = vpack.c.b16 %v2837, %v2833
        %v3510 = vpack.c.b16 %v2838, %v2834
        %v3511 = vpack.c.b16 %v2839, %v2835
        %v3512 = vpack.c.b16 %v2840, %v2836
        %v3513 = vpack.c.b16 %v2845, %v2841
        %v3514 = vpack.c.b16 %v2846, %v2842
        %v3515 = vpack.c.b16 %v2847, %v2843
        %v3516 = vpack.c.b16 %v2848, %v2844
        %v3517 = vpack.c.b16 %v2853, %v2849
        %v3518 = vpack.c.b16 %v2854, %v2850
        %v3519 = vpack.c.b16 %v2855, %v2851
        %v3520 = vpack.c.b16 %v2856, %v2852
        %v3521 = vpack.c.b16 %v2861, %v2857
        %v3522 = vpack.c.b16 %v2862, %v2858
        %v3523 = vpack.c.b16 %v2863, %v2859
        %v3524 = vpack.c.b16 %v2864, %v2860
        %v3525 = vpack.c.b16 %v2869, %v2865
        %v3526 = vpack.c.b16 %v2870, %v2866
        %v3527 = vpack.c.b16 %v2871, %v2867
        %v3528 = vpack.c.b16 %v2872, %v2868
        %v3529 = vpack.c.b16 %v2877, %v2873
        %v3530 = vpack.c.b16 %v2878, %v2874
        %v3531 = vpack.c.b16 %v2879, %v2875
        %v3532 = vpack.c.b16 %v2880, %v2876
        %v3533 = vpack.c.b16 %v2885, %v2881
        %v3534 = vpack.c.b16 %v2886, %v2882
        %v3535 = vpack.c.b16 %v2887, %v2883
        %v3536 = vpack.c.b16 %v2888, %v2884
        %v3537 = vpack.c.b16 %v2893, %v2889
        %v3538 = vpack.c.b16 %v2894, %v2890
        %v3539 = vpack.c.b16 %v2895, %v2891
        %v3540 = vpack.c.b16 %v2896, %v2892
        %v3541 = vpack.c.b16 %v2901, %v2897
        %v3542 = vpack.c.b16 %v2902, %v2898
        %v3543 = vpack.c.b16 %v2903, %v2899
        %v3544 = vpack.c.b16 %v2904, %v2900
        %v3545 = vpack.c.b16 %v2909, %v2905
        %v3546 = vpack.c.b16 %v2910, %v2906
        %v3547 = vpack.c.b16 %v2911, %v2907
        %v3548 = vpack.c.b16 %v2912, %v2908
        %v3549 = vpack.c.b16 %v2917, %v2913
        %v3550 = vpack.c.b16 %v2918, %v2914
        %v3551 = vpack.c.b16 %v2919, %v2915
        %v3552 = vpack.c.b16 %v2920, %v2916
        %v3553 = vpack.c.b16 %v2925, %v2921
        %v3554 = vpack.c.b16 %v2926, %v2922
        %v3555 = vpack.c.b16 %v2927, %v2923
        %v3556 = vpack.c.b16 %v2928, %v2924
        %v3557 = vpack.c.b16 %v2933, %v2929
        %v3558 = vpack.c.b16 %v2934, %v2930
        %v3559 = vpack.c.b16 %v2935, %v2931
        %v3560 = vpack.c.b16 %v2936, %v2932
        %v3561 = vpack.c.b16 %v2941, %v2937
        %v3562 = vpack.c.b16 %v2942, %v2938
        %v3563 = vpack.c.b16 %v2943, %v2939
        %v3564 = vpack.c.b16 %v2944, %v2940
        %v3565 = vpack.c.b16 %v2949, %v2945
        %v3566 = vpack.c.b16 %v2950, %v2946
        %v3567 = vpack.c.b16 %v2951, %v2947
        %v3568 = vpack.c.b16 %v2952, %v2948
        %v3569 = vpack.c.b16 %v2957, %v2953
        %v3570 = vpack.c.b16 %v2958, %v2954
        %v3571 = vpack.c.b16 %v2959, %v2955
        %v3572 = vpack.c.b16 %v2960, %v2956
        %v3573 = vpack.c.b16 %v2965, %v2961
        %v3574 = vpack.c.b16 %v2966, %v2962
        %v3575 = vpack.c.b16 %v2967, %v2963
        %v3576 = vpack.c.b16 %v2968, %v2964
        %v3577 = vpack.c.b16 %v2973, %v2969
        %v3578 = vpack.c.b16 %v2974, %v2970
        %v3579 = vpack.c.b16 %v2975, %v2971
        %v3580 = vpack.c.b16 %v2976, %v2972
        %v3581 = vpack.c.b16 %v2981, %v2977
        %v3582 = vpack.c.b16 %v2982, %v2978
        %v3583 = vpack.c.b16 %v2983, %v2979
        %v3584 = vpack.c.b16 %v2984, %v2980
        %v3585 = vpack.c.b16 %v2989, %v2985
        %v3586 = vpack.c.b16 %v2990, %v2986
        %v3587 = vpack.c.b16 %v2991, %v2987
        %v3588 = vpack.c.b16 %v2992, %v2988
        %v3589 = vpack.c.b16 %v2997, %v2993
        %v3590 = vpack.c.b16 %v2998, %v2994
        %v3591 = vpack.c.b16 %v2999, %v2995
        %v3592 = vpack.c.b16 %v3000, %v2996
        %v3593 = vpack.c.b16 %v3005, %v3001
        %v3594 = vpack.c.b16 %v3006, %v3002
        %v3595 = vpack.c.b16 %v3007, %v3003
        %v3596 = vpack.c.b16 %v3008, %v3004
        %v3597 = vpack.c.b16 %v3013, %v3009
        %v3598 = vpack.c.b16 %v3014, %v3010
        %v3599 = vpack.c.b16 %v3015, %v3011
        %v3600 = vpack.c.b16 %v3016, %v3012
        %v3601 = vpack.c.b16 %v3021, %v3017
        %v3602 = vpack.c.b16 %v3022, %v3018
        %v3603 = vpack.c.b16 %v3023, %v3019
        %v3604 = vpack.c.b16 %v3024, %v3020
        %v3605 = vpack.c.b16 %v3029, %v3025
        %v3606 = vpack.c.b16 %v3030, %v3026
        %v3607 = vpack.c.b16 %v3031, %v3027
        %v3608 = vpack.c.b16 %v3032, %v3028
        %v3609 = vpack.c.b16 %v3037, %v3033
        %v3610 = vpack.c.b16 %v3038, %v3034
        %v3611 = vpack.c.b16 %v3039, %v3035
        %v3612 = vpack.c.b16 %v3040, %v3036
        %v3613 = vpack.c.b16 %v3045, %v3041
        %v3614 = vpack.c.b16 %v3046, %v3042
        %v3615 = vpack.c.b16 %v3047, %v3043
        %v3616 = vpack.c.b16 %v3048, %v3044
        %v3617 = vpack.c.b16 %v3053, %v3049
        %v3618 = vpack.c.b16 %v3054, %v3050
        %v3619 = vpack.c.b16 %v3055, %v3051
        %v3620 = vpack.c.b16 %v3056, %v3052
        %v3621 = vpack.c.b16 %v3061, %v3057
        %v3622 = vpack.c.b16 %v3062, %v3058
        %v3623 = vpack.c.b16 %v3063, %v3059
        %v3624 = vpack.c.b16 %v3064, %v3060
        %v3625 = vpack.c.b16 %v3069, %v3065
        %v3626 = vpack.c.b16 %v3070, %v3066
        %v3627 = vpack.c.b16 %v3071, %v3067
        %v3628 = vpack.c.b16 %v3072, %v3068
        %v3629 = vpack.c.b16 %v3077, %v3073
        %v3630 = vpack.c.b16 %v3078, %v3074
        %v3631 = vpack.c.b16 %v3079, %v3075
        %v3632 = vpack.c.b16 %v3080, %v3076
        %v3633 = vpack.c.b16 %v3085, %v3081
        %v3634 = vpack.c.b16 %v3086, %v3082
        %v3635 = vpack.c.b16 %v3087, %v3083
        %v3636 = vpack.c.b16 %v3088, %v3084
        %v3637 = vpack.c.b16 %v3093, %v3089
        %v3638 = vpack.c.b16 %v3094, %v3090
        %v3639 = vpack.c.b16 %v3095, %v3091
        %v3640 = vpack.c.b16 %v3096, %v3092
        %v3641 = vpack.c.b16 %v3101, %v3097
        %v3642 = vpack.c.b16 %v3102, %v3098
        %v3643 = vpack.c.b16 %v3103, %v3099
        %v3644 = vpack.c.b16 %v3104, %v3100
        %v3645 = vpack.c.b16 %v3109, %v3105
        %v3646 = vpack.c.b16 %v3110, %v3106
        %v3647 = vpack.c.b16 %v3111, %v3107
        %v3648 = vpack.c.b16 %v3112, %v3108
        %v3649 = vpack.c.b16 %v3117, %v3113
        %v3650 = vpack.c.b16 %v3118, %v3114
        %v3651 = vpack.c.b16 %v3119, %v3115
        %v3652 = vpack.c.b16 %v3120, %v3116
        %v3653 = vpack.c.b16 %v3125, %v3121
        %v3654 = vpack.c.b16 %v3126, %v3122
        %v3655 = vpack.c.b16 %v3127, %v3123
        %v3656 = vpack.c.b16 %v3128, %v3124
        %v3657 = vpack.c.b16 %v3133, %v3129
        %v3658 = vpack.c.b16 %v3134, %v3130
        %v3659 = vpack.c.b16 %v3135, %v3131
        %v3660 = vpack.c.b16 %v3136, %v3132
        %v3661 = vpack.c.b16 %v3141, %v3137
        %v3662 = vpack.c.b16 %v3142, %v3138
        %v3663 = vpack.c.b16 %v3143, %v3139
        %v3664 = vpack.c.b16 %v3144, %v3140
        %v3665 = vpack.c.b16 %v3149, %v3145
        %v3666 = vpack.c.b16 %v3150, %v3146
        %v3667 = vpack.c.b16 %v3151, %v3147
        %v3668 = vpack.c.b16 %v3152, %v3148
        %v3669 = vpack.c.b16 %v3157, %v3153
        %v3670 = vpack.c.b16 %v3158, %v3154
        %v3671 = vpack.c.b16 %v3159, %v3155
        %v3672 = vpack.c.b16 %v3160, %v3156
        %4185 = vmatprep.subr.bf16.mxu0 %v3190
        %4186 = vmatpush1.bf16.msra.mxu0 %v3189
        %4187 = vmatprep.subr.bf16.mxu0 %v3186
        %4188 = vmatpush1.bf16.msra.mxu0 %v3185
        %4189 = vmatprep.subr.bf16.mxu0 %v3182
        %4190 = vmatpush1.bf16.msra.mxu0 %v3181
        %4191 = vmatprep.subr.bf16.mxu0 %v3178
        %4192 = vmatpush1.bf16.msra.mxu0 %v3177
        %4193 = vmatprep.subr.bf16.mxu0 %v3174
        %4194 = vmatpush1.bf16.msra.mxu0 %v3173
        %4195 = vmatprep.subr.bf16.mxu0 %v3170
        %4196 = vmatpush1.bf16.msra.mxu0 %v3169
        %4197 = vmatprep.subr.bf16.mxu0 %v3166
        %4198 = vmatpush1.bf16.msra.mxu0 %v3165
        %4199 = vmatprep.subr.bf16.mxu0 %v3162
        %4200 = vmatpush1.bf16.msra.mxu0 %v3161
        %4201 = vmatprep.subr.bf16.mxu0 %v3222
        %4202 = vmatpush2.bf16.msra.mxu0 %v3221
        %4203 = vmatprep.subr.bf16.mxu0 %v3218
        %4204 = vmatpush2.bf16.msra.mxu0 %v3217
        %4205 = vmatprep.subr.bf16.mxu0 %v3214
        %4206 = vmatpush2.bf16.msra.mxu0 %v3213
        %4207 = vmatprep.subr.bf16.mxu0 %v3210
        %4208 = vmatpush2.bf16.msra.mxu0 %v3209
        %4209 = vmatprep.subr.bf16.mxu0 %v3206
        %4210 = vmatpush2.bf16.msra.mxu0 %v3205
        %4211 = vmatprep.subr.bf16.mxu0 %v3202
        %4212 = vmatpush2.bf16.msra.mxu0 %v3201
        %4213 = vmatprep.subr.bf16.mxu0 %v3198
        %4214 = vmatpush2.bf16.msra.mxu0 %v3197
        %4215 = vmatprep.subr.bf16.mxu0 %v3194
        %4216 = vmatpush2.bf16.msra.mxu0 %v3193
        %4217 = vmatprep.mubr.bf16.mxu0 %v1594
        %4218 = vmatmul.mubr.bf16.gmra.mxu0 %v1593
        %v4219 = vpop.f32.mrf.mxu0
        %v4220 = vadd.f32 %v1495, %v4219
        %v4221 = vpop.f32.mrf.mxu0
        %v4222 = vadd.f32 %v1499, %v4221
        %v4223 = vpop.f32.mrf.mxu0
        %v4224 = vpop.f32.mrf.mxu0
        %4225 = vdwg.mxu0
        %4226 = vmatprep.subr.bf16.mxu0 %v3254
        %4227 = vmatpush1.bf16.msra.mxu0 %v3253
        %4228 = vmatprep.subr.bf16.mxu0 %v3250
        %4229 = vmatpush1.bf16.msra.mxu0 %v3249
        %4230 = vmatprep.subr.bf16.mxu0 %v3246
        %4231 = vmatpush1.bf16.msra.mxu0 %v3245
        %4232 = vmatprep.subr.bf16.mxu0 %v3242
        %4233 = vmatpush1.bf16.msra.mxu0 %v3241
        %4234 = vmatprep.subr.bf16.mxu0 %v3238
        %4235 = vmatpush1.bf16.msra.mxu0 %v3237
        %4236 = vmatprep.subr.bf16.mxu0 %v3234
        %4237 = vmatpush1.bf16.msra.mxu0 %v3233
        %4238 = vmatprep.subr.bf16.mxu0 %v3230
        %4239 = vmatpush1.bf16.msra.mxu0 %v3229
        %4240 = vmatprep.subr.bf16.mxu0 %v3226
        %4241 = vmatpush1.bf16.msra.mxu0 %v3225
        %4242 = vmatprep.subr.bf16.mxu0 %v3286
        %4243 = vmatpush2.bf16.msra.mxu0 %v3285
        %4244 = vmatprep.subr.bf16.mxu0 %v3282
        %4245 = vmatpush2.bf16.msra.mxu0 %v3281
        %4246 = vmatprep.subr.bf16.mxu0 %v3278
        %4247 = vmatpush2.bf16.msra.mxu0 %v3277
        %4248 = vmatprep.subr.bf16.mxu0 %v3274
        %4249 = vmatpush2.bf16.msra.mxu0 %v3273
        %4250 = vmatprep.subr.bf16.mxu0 %v3270
        %4251 = vmatpush2.bf16.msra.mxu0 %v3269
        %4252 = vmatprep.subr.bf16.mxu0 %v3266
        %4253 = vmatpush2.bf16.msra.mxu0 %v3265
        %4254 = vmatprep.subr.bf16.mxu0 %v3262
        %4255 = vmatpush2.bf16.msra.mxu0 %v3261
        %4256 = vmatprep.subr.bf16.mxu0 %v3258
        %4257 = vmatpush2.bf16.msra.mxu0 %v3257
        %4258 = vmatprep.mubr.bf16.mxu0 %v1596
        %4259 = vmatmul.mubr.bf16.gmra.mxu0 %v1595
        %v4260 = vpop.f32.mrf.mxu0
        %v4261 = vadd.f32 %v4220, %v4260
        %v4262 = vpop.f32.mrf.mxu0
        %v4263 = vadd.f32 %v4222, %v4262
        %v4264 = vpop.f32.mrf.mxu0
        %v4265 = vpop.f32.mrf.mxu0
        %4266 = vdwg.mxu0
        %4267 = vmatprep.subr.bf16.mxu0 %v3318
        %4268 = vmatpush1.bf16.msra.mxu0 %v3317
        %4269 = vmatprep.subr.bf16.mxu0 %v3314
        %4270 = vmatpush1.bf16.msra.mxu0 %v3313
        %4271 = vmatprep.subr.bf16.mxu0 %v3310
        %4272 = vmatpush1.bf16.msra.mxu0 %v3309
        %4273 = vmatprep.subr.bf16.mxu0 %v3306
        %4274 = vmatpush1.bf16.msra.mxu0 %v3305
        %4275 = vmatprep.subr.bf16.mxu0 %v3302
        %4276 = vmatpush1.bf16.msra.mxu0 %v3301
        %4277 = vmatprep.subr.bf16.mxu0 %v3298
        %4278 = vmatpush1.bf16.msra.mxu0 %v3297
        %4279 = vmatprep.subr.bf16.mxu0 %v3294
        %4280 = vmatpush1.bf16.msra.mxu0 %v3293
        %4281 = vmatprep.subr.bf16.mxu0 %v3290
        %4282 = vmatpush1.bf16.msra.mxu0 %v3289
        %4283 = vmatprep.subr.bf16.mxu0 %v3350
        %4284 = vmatpush2.bf16.msra.mxu0 %v3349
        %4285 = vmatprep.subr.bf16.mxu0 %v3346
        %4286 = vmatpush2.bf16.msra.mxu0 %v3345
        %4287 = vmatprep.subr.bf16.mxu0 %v3342
        %4288 = vmatpush2.bf16.msra.mxu0 %v3341
        %4289 = vmatprep.subr.bf16.mxu0 %v3338
        %4290 = vmatpush2.bf16.msra.mxu0 %v3337
        %4291 = vmatprep.subr.bf16.mxu0 %v3334
        %4292 = vmatpush2.bf16.msra.mxu0 %v3333
        %4293 = vmatprep.subr.bf16.mxu0 %v3330
        %4294 = vmatpush2.bf16.msra.mxu0 %v3329
        %4295 = vmatprep.subr.bf16.mxu0 %v3326
        %4296 = vmatpush2.bf16.msra.mxu0 %v3325
        %4297 = vmatprep.subr.bf16.mxu0 %v3322
        %4298 = vmatpush2.bf16.msra.mxu0 %v3321
        %4299 = vmatprep.mubr.bf16.mxu0 %v1598
        %4300 = vmatmul.mubr.bf16.gmra.mxu0 %v1597
        %v4301 = vpop.f32.mrf.mxu0
        %v4302 = vadd.f32 %v4261, %v4301
        %v4303 = vpop.f32.mrf.mxu0
        %v4304 = vadd.f32 %v4263, %v4303
        %v4305 = vpop.f32.mrf.mxu0
        %v4306 = vpop.f32.mrf.mxu0
        %4307 = vdwg.mxu0
        %4308 = vmatprep.subr.bf16.mxu0 %v3382
        %4309 = vmatpush1.bf16.msra.mxu0 %v3381
        %4310 = vmatprep.subr.bf16.mxu0 %v3378
        %4311 = vmatpush1.bf16.msra.mxu0 %v3377
        %4312 = vmatprep.subr.bf16.mxu0 %v3374
        %4313 = vmatpush1.bf16.msra.mxu0 %v3373
        %4314 = vmatprep.subr.bf16.mxu0 %v3370
        %4315 = vmatpush1.bf16.msra.mxu0 %v3369
        %4316 = vmatprep.subr.bf16.mxu0 %v3366
        %4317 = vmatpush1.bf16.msra.mxu0 %v3365
        %4318 = vmatprep.subr.bf16.mxu0 %v3362
        %4319 = vmatpush1.bf16.msra.mxu0 %v3361
        %4320 = vmatprep.subr.bf16.mxu0 %v3358
        %4321 = vmatpush1.bf16.msra.mxu0 %v3357
        %4322 = vmatprep.subr.bf16.mxu0 %v3354
        %4323 = vmatpush1.bf16.msra.mxu0 %v3353
        %4324 = vmatprep.subr.bf16.mxu0 %v3414
        %4325 = vmatpush2.bf16.msra.mxu0 %v3413
        %4326 = vmatprep.subr.bf16.mxu0 %v3410
        %4327 = vmatpush2.bf16.msra.mxu0 %v3409
        %4328 = vmatprep.subr.bf16.mxu0 %v3406
        %4329 = vmatpush2.bf16.msra.mxu0 %v3405
        %4330 = vmatprep.subr.bf16.mxu0 %v3402
        %4331 = vmatpush2.bf16.msra.mxu0 %v3401
        %4332 = vmatprep.subr.bf16.mxu0 %v3398
        %4333 = vmatpush2.bf16.msra.mxu0 %v3397
        %4334 = vmatprep.subr.bf16.mxu0 %v3394
        %4335 = vmatpush2.bf16.msra.mxu0 %v3393
        %4336 = vmatprep.subr.bf16.mxu0 %v3390
        %4337 = vmatpush2.bf16.msra.mxu0 %v3389
        %4338 = vmatprep.subr.bf16.mxu0 %v3386
        %4339 = vmatpush2.bf16.msra.mxu0 %v3385
        %4340 = vmatprep.mubr.bf16.mxu0 %v1600
        %4341 = vmatmul.mubr.bf16.gmra.mxu0 %v1599
        %v4342 = vpop.f32.mrf.mxu0
        %v4343 = vadd.f32 %v4302, %v4342
        %v4344 = vpop.f32.mrf.mxu0
        %v4345 = vadd.f32 %v4304, %v4344
        %v4346 = vpop.f32.mrf.mxu0
        %v4347 = vpop.f32.mrf.mxu0
        %4348 = vdwg.mxu0
        %4349 = vmatprep.subr.bf16.mxu0 %v3446
        %4350 = vmatpush1.bf16.msra.mxu0 %v3445
        %4351 = vmatprep.subr.bf16.mxu0 %v3442
        %4352 = vmatpush1.bf16.msra.mxu0 %v3441
        %4353 = vmatprep.subr.bf16.mxu0 %v3438
        %4354 = vmatpush1.bf16.msra.mxu0 %v3437
        %4355 = vmatprep.subr.bf16.mxu0 %v3434
        %4356 = vmatpush1.bf16.msra.mxu0 %v3433
        %4357 = vmatprep.subr.bf16.mxu0 %v3430
        %4358 = vmatpush1.bf16.msra.mxu0 %v3429
        %4359 = vmatprep.subr.bf16.mxu0 %v3426
        %4360 = vmatpush1.bf16.msra.mxu0 %v3425
        %4361 = vmatprep.subr.bf16.mxu0 %v3422
        %4362 = vmatpush1.bf16.msra.mxu0 %v3421
        %4363 = vmatprep.subr.bf16.mxu0 %v3418
        %4364 = vmatpush1.bf16.msra.mxu0 %v3417
        %4365 = vmatprep.subr.bf16.mxu0 %v3478
        %4366 = vmatpush2.bf16.msra.mxu0 %v3477
        %4367 = vmatprep.subr.bf16.mxu0 %v3474
        %4368 = vmatpush2.bf16.msra.mxu0 %v3473
        %4369 = vmatprep.subr.bf16.mxu0 %v3470
        %4370 = vmatpush2.bf16.msra.mxu0 %v3469
        %4371 = vmatprep.subr.bf16.mxu0 %v3466
        %4372 = vmatpush2.bf16.msra.mxu0 %v3465
        %4373 = vmatprep.subr.bf16.mxu0 %v3462
        %4374 = vmatpush2.bf16.msra.mxu0 %v3461
        %4375 = vmatprep.subr.bf16.mxu0 %v3458
        %4376 = vmatpush2.bf16.msra.mxu0 %v3457
        %4377 = vmatprep.subr.bf16.mxu0 %v3454
        %4378 = vmatpush2.bf16.msra.mxu0 %v3453
        %4379 = vmatprep.subr.bf16.mxu0 %v3450
        %4380 = vmatpush2.bf16.msra.mxu0 %v3449
        %4381 = vmatprep.mubr.bf16.mxu0 %v1602
        %4382 = vmatmul.mubr.bf16.gmra.mxu0 %v1601
        %v4383 = vpop.f32.mrf.mxu0
        %v4384 = vadd.f32 %v4343, %v4383
        %v4385 = vpop.f32.mrf.mxu0
        %v4386 = vadd.f32 %v4345, %v4385
        %v4387 = vpop.f32.mrf.mxu0
        %v4388 = vpop.f32.mrf.mxu0
        %4389 = vdwg.mxu0
        %4390 = vmatprep.subr.bf16.mxu0 %v3510
        %4391 = vmatpush1.bf16.msra.mxu0 %v3509
        %4392 = vmatprep.subr.bf16.mxu0 %v3506
        %4393 = vmatpush1.bf16.msra.mxu0 %v3505
        %4394 = vmatprep.subr.bf16.mxu0 %v3502
        %4395 = vmatpush1.bf16.msra.mxu0 %v3501
        %4396 = vmatprep.subr.bf16.mxu0 %v3498
        %4397 = vmatpush1.bf16.msra.mxu0 %v3497
        %4398 = vmatprep.subr.bf16.mxu0 %v3494
        %4399 = vmatpush1.bf16.msra.mxu0 %v3493
        %4400 = vmatprep.subr.bf16.mxu0 %v3490
        %4401 = vmatpush1.bf16.msra.mxu0 %v3489
        %4402 = vmatprep.subr.bf16.mxu0 %v3486
        %4403 = vmatpush1.bf16.msra.mxu0 %v3485
        %4404 = vmatprep.subr.bf16.mxu0 %v3482
        %4405 = vmatpush1.bf16.msra.mxu0 %v3481
        %4406 = vmatprep.subr.bf16.mxu0 %v3542
        %4407 = vmatpush2.bf16.msra.mxu0 %v3541
        %4408 = vmatprep.subr.bf16.mxu0 %v3538
        %4409 = vmatpush2.bf16.msra.mxu0 %v3537
        %4410 = vmatprep.subr.bf16.mxu0 %v3534
        %4411 = vmatpush2.bf16.msra.mxu0 %v3533
        %4412 = vmatprep.subr.bf16.mxu0 %v3530
        %4413 = vmatpush2.bf16.msra.mxu0 %v3529
        %4414 = vmatprep.subr.bf16.mxu0 %v3526
        %4415 = vmatpush2.bf16.msra.mxu0 %v3525
        %4416 = vmatprep.subr.bf16.mxu0 %v3522
        %4417 = vmatpush2.bf16.msra.mxu0 %v3521
        %4418 = vmatprep.subr.bf16.mxu0 %v3518
        %4419 = vmatpush2.bf16.msra.mxu0 %v3517
        %4420 = vmatprep.subr.bf16.mxu0 %v3514
        %4421 = vmatpush2.bf16.msra.mxu0 %v3513
        %4422 = vmatprep.mubr.bf16.mxu0 %v1604
        %4423 = vmatmul.mubr.bf16.gmra.mxu0 %v1603
        %v4424 = vpop.f32.mrf.mxu0
        %v4425 = vadd.f32 %v4384, %v4424
        %v4426 = vpop.f32.mrf.mxu0
        %v4427 = vadd.f32 %v4386, %v4426
        %v4428 = vpop.f32.mrf.mxu0
        %v4429 = vpop.f32.mrf.mxu0
        %4430 = vdwg.mxu0
        %4431 = vmatprep.subr.bf16.mxu0 %v3574
        %4432 = vmatpush1.bf16.msra.mxu0 %v3573
        %4433 = vmatprep.subr.bf16.mxu0 %v3570
        %4434 = vmatpush1.bf16.msra.mxu0 %v3569
        %4435 = vmatprep.subr.bf16.mxu0 %v3566
        %4436 = vmatpush1.bf16.msra.mxu0 %v3565
        %4437 = vmatprep.subr.bf16.mxu0 %v3562
        %4438 = vmatpush1.bf16.msra.mxu0 %v3561
        %4439 = vmatprep.subr.bf16.mxu0 %v3558
        %4440 = vmatpush1.bf16.msra.mxu0 %v3557
        %4441 = vmatprep.subr.bf16.mxu0 %v3554
        %4442 = vmatpush1.bf16.msra.mxu0 %v3553
        %4443 = vmatprep.subr.bf16.mxu0 %v3550
        %4444 = vmatpush1.bf16.msra.mxu0 %v3549
        %4445 = vmatprep.subr.bf16.mxu0 %v3546
        %4446 = vmatpush1.bf16.msra.mxu0 %v3545
        %4447 = vmatprep.subr.bf16.mxu0 %v3606
        %4448 = vmatpush2.bf16.msra.mxu0 %v3605
        %4449 = vmatprep.subr.bf16.mxu0 %v3602
        %4450 = vmatpush2.bf16.msra.mxu0 %v3601
        %4451 = vmatprep.subr.bf16.mxu0 %v3598
        %4452 = vmatpush2.bf16.msra.mxu0 %v3597
        %4453 = vmatprep.subr.bf16.mxu0 %v3594
        %4454 = vmatpush2.bf16.msra.mxu0 %v3593
        %4455 = vmatprep.subr.bf16.mxu0 %v3590
        %4456 = vmatpush2.bf16.msra.mxu0 %v3589
        %4457 = vmatprep.subr.bf16.mxu0 %v3586
        %4458 = vmatpush2.bf16.msra.mxu0 %v3585
        %4459 = vmatprep.subr.bf16.mxu0 %v3582
        %4460 = vmatpush2.bf16.msra.mxu0 %v3581
        %4461 = vmatprep.subr.bf16.mxu0 %v3578
        %4462 = vmatpush2.bf16.msra.mxu0 %v3577
        %4463 = vmatprep.mubr.bf16.mxu0 %v1606
        %4464 = vmatmul.mubr.bf16.gmra.mxu0 %v1605
        %v4465 = vpop.f32.mrf.mxu0
        %v4466 = vadd.f32 %v4425, %v4465
        %v4467 = vpop.f32.mrf.mxu0
        %v4468 = vadd.f32 %v4427, %v4467
        %v4469 = vpop.f32.mrf.mxu0
        %v4470 = vpop.f32.mrf.mxu0
        %4471 = vdwg.mxu0
        %4472 = vmatprep.subr.bf16.mxu0 %v3638
        %4473 = vmatpush1.bf16.msra.mxu0 %v3637
        %4474 = vmatprep.subr.bf16.mxu0 %v3634
        %4475 = vmatpush1.bf16.msra.mxu0 %v3633
        %4476 = vmatprep.subr.bf16.mxu0 %v3630
        %4477 = vmatpush1.bf16.msra.mxu0 %v3629
        %4478 = vmatprep.subr.bf16.mxu0 %v3626
        %4479 = vmatpush1.bf16.msra.mxu0 %v3625
        %4480 = vmatprep.subr.bf16.mxu0 %v3622
        %4481 = vmatpush1.bf16.msra.mxu0 %v3621
        %4482 = vmatprep.subr.bf16.mxu0 %v3618
        %4483 = vmatpush1.bf16.msra.mxu0 %v3617
        %4484 = vmatprep.subr.bf16.mxu0 %v3614
        %4485 = vmatpush1.bf16.msra.mxu0 %v3613
        %4486 = vmatprep.subr.bf16.mxu0 %v3610
        %4487 = vmatpush1.bf16.msra.mxu0 %v3609
        %4488 = vmatprep.subr.bf16.mxu0 %v3670
        %4489 = vmatpush2.bf16.msra.mxu0 %v3669
        %4490 = vmatprep.subr.bf16.mxu0 %v3666
        %4491 = vmatpush2.bf16.msra.mxu0 %v3665
        %4492 = vmatprep.subr.bf16.mxu0 %v3662
        %4493 = vmatpush2.bf16.msra.mxu0 %v3661
        %4494 = vmatprep.subr.bf16.mxu0 %v3658
        %4495 = vmatpush2.bf16.msra.mxu0 %v3657
        %4496 = vmatprep.subr.bf16.mxu0 %v3654
        %4497 = vmatpush2.bf16.msra.mxu0 %v3653
        %4498 = vmatprep.subr.bf16.mxu0 %v3650
        %4499 = vmatpush2.bf16.msra.mxu0 %v3649
        %4500 = vmatprep.subr.bf16.mxu0 %v3646
        %4501 = vmatpush2.bf16.msra.mxu0 %v3645
        %4502 = vmatprep.subr.bf16.mxu0 %v3642
        %4503 = vmatpush2.bf16.msra.mxu0 %v3641
        %4504 = vmatprep.mubr.bf16.mxu0 %v1608
        %4505 = vmatmul.mubr.bf16.gmra.mxu0 %v1607
        %v4506 = vpop.f32.mrf.mxu0
        %v4507 = vadd.f32 %v4466, %v4506
        %v4508 = vpop.f32.mrf.mxu0
        %v4509 = vadd.f32 %v4468, %v4508
        %v4510 = vpop.f32.mrf.mxu0
        %v4511 = vpop.f32.mrf.mxu0
        %4512 = vdwg.mxu0
        %4513 = vmatprep.subr.bf16.mxu0 %v3192
        %4514 = vmatpush1.bf16.msra.mxu0 %v3191
        %4515 = vmatprep.subr.bf16.mxu0 %v3188
        %4516 = vmatpush1.bf16.msra.mxu0 %v3187
        %4517 = vmatprep.subr.bf16.mxu0 %v3184
        %4518 = vmatpush1.bf16.msra.mxu0 %v3183
        %4519 = vmatprep.subr.bf16.mxu0 %v3180
        %4520 = vmatpush1.bf16.msra.mxu0 %v3179
        %4521 = vmatprep.subr.bf16.mxu0 %v3176
        %4522 = vmatpush1.bf16.msra.mxu0 %v3175
        %4523 = vmatprep.subr.bf16.mxu0 %v3172
        %4524 = vmatpush1.bf16.msra.mxu0 %v3171
        %4525 = vmatprep.subr.bf16.mxu0 %v3168
        %4526 = vmatpush1.bf16.msra.mxu0 %v3167
        %4527 = vmatprep.subr.bf16.mxu0 %v3164
        %4528 = vmatpush1.bf16.msra.mxu0 %v3163
        %4529 = vmatprep.subr.bf16.mxu0 %v3224
        %4530 = vmatpush2.bf16.msra.mxu0 %v3223
        %4531 = vmatprep.subr.bf16.mxu0 %v3220
        %4532 = vmatpush2.bf16.msra.mxu0 %v3219
        %4533 = vmatprep.subr.bf16.mxu0 %v3216
        %4534 = vmatpush2.bf16.msra.mxu0 %v3215
        %4535 = vmatprep.subr.bf16.mxu0 %v3212
        %4536 = vmatpush2.bf16.msra.mxu0 %v3211
        %4537 = vmatprep.subr.bf16.mxu0 %v3208
        %4538 = vmatpush2.bf16.msra.mxu0 %v3207
        %4539 = vmatprep.subr.bf16.mxu0 %v3204
        %4540 = vmatpush2.bf16.msra.mxu0 %v3203
        %4541 = vmatprep.subr.bf16.mxu0 %v3200
        %4542 = vmatpush2.bf16.msra.mxu0 %v3199
        %4543 = vmatprep.subr.bf16.mxu0 %v3196
        %4544 = vmatpush2.bf16.msra.mxu0 %v3195
        %4545 = vmatprep.mubr.bf16.mxu0 %v1594
        %4546 = vmatmul.mubr.bf16.gmra.mxu0 %v1593
        %v4547 = vpop.f32.mrf.mxu0
        %v4548 = vadd.f32 %v1503, %v4547
        %v4549 = vpop.f32.mrf.mxu0
        %v4550 = vadd.f32 %v1507, %v4549
        %v4551 = vpop.f32.mrf.mxu0
        %v4552 = vpop.f32.mrf.mxu0
        %4553 = vdwg.mxu0
        %4554 = vmatprep.subr.bf16.mxu0 %v3256
        %4555 = vmatpush1.bf16.msra.mxu0 %v3255
        %4556 = vmatprep.subr.bf16.mxu0 %v3252
        %4557 = vmatpush1.bf16.msra.mxu0 %v3251
        %4558 = vmatprep.subr.bf16.mxu0 %v3248
        %4559 = vmatpush1.bf16.msra.mxu0 %v3247
        %4560 = vmatprep.subr.bf16.mxu0 %v3244
        %4561 = vmatpush1.bf16.msra.mxu0 %v3243
        %4562 = vmatprep.subr.bf16.mxu0 %v3240
        %4563 = vmatpush1.bf16.msra.mxu0 %v3239
        %4564 = vmatprep.subr.bf16.mxu0 %v3236
        %4565 = vmatpush1.bf16.msra.mxu0 %v3235
        %4566 = vmatprep.subr.bf16.mxu0 %v3232
        %4567 = vmatpush1.bf16.msra.mxu0 %v3231
        %4568 = vmatprep.subr.bf16.mxu0 %v3228
        %4569 = vmatpush1.bf16.msra.mxu0 %v3227
        %4570 = vmatprep.subr.bf16.mxu0 %v3288
        %4571 = vmatpush2.bf16.msra.mxu0 %v3287
        %4572 = vmatprep.subr.bf16.mxu0 %v3284
        %4573 = vmatpush2.bf16.msra.mxu0 %v3283
        %4574 = vmatprep.subr.bf16.mxu0 %v3280
        %4575 = vmatpush2.bf16.msra.mxu0 %v3279
        %4576 = vmatprep.subr.bf16.mxu0 %v3276
        %4577 = vmatpush2.bf16.msra.mxu0 %v3275
        %4578 = vmatprep.subr.bf16.mxu0 %v3272
        %4579 = vmatpush2.bf16.msra.mxu0 %v3271
        %4580 = vmatprep.subr.bf16.mxu0 %v3268
        %4581 = vmatpush2.bf16.msra.mxu0 %v3267
        %4582 = vmatprep.subr.bf16.mxu0 %v3264
        %4583 = vmatpush2.bf16.msra.mxu0 %v3263
        %4584 = vmatprep.subr.bf16.mxu0 %v3260
        %4585 = vmatpush2.bf16.msra.mxu0 %v3259
        %4586 = vmatprep.mubr.bf16.mxu0 %v1596
        %4587 = vmatmul.mubr.bf16.gmra.mxu0 %v1595
        %v4588 = vpop.f32.mrf.mxu0
        %v4589 = vadd.f32 %v4548, %v4588
        %v4590 = vpop.f32.mrf.mxu0
        %v4591 = vadd.f32 %v4550, %v4590
        %v4592 = vpop.f32.mrf.mxu0
        %v4593 = vpop.f32.mrf.mxu0
        %4594 = vdwg.mxu0
        %4595 = vmatprep.subr.bf16.mxu0 %v3320
        %4596 = vmatpush1.bf16.msra.mxu0 %v3319
        %4597 = vmatprep.subr.bf16.mxu0 %v3316
        %4598 = vmatpush1.bf16.msra.mxu0 %v3315
        %4599 = vmatprep.subr.bf16.mxu0 %v3312
        %4600 = vmatpush1.bf16.msra.mxu0 %v3311
        %4601 = vmatprep.subr.bf16.mxu0 %v3308
        %4602 = vmatpush1.bf16.msra.mxu0 %v3307
        %4603 = vmatprep.subr.bf16.mxu0 %v3304
        %4604 = vmatpush1.bf16.msra.mxu0 %v3303
        %4605 = vmatprep.subr.bf16.mxu0 %v3300
        %4606 = vmatpush1.bf16.msra.mxu0 %v3299
        %4607 = vmatprep.subr.bf16.mxu0 %v3296
        %4608 = vmatpush1.bf16.msra.mxu0 %v3295
        %4609 = vmatprep.subr.bf16.mxu0 %v3292
        %4610 = vmatpush1.bf16.msra.mxu0 %v3291
        %4611 = vmatprep.subr.bf16.mxu0 %v3352
        %4612 = vmatpush2.bf16.msra.mxu0 %v3351
        %4613 = vmatprep.subr.bf16.mxu0 %v3348
        %4614 = vmatpush2.bf16.msra.mxu0 %v3347
        %4615 = vmatprep.subr.bf16.mxu0 %v3344
        %4616 = vmatpush2.bf16.msra.mxu0 %v3343
        %4617 = vmatprep.subr.bf16.mxu0 %v3340
        %4618 = vmatpush2.bf16.msra.mxu0 %v3339
        %4619 = vmatprep.subr.bf16.mxu0 %v3336
        %4620 = vmatpush2.bf16.msra.mxu0 %v3335
        %4621 = vmatprep.subr.bf16.mxu0 %v3332
        %4622 = vmatpush2.bf16.msra.mxu0 %v3331
        %4623 = vmatprep.subr.bf16.mxu0 %v3328
        %4624 = vmatpush2.bf16.msra.mxu0 %v3327
        %4625 = vmatprep.subr.bf16.mxu0 %v3324
        %4626 = vmatpush2.bf16.msra.mxu0 %v3323
        %4627 = vmatprep.mubr.bf16.mxu0 %v1598
        %4628 = vmatmul.mubr.bf16.gmra.mxu0 %v1597
        %v4629 = vpop.f32.mrf.mxu0
        %v4630 = vadd.f32 %v4589, %v4629
        %v4631 = vpop.f32.mrf.mxu0
        %v4632 = vadd.f32 %v4591, %v4631
        %v4633 = vpop.f32.mrf.mxu0
        %v4634 = vpop.f32.mrf.mxu0
        %4635 = vdwg.mxu0
        %4636 = vmatprep.subr.bf16.mxu0 %v3384
        %4637 = vmatpush1.bf16.msra.mxu0 %v3383
        %4638 = vmatprep.subr.bf16.mxu0 %v3380
        %4639 = vmatpush1.bf16.msra.mxu0 %v3379
        %4640 = vmatprep.subr.bf16.mxu0 %v3376
        %4641 = vmatpush1.bf16.msra.mxu0 %v3375
        %4642 = vmatprep.subr.bf16.mxu0 %v3372
        %4643 = vmatpush1.bf16.msra.mxu0 %v3371
        %4644 = vmatprep.subr.bf16.mxu0 %v3368
        %4645 = vmatpush1.bf16.msra.mxu0 %v3367
        %4646 = vmatprep.subr.bf16.mxu0 %v3364
        %4647 = vmatpush1.bf16.msra.mxu0 %v3363
        %4648 = vmatprep.subr.bf16.mxu0 %v3360
        %4649 = vmatpush1.bf16.msra.mxu0 %v3359
        %4650 = vmatprep.subr.bf16.mxu0 %v3356
        %4651 = vmatpush1.bf16.msra.mxu0 %v3355
        %4652 = vmatprep.subr.bf16.mxu0 %v3416
        %4653 = vmatpush2.bf16.msra.mxu0 %v3415
        %4654 = vmatprep.subr.bf16.mxu0 %v3412
        %4655 = vmatpush2.bf16.msra.mxu0 %v3411
        %4656 = vmatprep.subr.bf16.mxu0 %v3408
        %4657 = vmatpush2.bf16.msra.mxu0 %v3407
        %4658 = vmatprep.subr.bf16.mxu0 %v3404
        %4659 = vmatpush2.bf16.msra.mxu0 %v3403
        %4660 = vmatprep.subr.bf16.mxu0 %v3400
        %4661 = vmatpush2.bf16.msra.mxu0 %v3399
        %4662 = vmatprep.subr.bf16.mxu0 %v3396
        %4663 = vmatpush2.bf16.msra.mxu0 %v3395
        %4664 = vmatprep.subr.bf16.mxu0 %v3392
        %4665 = vmatpush2.bf16.msra.mxu0 %v3391
        %4666 = vmatprep.subr.bf16.mxu0 %v3388
        %4667 = vmatpush2.bf16.msra.mxu0 %v3387
        %4668 = vmatprep.mubr.bf16.mxu0 %v1600
        %4669 = vmatmul.mubr.bf16.gmra.mxu0 %v1599
        %v4670 = vpop.f32.mrf.mxu0
        %v4671 = vadd.f32 %v4630, %v4670
        %v4672 = vpop.f32.mrf.mxu0
        %v4673 = vadd.f32 %v4632, %v4672
        %v4674 = vpop.f32.mrf.mxu0
        %v4675 = vpop.f32.mrf.mxu0
        %4676 = vdwg.mxu0
        %4677 = vmatprep.subr.bf16.mxu0 %v3448
        %4678 = vmatpush1.bf16.msra.mxu0 %v3447
        %4679 = vmatprep.subr.bf16.mxu0 %v3444
        %4680 = vmatpush1.bf16.msra.mxu0 %v3443
        %4681 = vmatprep.subr.bf16.mxu0 %v3440
        %4682 = vmatpush1.bf16.msra.mxu0 %v3439
        %4683 = vmatprep.subr.bf16.mxu0 %v3436
        %4684 = vmatpush1.bf16.msra.mxu0 %v3435
        %4685 = vmatprep.subr.bf16.mxu0 %v3432
        %4686 = vmatpush1.bf16.msra.mxu0 %v3431
        %4687 = vmatprep.subr.bf16.mxu0 %v3428
        %4688 = vmatpush1.bf16.msra.mxu0 %v3427
        %4689 = vmatprep.subr.bf16.mxu0 %v3424
        %4690 = vmatpush1.bf16.msra.mxu0 %v3423
        %4691 = vmatprep.subr.bf16.mxu0 %v3420
        %4692 = vmatpush1.bf16.msra.mxu0 %v3419
        %4693 = vmatprep.subr.bf16.mxu0 %v3480
        %4694 = vmatpush2.bf16.msra.mxu0 %v3479
        %4695 = vmatprep.subr.bf16.mxu0 %v3476
        %4696 = vmatpush2.bf16.msra.mxu0 %v3475
        %4697 = vmatprep.subr.bf16.mxu0 %v3472
        %4698 = vmatpush2.bf16.msra.mxu0 %v3471
        %4699 = vmatprep.subr.bf16.mxu0 %v3468
        %4700 = vmatpush2.bf16.msra.mxu0 %v3467
        %4701 = vmatprep.subr.bf16.mxu0 %v3464
        %4702 = vmatpush2.bf16.msra.mxu0 %v3463
        %4703 = vmatprep.subr.bf16.mxu0 %v3460
        %4704 = vmatpush2.bf16.msra.mxu0 %v3459
        %4705 = vmatprep.subr.bf16.mxu0 %v3456
        %4706 = vmatpush2.bf16.msra.mxu0 %v3455
        %4707 = vmatprep.subr.bf16.mxu0 %v3452
        %4708 = vmatpush2.bf16.msra.mxu0 %v3451
        %4709 = vmatprep.mubr.bf16.mxu0 %v1602
        %4710 = vmatmul.mubr.bf16.gmra.mxu0 %v1601
        %v4711 = vpop.f32.mrf.mxu0
        %v4712 = vadd.f32 %v4671, %v4711
        %v4713 = vpop.f32.mrf.mxu0
        %v4714 = vadd.f32 %v4673, %v4713
        %v4715 = vpop.f32.mrf.mxu0
        %v4716 = vpop.f32.mrf.mxu0
        %4717 = vdwg.mxu0
        %4718 = vmatprep.subr.bf16.mxu0 %v3512
        %4719 = vmatpush1.bf16.msra.mxu0 %v3511
        %4720 = vmatprep.subr.bf16.mxu0 %v3508
        %4721 = vmatpush1.bf16.msra.mxu0 %v3507
        %4722 = vmatprep.subr.bf16.mxu0 %v3504
        %4723 = vmatpush1.bf16.msra.mxu0 %v3503
        %4724 = vmatprep.subr.bf16.mxu0 %v3500
        %4725 = vmatpush1.bf16.msra.mxu0 %v3499
        %4726 = vmatprep.subr.bf16.mxu0 %v3496
        %4727 = vmatpush1.bf16.msra.mxu0 %v3495
        %4728 = vmatprep.subr.bf16.mxu0 %v3492
        %4729 = vmatpush1.bf16.msra.mxu0 %v3491
        %4730 = vmatprep.subr.bf16.mxu0 %v3488
        %4731 = vmatpush1.bf16.msra.mxu0 %v3487
        %4732 = vmatprep.subr.bf16.mxu0 %v3484
        %4733 = vmatpush1.bf16.msra.mxu0 %v3483
        %4734 = vmatprep.subr.bf16.mxu0 %v3544
        %4735 = vmatpush2.bf16.msra.mxu0 %v3543
        %4736 = vmatprep.subr.bf16.mxu0 %v3540
        %4737 = vmatpush2.bf16.msra.mxu0 %v3539
        %4738 = vmatprep.subr.bf16.mxu0 %v3536
        %4739 = vmatpush2.bf16.msra.mxu0 %v3535
        %4740 = vmatprep.subr.bf16.mxu0 %v3532
        %4741 = vmatpush2.bf16.msra.mxu0 %v3531
        %4742 = vmatprep.subr.bf16.mxu0 %v3528
        %4743 = vmatpush2.bf16.msra.mxu0 %v3527
        %4744 = vmatprep.subr.bf16.mxu0 %v3524
        %4745 = vmatpush2.bf16.msra.mxu0 %v3523
        %4746 = vmatprep.subr.bf16.mxu0 %v3520
        %4747 = vmatpush2.bf16.msra.mxu0 %v3519
        %4748 = vmatprep.subr.bf16.mxu0 %v3516
        %4749 = vmatpush2.bf16.msra.mxu0 %v3515
        %4750 = vmatprep.mubr.bf16.mxu0 %v1604
        %4751 = vmatmul.mubr.bf16.gmra.mxu0 %v1603
        %v4752 = vpop.f32.mrf.mxu0
        %v4753 = vadd.f32 %v4712, %v4752
        %v4754 = vpop.f32.mrf.mxu0
        %v4755 = vadd.f32 %v4714, %v4754
        %v4756 = vpop.f32.mrf.mxu0
        %v4757 = vpop.f32.mrf.mxu0
        %4758 = vdwg.mxu0
        %4759 = vmatprep.subr.bf16.mxu0 %v3576
        %4760 = vmatpush1.bf16.msra.mxu0 %v3575
        %4761 = vmatprep.subr.bf16.mxu0 %v3572
        %4762 = vmatpush1.bf16.msra.mxu0 %v3571
        %4763 = vmatprep.subr.bf16.mxu0 %v3568
        %4764 = vmatpush1.bf16.msra.mxu0 %v3567
        %4765 = vmatprep.subr.bf16.mxu0 %v3564
        %4766 = vmatpush1.bf16.msra.mxu0 %v3563
        %4767 = vmatprep.subr.bf16.mxu0 %v3560
        %4768 = vmatpush1.bf16.msra.mxu0 %v3559
        %4769 = vmatprep.subr.bf16.mxu0 %v3556
        %4770 = vmatpush1.bf16.msra.mxu0 %v3555
        %4771 = vmatprep.subr.bf16.mxu0 %v3552
        %4772 = vmatpush1.bf16.msra.mxu0 %v3551
        %4773 = vmatprep.subr.bf16.mxu0 %v3548
        %4774 = vmatpush1.bf16.msra.mxu0 %v3547
        %4775 = vmatprep.subr.bf16.mxu0 %v3608
        %4776 = vmatpush2.bf16.msra.mxu0 %v3607
        %4777 = vmatprep.subr.bf16.mxu0 %v3604
        %4778 = vmatpush2.bf16.msra.mxu0 %v3603
        %4779 = vmatprep.subr.bf16.mxu0 %v3600
        %4780 = vmatpush2.bf16.msra.mxu0 %v3599
        %4781 = vmatprep.subr.bf16.mxu0 %v3596
        %4782 = vmatpush2.bf16.msra.mxu0 %v3595
        %4783 = vmatprep.subr.bf16.mxu0 %v3592
        %4784 = vmatpush2.bf16.msra.mxu0 %v3591
        %4785 = vmatprep.subr.bf16.mxu0 %v3588
        %4786 = vmatpush2.bf16.msra.mxu0 %v3587
        %4787 = vmatprep.subr.bf16.mxu0 %v3584
        %4788 = vmatpush2.bf16.msra.mxu0 %v3583
        %4789 = vmatprep.subr.bf16.mxu0 %v3580
        %4790 = vmatpush2.bf16.msra.mxu0 %v3579
        %4791 = vmatprep.mubr.bf16.mxu0 %v1606
        %4792 = vmatmul.mubr.bf16.gmra.mxu0 %v1605
        %v4793 = vpop.f32.mrf.mxu0
        %v4794 = vadd.f32 %v4753, %v4793
        %v4795 = vpop.f32.mrf.mxu0
        %v4796 = vadd.f32 %v4755, %v4795
        %v4797 = vpop.f32.mrf.mxu0
        %v4798 = vpop.f32.mrf.mxu0
        %4799 = vdwg.mxu0
        %4800 = vmatprep.subr.bf16.mxu0 %v3640
        %4801 = vmatpush1.bf16.msra.mxu0 %v3639
        %4802 = vmatprep.subr.bf16.mxu0 %v3636
        %4803 = vmatpush1.bf16.msra.mxu0 %v3635
        %4804 = vmatprep.subr.bf16.mxu0 %v3632
        %4805 = vmatpush1.bf16.msra.mxu0 %v3631
        %4806 = vmatprep.subr.bf16.mxu0 %v3628
        %4807 = vmatpush1.bf16.msra.mxu0 %v3627
        %4808 = vmatprep.subr.bf16.mxu0 %v3624
        %4809 = vmatpush1.bf16.msra.mxu0 %v3623
        %4810 = vmatprep.subr.bf16.mxu0 %v3620
        %4811 = vmatpush1.bf16.msra.mxu0 %v3619
        %4812 = vmatprep.subr.bf16.mxu0 %v3616
        %4813 = vmatpush1.bf16.msra.mxu0 %v3615
        %4814 = vmatprep.subr.bf16.mxu0 %v3612
        %4815 = vmatpush1.bf16.msra.mxu0 %v3611
        %4816 = vmatprep.subr.bf16.mxu0 %v3672
        %4817 = vmatpush2.bf16.msra.mxu0 %v3671
        %4818 = vmatprep.subr.bf16.mxu0 %v3668
        %4819 = vmatpush2.bf16.msra.mxu0 %v3667
        %4820 = vmatprep.subr.bf16.mxu0 %v3664
        %4821 = vmatpush2.bf16.msra.mxu0 %v3663
        %4822 = vmatprep.subr.bf16.mxu0 %v3660
        %4823 = vmatpush2.bf16.msra.mxu0 %v3659
        %4824 = vmatprep.subr.bf16.mxu0 %v3656
        %4825 = vmatpush2.bf16.msra.mxu0 %v3655
        %4826 = vmatprep.subr.bf16.mxu0 %v3652
        %4827 = vmatpush2.bf16.msra.mxu0 %v3651
        %4828 = vmatprep.subr.bf16.mxu0 %v3648
        %4829 = vmatpush2.bf16.msra.mxu0 %v3647
        %4830 = vmatprep.subr.bf16.mxu0 %v3644
        %4831 = vmatpush2.bf16.msra.mxu0 %v3643
        %4832 = vmatprep.mubr.bf16.mxu0 %v1608
        %4833 = vmatmul.mubr.bf16.gmra.mxu0 %v1607
        %v4834 = vpop.f32.mrf.mxu0
        %v4835 = vadd.f32 %v4794, %v4834
        %v4836 = vpop.f32.mrf.mxu0
        %v4837 = vadd.f32 %v4796, %v4836
        %v4838 = vpop.f32.mrf.mxu0
        %v4839 = vpop.f32.mrf.mxu0
        %4840 = vdwg.mxu0
        %v4845 = vcombine.low %v4507, %v4509
        %v4846 = vcombine.low %v4835, %v4837
        %v4848 = vunpack.c.l.s4 1983009808
        %v4849 = vunpack.c.0.s8 %v4848
        %v4850 = vlaneseq
        %v4851 = vshrl.u32 %v4850, 7
        %v4852 = vsub.s32 %v4849, %v4851
        %v4853 = vrot.slane %v4845, %v4852
        %v4855 = vunpack.c.l.s4 1983009808
        %v4856 = vunpack.c.0.s8 %v4855
        %v4857 = vlaneseq
        %v4858 = vshrl.u32 %v4857, 7
        %v4859 = vsub.s32 %v4856, %v4858
        %v4860 = vrot.slane %v4846, %v4859
        %v4861 = vcombine.low %v4853, %v4860
        %4863 = vst [vmem:[%s238] sm:$0xff] %v4861
        %s4864 = sand.u32 %s102, 1
        %s4865 = scalar_lea.sflag [#allocation4], %s4864
        %s4866 = sand.u32 %s102, 1
        %s4867 = smul.addr %s4866, 8
        %s4868 = scalar_lea.vmem [#allocation8], %s4867
        // Predicated region
        $region45: #{tpu_custom_call.1} parent=31 // pred_check
          %p4869 = pneg %p112
        $region46: #{tpu_custom_call.1} parent=31 // pred_check_branch
          %4871 = sbr.rel (%p4869) target = $region48
        $region47: #{tpu_custom_call.1} parent=31 // pred_region
          %s4872 = smul.u32 4, %s21
          %s4874 = ssub.s32 128, 128
          %4875 = vsyncadd %s4865, %s4874
          %s4876 = smul.addr %s4872, 32
          %s4877 = scalar_lea.hbm %s3, %s4876
          %s4879 = sshll.u32 %s4868, 4
          %s4880 = int_to_ptr.vmem [resolvable:$true] %s4879
          %4882 = dma.vmem_to_hbm [thread:$0]  %s4880, 128, %s4877, %s4865
        $region48: #{tpu_custom_call.1} parent=31 // pred_fallthru
          _
      $region32: #{tpu_custom_call.1} parent=5 // pred_fallthru
        _
      %p4883 = scmp.le.s32.totalorder 2, %s16
      // Predicated region
      $region49: #{tpu_custom_call.1} parent=5 // pred_check
        %p4884 = pneg %p4883
      $region50: #{tpu_custom_call.1} parent=5 // pred_check_branch
        %4886 = sbr.rel (%p4884) target = $region52
      $region51: #{tpu_custom_call.1} parent=5 // pred_region
        %s4887 = ssub.s32 %s16, 2
        // Predicated region
        $region53: #{tpu_custom_call.1} parent=51 // pred_check
          %p4888 = pneg %p118
        $region54: #{tpu_custom_call.1} parent=51 // pred_check_branch
          %4890 = sbr.rel (%p4888) target = $region56
        $region55: #{tpu_custom_call.1} parent=51 // pred_region
          %s4891 = sand.u32 %s103, 1
          %s4892 = scalar_lea.sflag [#allocation4], %s4891
          %s4893 = sand.u32 %s103, 1
          %s4894 = smul.addr %s4893, 8
          %s4895 = scalar_lea.vmem [#allocation8], %s4894
          %4896 = dma.done %s4892, 128
        $region56: #{tpu_custom_call.1} parent=51 // pred_fallthru
          _
      $region52: #{tpu_custom_call.1} parent=5 // pred_fallthru
        _
    $region6: #{tpu_custom_call.1} parent=1 // loop_footer
      %s20 = sadd.s32 1, %s16
    $region7: #{tpu_custom_call.1} parent=1 // loop_footer_branch
      %15 = sbr.rel target = $region3
    $region8: #{tpu_custom_call.1} parent=1 // loop_exit
      _
    %4897 = vsyncpa [#allocation3], 1
    %s4898 = scalar_lea.sflag [#allocation3], 1
    %4899 = vsyncpa %s4898, 1
    %4900 = vsyncpa [#allocation6], 1
    %s4901 = scalar_lea.sflag [#allocation6], 1
    %4902 = vsyncpa %s4901, 1
    %4903 = vsyncpa [#allocation4], 1
    %s4904 = scalar_lea.sflag [#allocation4], 1
    %4905 = vsyncpa %s4904, 1

</llo_original>
